<compile_context>
chip_gen: v6e
topology: v6e:2x2x1
jax: 0.10.0
libtpu: 0.0.40
codegen_flags: <defaults>
</compile_context>

<pallas_src>
import functools
import math

import jax
import jax.numpy as jnp
import numpy as np
from jax.experimental import pallas as pl
from jax.experimental.pallas import tpu as pltpu


def _round_up(v, m):
    return ((v + m - 1) // m) * m


# ----------------------------------------------------------------------------
# Kernel: full npred+1 step recurrence for one tile of TM packed rows.
# ----------------------------------------------------------------------------
def _lstm_kernel(x_ref, s_ref, f_ref, rows_ref, mats_ref, outm_ref, out_ref,
                 *, npred, hp):
    HP = hp
    f32 = jnp.float32

    rows = rows_ref[...]                       # (16, HP) bias / step-0 rows
    bf_f_r, bo_f_r = rows[0:1], rows[1:2]
    bf_s_r, bo_s_r = rows[2:3], rows[3:4]
    bxf_r, bxo_r = rows[4:5], rows[5:6]        # fc_b*wf_s+bf_s, fc_b*wo_s+bo_s
    bxs_r, bxw_r = rows[6:7], rows[7:8]        # fc_b*w_s,       fc_b*w
    fcb_r = rows[8:9]
    wfs_r, wos_r = rows[9:10], rows[10:11]     # step-0 only
    ws_r, w_r = rows[11:12], rows[12:13]       # step-0 only

    mats = mats_ref[...]                       # (HP, 6*HP) packed matrices
    rhs_sf = mats[:, :2 * HP]                  # [bd(wf_f) | bd(wo_f)]
    rhs_x = mats[:, 2 * HP:]                   # fc feedback fused with x-side

    s_prev = s_ref[...]                        # (TM, HP)
    f_prev = f_ref[...]                        # (TM, HP)
    h_prev = None

    out_acc = jnp.zeros_like(out_ref)          # (TM, HP) lane-dense output acc

    # npred is small & static -> fully unrolled.
    # TODO(synk): for npred >= 16 switch to lax.fori_loop carrying (s,f,h)
    # and write columns into a VMEM scratch instead of unrolling.
    for i in range(npred + 1):
        # hidden-side projections: one (TM,HP)@(HP,2HP) MXU matmul
        fo = jnp.dot(s_prev, rhs_sf, preferred_element_type=f32)
        f_f = jax.nn.sigmoid(fo[:, :HP] + bf_f_r)
        o_f = jax.nn.sigmoid(fo[:, HP:] + bo_f_r)

        if i == 0:
            # first step: input is the external x (lane-replicated per row);
            # one-time elementwise path (input_size == 1).
            x_rep = x_ref[...]
            f_s = jax.nn.sigmoid(x_rep * wfs_r + bf_s_r)
            o_s = jax.nn.sigmoid(x_rep * wos_r + bo_s_r)
            xs = x_rep * ws_r
            xw = x_rep * w_r
        else:
            # later steps: fc(h_prev) feedback folded into a single
            # (TM,HP)@(HP,4HP) matmul via the composed block-diagonal RHS.
            xres = jnp.dot(h_prev, rhs_x, preferred_element_type=f32)
            f_s = jax.nn.sigmoid(xres[:, 0:HP] + bxf_r)
            o_s = jax.nn.sigmoid(xres[:, HP:2 * HP] + bxo_r)
            xs = xres[:, 2 * HP:3 * HP] + bxs_r
            xw = xres[:, 3 * HP:4 * HP] + bxw_r

        one_m = 1.0 - f_s
        s = xs * one_m + s_prev * f_s
        f = s_prev * one_m + f_prev * f_f
        h = jnp.tanh(s) * o_s + jnp.tanh(f) * o_f + xw

        if i > 0:
            # fc(h_i) per logical row, landed on compact lanes (i-1)*P..i*P-1
            # of the lane-dense output block; off the recurrence critical path.
            out_acc = out_acc + jnp.dot(h, outm_ref[i - 1],
                                        preferred_element_type=f32)

        s_prev, f_prev, h_prev = s, f, h

    out_ref[...] = out_acc + fcb_r             # single dense (TM,128) store


# ----------------------------------------------------------------------------
# Wrapper
# ----------------------------------------------------------------------------
def lstm_decoder_pallas(x, spre, fpre, params, npred):
    B, L, din = x.shape
    H = spre.shape[-1]
    assert din == 1, "recurrence feeds fc(h) (dim 1) back as the cell input"
    f32 = jnp.float32
    M = B * L

    # lane-packing factor: P logical rows share one 128-lane physical row
    P = 128 // H if (H <= 128 and 128 % H == 0) else 1
    HP = P * H
    assert npred * P <= HP, "output slab too narrow for this npred"
    # TODO(synk): npred*P > HP would need a wider (multiple-of-128) output slab.

    # flatten activations (B, L) -> M rows
    x2 = x.reshape(M, 1).astype(f32)
    s2 = spre.reshape(M, H).astype(f32)
    f2 = fpre.reshape(M, H).astype(f32)

    # packed-row tile: small enough to keep the unrolled recurrence inside the
    # 64-vreg file, and >= 2 grid tiles whenever possible (v7x megacore).
    Mp = -(-M // P)
    TM = min(32, max(8, _round_up(-(-Mp // 2), 8)))
    Mp_pad = _round_up(Mp, TM)
    M_pad = Mp_pad * P
    if M_pad != M:
        pad = M_pad - M
        x2 = jnp.pad(x2, ((0, pad), (0, 0)))
        s2 = jnp.pad(s2, ((0, pad), (0, 0)))
        f2 = jnp.pad(f2, ((0, pad), (0, 0)))

    # pack: packed row r holds logical rows r*P .. r*P+P-1 side by side
    x_rep = jnp.broadcast_to(x2, (M_pad, H)).reshape(Mp_pad, HP)
    sp = s2.reshape(Mp_pad, HP)
    fp = f2.reshape(Mp_pad, HP)

    # ------------------------------------------------------------------ params
    w_s = params["w_s"].astype(f32)      # (1, H)
    w = params["w"].astype(f32)
    wf_s = params["wf_s"].astype(f32)
    wo_s = params["wo_s"].astype(f32)
    wf_f = params["wf_f"].astype(f32)    # (H, H)
    wo_f = params["wo_f"].astype(f32)
    bf_s = params["bf_s"].astype(f32)    # (1, H)
    bf_f = params["bf_f"].astype(f32)
    bo_s = params["bo_s"].astype(f32)
    bo_f = params["bo_f"].astype(f32)
    fc_w = params["fc_w"].astype(f32)    # (H, 1)
    fc_b = params["fc_b"].astype(f32)    # (1, 1)

    eyeP = jnp.eye(P, dtype=f32)
    bdiag = lambda A: jnp.kron(eyeP, A)             # (H,H) -> (HP,HP) blockdiag
    trow = lambda r: jnp.tile(r, (1, P))            # (1,H) -> (1,HP)

    # hidden-side fused RHS: [bd(wf_f) | bd(wo_f)]                    (HP, 2HP)
    rhs_sf = jnp.concatenate([bdiag(wf_f), bdiag(wo_f)], axis=1)
    # input-side fused RHS (steps >= 1): rank-1 fc feedback composed with each
    # input-side weight row -> one matmul per step.                   (HP, 4HP)
    rhs_x = jnp.concatenate([bdiag(fc_w @ wf_s), bdiag(fc_w @ wo_s),
                             bdiag(fc_w @ w_s), bdiag(fc_w @ w)], axis=1)
    mats = jnp.concatenate([rhs_sf, rhs_x], axis=1)                 # (HP, 6HP)

    # per-step output projector: h_i -> fc_w per lane-block, landing on compact
    # output lanes (i-1)*P .. i*P-1 of the lane-dense output block.
    base = jnp.kron(eyeP, fc_w)                                     # (HP, P)
    outm = jnp.zeros((npred, HP, HP), f32)
    for j in range(npred):
        outm = outm.at[j, :, j * P:(j + 1) * P].set(base)

    # bias / step-0 parameter rows, lane-tiled, one small slab      (16, HP)
    rows = jnp.concatenate([
        trow(bf_f), trow(bo_f), trow(bf_s), trow(bo_s),
        trow(fc_b * wf_s + bf_s), trow(fc_b * wo_s + bo_s),
        trow(fc_b * w_s), trow(fc_b * w),
        jnp.broadcast_to(fc_b, (1, HP)),
        trow(wf_s), trow(wo_s), trow(w_s), trow(w),
    ], axis=0)
    rows = jnp.pad(rows, ((0, 16 - rows.shape[0]), (0, 0)))

    # ------------------------------------------------------------- pallas call
    grid = (Mp_pad // TM,)
    act = lambda: pl.BlockSpec((TM, HP), lambda i: (i, 0))
    resident = lambda shp: pl.BlockSpec(shp, lambda i: (0,) * len(shp))

    out = pl.pallas_call(
        functools.partial(_lstm_kernel, npred=npred, hp=HP),
        out_shape=jax.ShapeDtypeStruct((Mp_pad, HP), f32),
        grid=grid,
        in_specs=[act(), act(), act(),
                  resident((16, HP)),
                  resident((HP, 6 * HP)),
                  resident((npred, HP, HP))],
        out_specs=pl.BlockSpec((TM, HP), lambda i: (i, 0)),
        compiler_params=pltpu.CompilerParams(
            dimension_semantics=("parallel",)),
    )(x_rep, sp, fp, rows, mats, outm)

    # unpack: compact lanes -> (M, npred) -> (B, npred, L) -> squeeze()
    out = out[:, :npred * P].reshape(Mp_pad, npred, P)
    out = out.transpose(0, 2, 1).reshape(M_pad, npred)[:M]
    out = out.reshape(B, L, npred).transpose(0, 2, 1)
    return jnp.squeeze(out)


# ----------------------------------------------------------------------------
# Pure-JAX reference (semantics of the PyTorch module)
# ----------------------------------------------------------------------------
def lstm_decoder_ref(x, spre, fpre, p, npred):
    with jax.default_matmul_precision("highest"):
        xin = x
        s_prev, f_prev = spre, fpre
        outs = []
        for i in range(npred + 1):
            xs = jnp.matmul(xin, p["w_s"])
            f_s = jax.nn.sigmoid(jnp.matmul(xin, p["wf_s"]) + p["bf_s"][0])
            f_f = jax.nn.sigmoid(jnp.matmul(s_prev, p["wf_f"]) + p["bf_f"][0])
            o_s = jax.nn.sigmoid(jnp.matmul(xin, p["wo_s"]) + p["bo_s"][0])
            o_f = jax.nn.sigmoid(jnp.matmul(s_prev, p["wo_f"]) + p["bo_f"][0])
            s = xs * (1.0 - f_s) + s_prev * f_s
            f = s_prev * (1.0 - f_s) + f_prev * f_f
            h = jnp.tanh(s) * o_s + jnp.tanh(f) * o_f + jnp.matmul(xin, p["w"])
            prev_x = jnp.matmul(h, p["fc_w"]) + p["fc_b"][0]
            if i > 0:
                outs.append(prev_x)
            xin = prev_x
            s_prev, f_prev = s, f
        return jnp.squeeze(jnp.stack(outs, axis=1))


# ----------------------------------------------------------------------------
# Deterministic parameter init (xavier_uniform for weights, zeros for biases)
# ----------------------------------------------------------------------------
def init_params(key, input_size, hidden_size):
    ks = jax.random.split(key, 8)

    def xavier(k, shape):
        bound = math.sqrt(6.0 / (shape[0] + shape[1]))
        return jax.random.uniform(k, shape, jnp.float32, -bound, bound)

    fc_bound = 1.0 / math.sqrt(hidden_size)
    return {
        "w_s": xavier(ks[0], (input_size, hidden_size)),
        "w": xavier(ks[1], (input_size, hidden_size)),
        "wf_s": xavier(ks[2], (input_size, hidden_size)),
        "wf_f": xavier(ks[3], (hidden_size, hidden_size)),
        "wo_s": xavier(ks[4], (input_size, hidden_size)),
        "wo_f": xavier(ks[5], (hidden_size, hidden_size)),
        "bf_s": jnp.zeros((1, hidden_size), jnp.float32),
        "bf_f": jnp.zeros((1, hidden_size), jnp.float32),
        "bo_s": jnp.zeros((1, hidden_size), jnp.float32),
        "bo_f": jnp.zeros((1, hidden_size), jnp.float32),
        "fc_w": jax.random.uniform(ks[6], (hidden_size, 1), jnp.float32,
                                   -fc_bound, fc_bound),
        "fc_b": jax.random.uniform(ks[7], (1, 1), jnp.float32,
                                   -fc_bound, fc_bound),
    }


if __name__ == "__main__":
    B, L = 64, 8            # M = 512 -> Mp = 128 packed rows -> 4 grid tiles
    input_size = 1          # required by the recurrence (fc output feeds back)
    hidden_size = 32
    npred = 4

    key = jax.random.PRNGKey(0)
    kp, kx, ks, kf = jax.random.split(key, 4)
    params = init_params(kp, input_size, hidden_size)

    x = jax.random.normal(kx, (B, L, input_size), jnp.float32)
    spre = jax.random.normal(ks, (B, L, hidden_size), jnp.float32)
    fpre = jax.random.normal(kf, (B, L, hidden_size), jnp.float32)

    out = lstm_decoder_pallas(x, spre, fpre, params, npred)
    out = jax.block_until_ready(out)

    ref = lstm_decoder_ref(x, spre, fpre, params, npred)
    np.testing.assert_allclose(np.asarray(out), np.asarray(ref),
                               rtol=1e-4, atol=1e-4)
    print("KERNEL_OK")
</pallas_src>

<mosaic_0001>
module attributes {stable_mosaic.version = 11 : i64} {
  func.func @_lstm_kernel(%arg0: i32, %arg1: memref<32x128xf32, #tpu.memory_space<vmem>>, %arg2: memref<32x128xf32, #tpu.memory_space<vmem>>, %arg3: memref<32x128xf32, #tpu.memory_space<vmem>>, %arg4: memref<16x128xf32, #tpu.memory_space<vmem>>, %arg5: memref<128x768xf32, #tpu.memory_space<vmem>>, %arg6: memref<4x128x128xf32, #tpu.memory_space<vmem>>, %arg7: memref<32x128xf32, #tpu.memory_space<vmem>>) attributes {dimension_semantics = [#tpu.dimension_semantics<parallel>], iteration_bounds = array<i64: 4>, scalar_prefetch = 0 : i64, scratch_operands = 0 : i64, tpu.core_type = #tpu.core_type<tc>, window_params = [{transform_indices = @transform_0, window_bounds = array<i64: 32, 128>}, {transform_indices = @transform_1, window_bounds = array<i64: 32, 128>}, {transform_indices = @transform_2, window_bounds = array<i64: 32, 128>}, {pipeline_mode = #tpu.pipeline_mode<synchronous>, transform_indices = @transform_3, window_bounds = array<i64: 16, 128>}, {pipeline_mode = #tpu.pipeline_mode<synchronous>, transform_indices = @transform_4, window_bounds = array<i64: 128, 768>}, {pipeline_mode = #tpu.pipeline_mode<synchronous>, transform_indices = @transform_5, window_bounds = array<i64: 4, 128, 128>}, {transform_indices = @transform_6, window_bounds = array<i64: 32, 128>}]} {
    %c0 = arith.constant 0 : index
    %c0_0 = arith.constant 0 : index
    %0 = vector.load %arg4[%c0, %c0_0] : memref<16x128xf32, #tpu.memory_space<vmem>>, vector<16x128xf32>
    %1 = vector.extract_strided_slice %0 {offsets = [0, 0], sizes = [1, 128], strides = [1, 1]} : vector<16x128xf32> to vector<1x128xf32>
    %2 = vector.extract_strided_slice %0 {offsets = [1, 0], sizes = [1, 128], strides = [1, 1]} : vector<16x128xf32> to vector<1x128xf32>
    %3 = vector.extract_strided_slice %0 {offsets = [2, 0], sizes = [1, 128], strides = [1, 1]} : vector<16x128xf32> to vector<1x128xf32>
    %4 = vector.extract_strided_slice %0 {offsets = [3, 0], sizes = [1, 128], strides = [1, 1]} : vector<16x128xf32> to vector<1x128xf32>
    %5 = vector.extract_strided_slice %0 {offsets = [4, 0], sizes = [1, 128], strides = [1, 1]} : vector<16x128xf32> to vector<1x128xf32>
    %6 = vector.extract_strided_slice %0 {offsets = [5, 0], sizes = [1, 128], strides = [1, 1]} : vector<16x128xf32> to vector<1x128xf32>
    %7 = vector.extract_strided_slice %0 {offsets = [6, 0], sizes = [1, 128], strides = [1, 1]} : vector<16x128xf32> to vector<1x128xf32>
    %8 = vector.extract_strided_slice %0 {offsets = [7, 0], sizes = [1, 128], strides = [1, 1]} : vector<16x128xf32> to vector<1x128xf32>
    %9 = vector.extract_strided_slice %0 {offsets = [8, 0], sizes = [1, 128], strides = [1, 1]} : vector<16x128xf32> to vector<1x128xf32>
    %10 = vector.extract_strided_slice %0 {offsets = [9, 0], sizes = [1, 128], strides = [1, 1]} : vector<16x128xf32> to vector<1x128xf32>
    %11 = vector.extract_strided_slice %0 {offsets = [10, 0], sizes = [1, 128], strides = [1, 1]} : vector<16x128xf32> to vector<1x128xf32>
    %12 = vector.extract_strided_slice %0 {offsets = [11, 0], sizes = [1, 128], strides = [1, 1]} : vector<16x128xf32> to vector<1x128xf32>
    %13 = vector.extract_strided_slice %0 {offsets = [12, 0], sizes = [1, 128], strides = [1, 1]} : vector<16x128xf32> to vector<1x128xf32>
    %c0_1 = arith.constant 0 : index
    %c0_2 = arith.constant 0 : index
    %14 = vector.load %arg5[%c0_1, %c0_2] : memref<128x768xf32, #tpu.memory_space<vmem>>, vector<128x768xf32>
    %15 = vector.extract_strided_slice %14 {offsets = [0, 0], sizes = [128, 256], strides = [1, 1]} : vector<128x768xf32> to vector<128x256xf32>
    %16 = vector.extract_strided_slice %14 {offsets = [0, 256], sizes = [128, 512], strides = [1, 1]} : vector<128x768xf32> to vector<128x512xf32>
    %c0_3 = arith.constant 0 : index
    %c0_4 = arith.constant 0 : index
    %17 = vector.load %arg2[%c0_3, %c0_4] : memref<32x128xf32, #tpu.memory_space<vmem>>, vector<32x128xf32>
    %c0_5 = arith.constant 0 : index
    %c0_6 = arith.constant 0 : index
    %18 = vector.load %arg3[%c0_5, %c0_6] : memref<32x128xf32, #tpu.memory_space<vmem>>, vector<32x128xf32>
    %cst = arith.constant 0.000000e+00 : f32
    %19 = vector.broadcast %cst : f32 to vector<32x128xf32>
    %cst_7 = arith.constant dense<0.000000e+00> : vector<32x256xf32>
    %20 = tpu.matmul %17, %15, %cst_7 {dimension_numbers = #tpu.dot_dimension_numbers<[1], [0], [0], [1], [0, 0, 1, 1], [], []>} : vector<32x128xf32>, vector<128x256xf32>, vector<32x256xf32> -> vector<32x256xf32>
    %21 = vector.extract_strided_slice %20 {offsets = [0, 0], sizes = [32, 128], strides = [1, 1]} : vector<32x256xf32> to vector<32x128xf32>
    %22 = vector.broadcast %1 : vector<1x128xf32> to vector<32x128xf32>
    %23 = arith.addf %21, %22 : vector<32x128xf32>
    %24 = arith.negf %23 : vector<32x128xf32>
    %25 = math.exp %24 : vector<32x128xf32>
    %cst_8 = arith.constant 1.000000e+00 : f32
    %26 = vector.broadcast %cst_8 : f32 to vector<32x128xf32>
    %27 = arith.addf %26, %25 : vector<32x128xf32>
    %28 = arith.divf %26, %27 : vector<32x128xf32>
    %29 = vector.extract_strided_slice %20 {offsets = [0, 128], sizes = [32, 128], strides = [1, 1]} : vector<32x256xf32> to vector<32x128xf32>
    %30 = vector.broadcast %2 : vector<1x128xf32> to vector<32x128xf32>
    %31 = arith.addf %29, %30 : vector<32x128xf32>
    %32 = arith.negf %31 : vector<32x128xf32>
    %33 = math.exp %32 : vector<32x128xf32>
    %cst_9 = arith.constant 1.000000e+00 : f32
    %34 = vector.broadcast %cst_9 : f32 to vector<32x128xf32>
    %35 = arith.addf %34, %33 : vector<32x128xf32>
    %36 = arith.divf %34, %35 : vector<32x128xf32>
    %c0_10 = arith.constant 0 : index
    %c0_11 = arith.constant 0 : index
    %37 = vector.load %arg1[%c0_10, %c0_11] : memref<32x128xf32, #tpu.memory_space<vmem>>, vector<32x128xf32>
    %38 = vector.broadcast %10 : vector<1x128xf32> to vector<32x128xf32>
    %39 = arith.mulf %37, %38 : vector<32x128xf32>
    %40 = vector.broadcast %3 : vector<1x128xf32> to vector<32x128xf32>
    %41 = arith.addf %39, %40 : vector<32x128xf32>
    %42 = arith.negf %41 : vector<32x128xf32>
    %43 = math.exp %42 : vector<32x128xf32>
    %cst_12 = arith.constant 1.000000e+00 : f32
    %44 = vector.broadcast %cst_12 : f32 to vector<32x128xf32>
    %45 = arith.addf %44, %43 : vector<32x128xf32>
    %46 = arith.divf %44, %45 : vector<32x128xf32>
    %47 = vector.broadcast %11 : vector<1x128xf32> to vector<32x128xf32>
    %48 = arith.mulf %37, %47 : vector<32x128xf32>
    %49 = vector.broadcast %4 : vector<1x128xf32> to vector<32x128xf32>
    %50 = arith.addf %48, %49 : vector<32x128xf32>
    %51 = arith.negf %50 : vector<32x128xf32>
    %52 = math.exp %51 : vector<32x128xf32>
    %cst_13 = arith.constant 1.000000e+00 : f32
    %53 = vector.broadcast %cst_13 : f32 to vector<32x128xf32>
    %54 = arith.addf %53, %52 : vector<32x128xf32>
    %55 = arith.divf %53, %54 : vector<32x128xf32>
    %56 = vector.broadcast %12 : vector<1x128xf32> to vector<32x128xf32>
    %57 = arith.mulf %37, %56 : vector<32x128xf32>
    %58 = vector.broadcast %13 : vector<1x128xf32> to vector<32x128xf32>
    %59 = arith.mulf %37, %58 : vector<32x128xf32>
    %cst_14 = arith.constant 1.000000e+00 : f32
    %60 = vector.broadcast %cst_14 : f32 to vector<32x128xf32>
    %61 = arith.subf %60, %46 : vector<32x128xf32>
    %62 = arith.mulf %57, %61 : vector<32x128xf32>
    %63 = arith.mulf %17, %46 : vector<32x128xf32>
    %64 = arith.addf %62, %63 : vector<32x128xf32>
    %65 = arith.mulf %17, %61 : vector<32x128xf32>
    %66 = arith.mulf %18, %28 : vector<32x128xf32>
    %67 = arith.addf %65, %66 : vector<32x128xf32>
    %68 = math.tanh %64 : vector<32x128xf32>
    %69 = arith.mulf %68, %55 : vector<32x128xf32>
    %70 = math.tanh %67 : vector<32x128xf32>
    %71 = arith.mulf %70, %36 : vector<32x128xf32>
    %72 = arith.addf %69, %71 : vector<32x128xf32>
    %73 = arith.addf %72, %59 : vector<32x128xf32>
    %cst_15 = arith.constant dense<0.000000e+00> : vector<32x256xf32>
    %74 = tpu.matmul %64, %15, %cst_15 {dimension_numbers = #tpu.dot_dimension_numbers<[1], [0], [0], [1], [0, 0, 1, 1], [], []>} : vector<32x128xf32>, vector<128x256xf32>, vector<32x256xf32> -> vector<32x256xf32>
    %75 = vector.extract_strided_slice %74 {offsets = [0, 0], sizes = [32, 128], strides = [1, 1]} : vector<32x256xf32> to vector<32x128xf32>
    %76 = vector.broadcast %1 : vector<1x128xf32> to vector<32x128xf32>
    %77 = arith.addf %75, %76 : vector<32x128xf32>
    %78 = arith.negf %77 : vector<32x128xf32>
    %79 = math.exp %78 : vector<32x128xf32>
    %cst_16 = arith.constant 1.000000e+00 : f32
    %80 = vector.broadcast %cst_16 : f32 to vector<32x128xf32>
    %81 = arith.addf %80, %79 : vector<32x128xf32>
    %82 = arith.divf %80, %81 : vector<32x128xf32>
    %83 = vector.extract_strided_slice %74 {offsets = [0, 128], sizes = [32, 128], strides = [1, 1]} : vector<32x256xf32> to vector<32x128xf32>
    %84 = vector.broadcast %2 : vector<1x128xf32> to vector<32x128xf32>
    %85 = arith.addf %83, %84 : vector<32x128xf32>
    %86 = arith.negf %85 : vector<32x128xf32>
    %87 = math.exp %86 : vector<32x128xf32>
    %cst_17 = arith.constant 1.000000e+00 : f32
    %88 = vector.broadcast %cst_17 : f32 to vector<32x128xf32>
    %89 = arith.addf %88, %87 : vector<32x128xf32>
    %90 = arith.divf %88, %89 : vector<32x128xf32>
    %cst_18 = arith.constant dense<0.000000e+00> : vector<32x512xf32>
    %91 = tpu.matmul %73, %16, %cst_18 {dimension_numbers = #tpu.dot_dimension_numbers<[1], [0], [0], [1], [0, 0, 1, 1], [], []>} : vector<32x128xf32>, vector<128x512xf32>, vector<32x512xf32> -> vector<32x512xf32>
    %92 = vector.extract_strided_slice %91 {offsets = [0, 0], sizes = [32, 128], strides = [1, 1]} : vector<32x512xf32> to vector<32x128xf32>
    %93 = vector.broadcast %5 : vector<1x128xf32> to vector<32x128xf32>
    %94 = arith.addf %92, %93 : vector<32x128xf32>
    %95 = arith.negf %94 : vector<32x128xf32>
    %96 = math.exp %95 : vector<32x128xf32>
    %cst_19 = arith.constant 1.000000e+00 : f32
    %97 = vector.broadcast %cst_19 : f32 to vector<32x128xf32>
    %98 = arith.addf %97, %96 : vector<32x128xf32>
    %99 = arith.divf %97, %98 : vector<32x128xf32>
    %100 = vector.extract_strided_slice %91 {offsets = [0, 128], sizes = [32, 128], strides = [1, 1]} : vector<32x512xf32> to vector<32x128xf32>
    %101 = vector.broadcast %6 : vector<1x128xf32> to vector<32x128xf32>
    %102 = arith.addf %100, %101 : vector<32x128xf32>
    %103 = arith.negf %102 : vector<32x128xf32>
    %104 = math.exp %103 : vector<32x128xf32>
    %cst_20 = arith.constant 1.000000e+00 : f32
    %105 = vector.broadcast %cst_20 : f32 to vector<32x128xf32>
    %106 = arith.addf %105, %104 : vector<32x128xf32>
    %107 = arith.divf %105, %106 : vector<32x128xf32>
    %108 = vector.extract_strided_slice %91 {offsets = [0, 256], sizes = [32, 128], strides = [1, 1]} : vector<32x512xf32> to vector<32x128xf32>
    %109 = vector.broadcast %7 : vector<1x128xf32> to vector<32x128xf32>
    %110 = arith.addf %108, %109 : vector<32x128xf32>
    %111 = vector.extract_strided_slice %91 {offsets = [0, 384], sizes = [32, 128], strides = [1, 1]} : vector<32x512xf32> to vector<32x128xf32>
    %112 = vector.broadcast %8 : vector<1x128xf32> to vector<32x128xf32>
    %113 = arith.addf %111, %112 : vector<32x128xf32>
    %cst_21 = arith.constant 1.000000e+00 : f32
    %114 = vector.broadcast %cst_21 : f32 to vector<32x128xf32>
    %115 = arith.subf %114, %99 : vector<32x128xf32>
    %116 = arith.mulf %110, %115 : vector<32x128xf32>
    %117 = arith.mulf %64, %99 : vector<32x128xf32>
    %118 = arith.addf %116, %117 : vector<32x128xf32>
    %119 = arith.mulf %64, %115 : vector<32x128xf32>
    %120 = arith.mulf %67, %82 : vector<32x128xf32>
    %121 = arith.addf %119, %120 : vector<32x128xf32>
    %122 = math.tanh %118 : vector<32x128xf32>
    %123 = arith.mulf %122, %107 : vector<32x128xf32>
    %124 = math.tanh %121 : vector<32x128xf32>
    %125 = arith.mulf %124, %90 : vector<32x128xf32>
    %126 = arith.addf %123, %125 : vector<32x128xf32>
    %127 = arith.addf %126, %113 : vector<32x128xf32>
    %c0_22 = arith.constant 0 : index
    %c0_23 = arith.constant 0 : index
    %c0_24 = arith.constant 0 : index
    %128 = vector.load %arg6[%c0_22, %c0_23, %c0_24] : memref<4x128x128xf32, #tpu.memory_space<vmem>>, vector<1x128x128xf32>
    %129 = vector.shape_cast %128 : vector<1x128x128xf32> to vector<128x128xf32>
    %cst_25 = arith.constant dense<0.000000e+00> : vector<32x128xf32>
    %130 = tpu.matmul %127, %129, %cst_25 {dimension_numbers = #tpu.dot_dimension_numbers<[1], [0], [0], [1], [0, 0, 1, 1], [], []>} : vector<32x128xf32>, vector<128x128xf32>, vector<32x128xf32> -> vector<32x128xf32>
    %131 = arith.addf %19, %130 : vector<32x128xf32>
    %cst_26 = arith.constant dense<0.000000e+00> : vector<32x256xf32>
    %132 = tpu.matmul %118, %15, %cst_26 {dimension_numbers = #tpu.dot_dimension_numbers<[1], [0], [0], [1], [0, 0, 1, 1], [], []>} : vector<32x128xf32>, vector<128x256xf32>, vector<32x256xf32> -> vector<32x256xf32>
    %133 = vector.extract_strided_slice %132 {offsets = [0, 0], sizes = [32, 128], strides = [1, 1]} : vector<32x256xf32> to vector<32x128xf32>
    %134 = vector.broadcast %1 : vector<1x128xf32> to vector<32x128xf32>
    %135 = arith.addf %133, %134 : vector<32x128xf32>
    %136 = arith.negf %135 : vector<32x128xf32>
    %137 = math.exp %136 : vector<32x128xf32>
    %cst_27 = arith.constant 1.000000e+00 : f32
    %138 = vector.broadcast %cst_27 : f32 to vector<32x128xf32>
    %139 = arith.addf %138, %137 : vector<32x128xf32>
    %140 = arith.divf %138, %139 : vector<32x128xf32>
    %141 = vector.extract_strided_slice %132 {offsets = [0, 128], sizes = [32, 128], strides = [1, 1]} : vector<32x256xf32> to vector<32x128xf32>
    %142 = vector.broadcast %2 : vector<1x128xf32> to vector<32x128xf32>
    %143 = arith.addf %141, %142 : vector<32x128xf32>
    %144 = arith.negf %143 : vector<32x128xf32>
    %145 = math.exp %144 : vector<32x128xf32>
    %cst_28 = arith.constant 1.000000e+00 : f32
    %146 = vector.broadcast %cst_28 : f32 to vector<32x128xf32>
    %147 = arith.addf %146, %145 : vector<32x128xf32>
    %148 = arith.divf %146, %147 : vector<32x128xf32>
    %cst_29 = arith.constant dense<0.000000e+00> : vector<32x512xf32>
    %149 = tpu.matmul %127, %16, %cst_29 {dimension_numbers = #tpu.dot_dimension_numbers<[1], [0], [0], [1], [0, 0, 1, 1], [], []>} : vector<32x128xf32>, vector<128x512xf32>, vector<32x512xf32> -> vector<32x512xf32>
    %150 = vector.extract_strided_slice %149 {offsets = [0, 0], sizes = [32, 128], strides = [1, 1]} : vector<32x512xf32> to vector<32x128xf32>
    %151 = vector.broadcast %5 : vector<1x128xf32> to vector<32x128xf32>
    %152 = arith.addf %150, %151 : vector<32x128xf32>
    %153 = arith.negf %152 : vector<32x128xf32>
    %154 = math.exp %153 : vector<32x128xf32>
    %cst_30 = arith.constant 1.000000e+00 : f32
    %155 = vector.broadcast %cst_30 : f32 to vector<32x128xf32>
    %156 = arith.addf %155, %154 : vector<32x128xf32>
    %157 = arith.divf %155, %156 : vector<32x128xf32>
    %158 = vector.extract_strided_slice %149 {offsets = [0, 128], sizes = [32, 128], strides = [1, 1]} : vector<32x512xf32> to vector<32x128xf32>
    %159 = vector.broadcast %6 : vector<1x128xf32> to vector<32x128xf32>
    %160 = arith.addf %158, %159 : vector<32x128xf32>
    %161 = arith.negf %160 : vector<32x128xf32>
    %162 = math.exp %161 : vector<32x128xf32>
    %cst_31 = arith.constant 1.000000e+00 : f32
    %163 = vector.broadcast %cst_31 : f32 to vector<32x128xf32>
    %164 = arith.addf %163, %162 : vector<32x128xf32>
    %165 = arith.divf %163, %164 : vector<32x128xf32>
    %166 = vector.extract_strided_slice %149 {offsets = [0, 256], sizes = [32, 128], strides = [1, 1]} : vector<32x512xf32> to vector<32x128xf32>
    %167 = vector.broadcast %7 : vector<1x128xf32> to vector<32x128xf32>
    %168 = arith.addf %166, %167 : vector<32x128xf32>
    %169 = vector.extract_strided_slice %149 {offsets = [0, 384], sizes = [32, 128], strides = [1, 1]} : vector<32x512xf32> to vector<32x128xf32>
    %170 = vector.broadcast %8 : vector<1x128xf32> to vector<32x128xf32>
    %171 = arith.addf %169, %170 : vector<32x128xf32>
    %cst_32 = arith.constant 1.000000e+00 : f32
    %172 = vector.broadcast %cst_32 : f32 to vector<32x128xf32>
    %173 = arith.subf %172, %157 : vector<32x128xf32>
    %174 = arith.mulf %168, %173 : vector<32x128xf32>
    %175 = arith.mulf %118, %157 : vector<32x128xf32>
    %176 = arith.addf %174, %175 : vector<32x128xf32>
    %177 = arith.mulf %118, %173 : vector<32x128xf32>
    %178 = arith.mulf %121, %140 : vector<32x128xf32>
    %179 = arith.addf %177, %178 : vector<32x128xf32>
    %180 = math.tanh %176 : vector<32x128xf32>
    %181 = arith.mulf %180, %165 : vector<32x128xf32>
    %182 = math.tanh %179 : vector<32x128xf32>
    %183 = arith.mulf %182, %148 : vector<32x128xf32>
    %184 = arith.addf %181, %183 : vector<32x128xf32>
    %185 = arith.addf %184, %171 : vector<32x128xf32>
    %c1 = arith.constant 1 : index
    %c0_33 = arith.constant 0 : index
    %c0_34 = arith.constant 0 : index
    %186 = vector.load %arg6[%c1, %c0_33, %c0_34] : memref<4x128x128xf32, #tpu.memory_space<vmem>>, vector<1x128x128xf32>
    %187 = vector.shape_cast %186 : vector<1x128x128xf32> to vector<128x128xf32>
    %cst_35 = arith.constant dense<0.000000e+00> : vector<32x128xf32>
    %188 = tpu.matmul %185, %187, %cst_35 {dimension_numbers = #tpu.dot_dimension_numbers<[1], [0], [0], [1], [0, 0, 1, 1], [], []>} : vector<32x128xf32>, vector<128x128xf32>, vector<32x128xf32> -> vector<32x128xf32>
    %189 = arith.addf %131, %188 : vector<32x128xf32>
    %cst_36 = arith.constant dense<0.000000e+00> : vector<32x256xf32>
    %190 = tpu.matmul %176, %15, %cst_36 {dimension_numbers = #tpu.dot_dimension_numbers<[1], [0], [0], [1], [0, 0, 1, 1], [], []>} : vector<32x128xf32>, vector<128x256xf32>, vector<32x256xf32> -> vector<32x256xf32>
    %191 = vector.extract_strided_slice %190 {offsets = [0, 0], sizes = [32, 128], strides = [1, 1]} : vector<32x256xf32> to vector<32x128xf32>
    %192 = vector.broadcast %1 : vector<1x128xf32> to vector<32x128xf32>
    %193 = arith.addf %191, %192 : vector<32x128xf32>
    %194 = arith.negf %193 : vector<32x128xf32>
    %195 = math.exp %194 : vector<32x128xf32>
    %cst_37 = arith.constant 1.000000e+00 : f32
    %196 = vector.broadcast %cst_37 : f32 to vector<32x128xf32>
    %197 = arith.addf %196, %195 : vector<32x128xf32>
    %198 = arith.divf %196, %197 : vector<32x128xf32>
    %199 = vector.extract_strided_slice %190 {offsets = [0, 128], sizes = [32, 128], strides = [1, 1]} : vector<32x256xf32> to vector<32x128xf32>
    %200 = vector.broadcast %2 : vector<1x128xf32> to vector<32x128xf32>
    %201 = arith.addf %199, %200 : vector<32x128xf32>
    %202 = arith.negf %201 : vector<32x128xf32>
    %203 = math.exp %202 : vector<32x128xf32>
    %cst_38 = arith.constant 1.000000e+00 : f32
    %204 = vector.broadcast %cst_38 : f32 to vector<32x128xf32>
    %205 = arith.addf %204, %203 : vector<32x128xf32>
    %206 = arith.divf %204, %205 : vector<32x128xf32>
    %cst_39 = arith.constant dense<0.000000e+00> : vector<32x512xf32>
    %207 = tpu.matmul %185, %16, %cst_39 {dimension_numbers = #tpu.dot_dimension_numbers<[1], [0], [0], [1], [0, 0, 1, 1], [], []>} : vector<32x128xf32>, vector<128x512xf32>, vector<32x512xf32> -> vector<32x512xf32>
    %208 = vector.extract_strided_slice %207 {offsets = [0, 0], sizes = [32, 128], strides = [1, 1]} : vector<32x512xf32> to vector<32x128xf32>
    %209 = vector.broadcast %5 : vector<1x128xf32> to vector<32x128xf32>
    %210 = arith.addf %208, %209 : vector<32x128xf32>
    %211 = arith.negf %210 : vector<32x128xf32>
    %212 = math.exp %211 : vector<32x128xf32>
    %cst_40 = arith.constant 1.000000e+00 : f32
    %213 = vector.broadcast %cst_40 : f32 to vector<32x128xf32>
    %214 = arith.addf %213, %212 : vector<32x128xf32>
    %215 = arith.divf %213, %214 : vector<32x128xf32>
    %216 = vector.extract_strided_slice %207 {offsets = [0, 128], sizes = [32, 128], strides = [1, 1]} : vector<32x512xf32> to vector<32x128xf32>
    %217 = vector.broadcast %6 : vector<1x128xf32> to vector<32x128xf32>
    %218 = arith.addf %216, %217 : vector<32x128xf32>
    %219 = arith.negf %218 : vector<32x128xf32>
    %220 = math.exp %219 : vector<32x128xf32>
    %cst_41 = arith.constant 1.000000e+00 : f32
    %221 = vector.broadcast %cst_41 : f32 to vector<32x128xf32>
    %222 = arith.addf %221, %220 : vector<32x128xf32>
    %223 = arith.divf %221, %222 : vector<32x128xf32>
    %224 = vector.extract_strided_slice %207 {offsets = [0, 256], sizes = [32, 128], strides = [1, 1]} : vector<32x512xf32> to vector<32x128xf32>
    %225 = vector.broadcast %7 : vector<1x128xf32> to vector<32x128xf32>
    %226 = arith.addf %224, %225 : vector<32x128xf32>
    %227 = vector.extract_strided_slice %207 {offsets = [0, 384], sizes = [32, 128], strides = [1, 1]} : vector<32x512xf32> to vector<32x128xf32>
    %228 = vector.broadcast %8 : vector<1x128xf32> to vector<32x128xf32>
    %229 = arith.addf %227, %228 : vector<32x128xf32>
    %cst_42 = arith.constant 1.000000e+00 : f32
    %230 = vector.broadcast %cst_42 : f32 to vector<32x128xf32>
    %231 = arith.subf %230, %215 : vector<32x128xf32>
    %232 = arith.mulf %226, %231 : vector<32x128xf32>
    %233 = arith.mulf %176, %215 : vector<32x128xf32>
    %234 = arith.addf %232, %233 : vector<32x128xf32>
    %235 = arith.mulf %176, %231 : vector<32x128xf32>
    %236 = arith.mulf %179, %198 : vector<32x128xf32>
    %237 = arith.addf %235, %236 : vector<32x128xf32>
    %238 = math.tanh %234 : vector<32x128xf32>
    %239 = arith.mulf %238, %223 : vector<32x128xf32>
    %240 = math.tanh %237 : vector<32x128xf32>
    %241 = arith.mulf %240, %206 : vector<32x128xf32>
    %242 = arith.addf %239, %241 : vector<32x128xf32>
    %243 = arith.addf %242, %229 : vector<32x128xf32>
    %c2 = arith.constant 2 : index
    %c0_43 = arith.constant 0 : index
    %c0_44 = arith.constant 0 : index
    %244 = vector.load %arg6[%c2, %c0_43, %c0_44] : memref<4x128x128xf32, #tpu.memory_space<vmem>>, vector<1x128x128xf32>
    %245 = vector.shape_cast %244 : vector<1x128x128xf32> to vector<128x128xf32>
    %cst_45 = arith.constant dense<0.000000e+00> : vector<32x128xf32>
    %246 = tpu.matmul %243, %245, %cst_45 {dimension_numbers = #tpu.dot_dimension_numbers<[1], [0], [0], [1], [0, 0, 1, 1], [], []>} : vector<32x128xf32>, vector<128x128xf32>, vector<32x128xf32> -> vector<32x128xf32>
    %247 = arith.addf %189, %246 : vector<32x128xf32>
    %cst_46 = arith.constant dense<0.000000e+00> : vector<32x256xf32>
    %248 = tpu.matmul %234, %15, %cst_46 {dimension_numbers = #tpu.dot_dimension_numbers<[1], [0], [0], [1], [0, 0, 1, 1], [], []>} : vector<32x128xf32>, vector<128x256xf32>, vector<32x256xf32> -> vector<32x256xf32>
    %249 = vector.extract_strided_slice %248 {offsets = [0, 0], sizes = [32, 128], strides = [1, 1]} : vector<32x256xf32> to vector<32x128xf32>
    %250 = vector.broadcast %1 : vector<1x128xf32> to vector<32x128xf32>
    %251 = arith.addf %249, %250 : vector<32x128xf32>
    %252 = arith.negf %251 : vector<32x128xf32>
    %253 = math.exp %252 : vector<32x128xf32>
    %cst_47 = arith.constant 1.000000e+00 : f32
    %254 = vector.broadcast %cst_47 : f32 to vector<32x128xf32>
    %255 = arith.addf %254, %253 : vector<32x128xf32>
    %256 = arith.divf %254, %255 : vector<32x128xf32>
    %257 = vector.extract_strided_slice %248 {offsets = [0, 128], sizes = [32, 128], strides = [1, 1]} : vector<32x256xf32> to vector<32x128xf32>
    %258 = vector.broadcast %2 : vector<1x128xf32> to vector<32x128xf32>
    %259 = arith.addf %257, %258 : vector<32x128xf32>
    %260 = arith.negf %259 : vector<32x128xf32>
    %261 = math.exp %260 : vector<32x128xf32>
    %cst_48 = arith.constant 1.000000e+00 : f32
    %262 = vector.broadcast %cst_48 : f32 to vector<32x128xf32>
    %263 = arith.addf %262, %261 : vector<32x128xf32>
    %264 = arith.divf %262, %263 : vector<32x128xf32>
    %cst_49 = arith.constant dense<0.000000e+00> : vector<32x512xf32>
    %265 = tpu.matmul %243, %16, %cst_49 {dimension_numbers = #tpu.dot_dimension_numbers<[1], [0], [0], [1], [0, 0, 1, 1], [], []>} : vector<32x128xf32>, vector<128x512xf32>, vector<32x512xf32> -> vector<32x512xf32>
    %266 = vector.extract_strided_slice %265 {offsets = [0, 0], sizes = [32, 128], strides = [1, 1]} : vector<32x512xf32> to vector<32x128xf32>
    %267 = vector.broadcast %5 : vector<1x128xf32> to vector<32x128xf32>
    %268 = arith.addf %266, %267 : vector<32x128xf32>
    %269 = arith.negf %268 : vector<32x128xf32>
    %270 = math.exp %269 : vector<32x128xf32>
    %cst_50 = arith.constant 1.000000e+00 : f32
    %271 = vector.broadcast %cst_50 : f32 to vector<32x128xf32>
    %272 = arith.addf %271, %270 : vector<32x128xf32>
    %273 = arith.divf %271, %272 : vector<32x128xf32>
    %274 = vector.extract_strided_slice %265 {offsets = [0, 128], sizes = [32, 128], strides = [1, 1]} : vector<32x512xf32> to vector<32x128xf32>
    %275 = vector.broadcast %6 : vector<1x128xf32> to vector<32x128xf32>
    %276 = arith.addf %274, %275 : vector<32x128xf32>
    %277 = arith.negf %276 : vector<32x128xf32>
    %278 = math.exp %277 : vector<32x128xf32>
    %cst_51 = arith.constant 1.000000e+00 : f32
    %279 = vector.broadcast %cst_51 : f32 to vector<32x128xf32>
    %280 = arith.addf %279, %278 : vector<32x128xf32>
    %281 = arith.divf %279, %280 : vector<32x128xf32>
    %282 = vector.extract_strided_slice %265 {offsets = [0, 256], sizes = [32, 128], strides = [1, 1]} : vector<32x512xf32> to vector<32x128xf32>
    %283 = vector.broadcast %7 : vector<1x128xf32> to vector<32x128xf32>
    %284 = arith.addf %282, %283 : vector<32x128xf32>
    %285 = vector.extract_strided_slice %265 {offsets = [0, 384], sizes = [32, 128], strides = [1, 1]} : vector<32x512xf32> to vector<32x128xf32>
    %286 = vector.broadcast %8 : vector<1x128xf32> to vector<32x128xf32>
    %287 = arith.addf %285, %286 : vector<32x128xf32>
    %cst_52 = arith.constant 1.000000e+00 : f32
    %288 = vector.broadcast %cst_52 : f32 to vector<32x128xf32>
    %289 = arith.subf %288, %273 : vector<32x128xf32>
    %290 = arith.mulf %284, %289 : vector<32x128xf32>
    %291 = arith.mulf %234, %273 : vector<32x128xf32>
    %292 = arith.addf %290, %291 : vector<32x128xf32>
    %293 = arith.mulf %234, %289 : vector<32x128xf32>
    %294 = arith.mulf %237, %256 : vector<32x128xf32>
    %295 = arith.addf %293, %294 : vector<32x128xf32>
    %296 = math.tanh %292 : vector<32x128xf32>
    %297 = arith.mulf %296, %281 : vector<32x128xf32>
    %298 = math.tanh %295 : vector<32x128xf32>
    %299 = arith.mulf %298, %264 : vector<32x128xf32>
    %300 = arith.addf %297, %299 : vector<32x128xf32>
    %301 = arith.addf %300, %287 : vector<32x128xf32>
    %c3 = arith.constant 3 : index
    %c0_53 = arith.constant 0 : index
    %c0_54 = arith.constant 0 : index
    %302 = vector.load %arg6[%c3, %c0_53, %c0_54] : memref<4x128x128xf32, #tpu.memory_space<vmem>>, vector<1x128x128xf32>
    %303 = vector.shape_cast %302 : vector<1x128x128xf32> to vector<128x128xf32>
    %cst_55 = arith.constant dense<0.000000e+00> : vector<32x128xf32>
    %304 = tpu.matmul %301, %303, %cst_55 {dimension_numbers = #tpu.dot_dimension_numbers<[1], [0], [0], [1], [0, 0, 1, 1], [], []>} : vector<32x128xf32>, vector<128x128xf32>, vector<32x128xf32> -> vector<32x128xf32>
    %305 = arith.addf %247, %304 : vector<32x128xf32>
    %306 = vector.broadcast %9 : vector<1x128xf32> to vector<32x128xf32>
    %307 = arith.addf %305, %306 : vector<32x128xf32>
    %c0_56 = arith.constant 0 : index
    %c0_57 = arith.constant 0 : index
    %308 = vector.load %arg7[%c0_56, %c0_57] : memref<32x128xf32, #tpu.memory_space<vmem>>, vector<32x128xf32>
    tpu.vector_store %arg7[%c0_56, %c0_57], %307 {strides = array<i32>} : memref<32x128xf32, #tpu.memory_space<vmem>>, vector<32x128xf32>,
    return
  }
  func.func @transform_0(%arg0: i32) -> (i32, i32) {
    %c0_i32 = arith.constant 0 : i32
    %c0_i32_0 = arith.constant 0 : i32
    return %arg0, %c0_i32 : i32, i32
  }
  func.func @transform_1(%arg0: i32) -> (i32, i32) {
    %c0_i32 = arith.constant 0 : i32
    %c0_i32_0 = arith.constant 0 : i32
    return %arg0, %c0_i32 : i32, i32
  }
  func.func @transform_2(%arg0: i32) -> (i32, i32) {
    %c0_i32 = arith.constant 0 : i32
    %c0_i32_0 = arith.constant 0 : i32
    return %arg0, %c0_i32 : i32, i32
  }
  func.func @transform_3(%arg0: i32) -> (i32, i32) {
    %c0_i32 = arith.constant 0 : i32
    %c0_i32_0 = arith.constant 0 : i32
    %c0_i32_1 = arith.constant 0 : i32
    return %c0_i32, %c0_i32_0 : i32, i32
  }
  func.func @transform_4(%arg0: i32) -> (i32, i32) {
    %c0_i32 = arith.constant 0 : i32
    %c0_i32_0 = arith.constant 0 : i32
    %c0_i32_1 = arith.constant 0 : i32
    return %c0_i32, %c0_i32_0 : i32, i32
  }
  func.func @transform_5(%arg0: i32) -> (i32, i32, i32) {
    %c0_i32 = arith.constant 0 : i32
    %c0_i32_0 = arith.constant 0 : i32
    %c0_i32_1 = arith.constant 0 : i32
    %c0_i32_2 = arith.constant 0 : i32
    return %c0_i32, %c0_i32_0, %c0_i32_1 : i32, i32, i32
  }
  func.func @transform_6(%arg0: i32) -> (i32, i32) {
    %c0_i32 = arith.constant 0 : i32
    %c0_i32_0 = arith.constant 0 : i32
    return %arg0, %c0_i32 : i32, i32
  }
}

</mosaic_0001>

<llo_original>
// kernel: tpu_custom_call.1
$region0: #{tpu_custom_call.1}
  #allocation0 [shape = 'u32[]', space=smem, size = 0x4, offset = 0x4, fixed_abs, tag = 'smem constant byte address 0x4 - core index']
  #allocation1 [shape = 'u32[144,128]{1,0:T(1,128)}', space=vmem, size = 0x12000, scoped, tag = 'internal scratch']
  %s0 = inlined_call_operand.hbm [shape: f32[128,128], index: 0, kind: input, shape index: {}]
  %s1 = inlined_call_operand.hbm [shape: f32[128,128], index: 1, kind: input, shape index: {}]
  %s2 = inlined_call_operand.hbm [shape: f32[128,128], index: 2, kind: input, shape index: {}]
  %s3 = inlined_call_operand.hbm [shape: f32[16,128], index: 3, kind: input, shape index: {}]
  %s4 = inlined_call_operand.hbm [shape: f32[128,768], index: 4, kind: input, shape index: {}]
  %s5 = inlined_call_operand.hbm [shape: f32[4,128,128], index: 5, kind: input, shape index: {}]
  %s6 = inlined_call_operand.hbm [shape: f32[128,128], index: 6, kind: output, shape index: {}]
  %s7 = sld [smem:[#allocation0]]
  $region81: #{tpu_custom_call.1} parent=0
    _
  %s9 = ssub.s32 1, %s7
  %s10 = scalar_select 0, %s9, %s7
  $region1: #{tpu_custom_call.1} parent=0
    #allocation2 [shape = 'u8[32768]{0}', space=vmem, size = 0x8000, scoped, tag = 'input window, operand 0']
    #allocation3 [shape = 's32[2]{0}', space=sflag, size = 0x8, scoped, tag = 'scoped memory for tpu_custom_call.1']
    #allocation4 [shape = 's32[2]{0}', space=sflag, size = 0x8, scoped, tag = 'scoped memory for tpu_custom_call.1']
    #allocation5 [shape = 'u8[32768]{0}', space=vmem, size = 0x8000, scoped, tag = 'input window, operand 1']
    #allocation6 [shape = 's32[2]{0}', space=sflag, size = 0x8, scoped, tag = 'scoped memory for tpu_custom_call.1']
    #allocation7 [shape = 'u8[32768]{0}', space=vmem, size = 0x8000, scoped, tag = 'input window, operand 2']
    #allocation8 [shape = 'u8[8192]{0}', space=vmem, size = 0x2000, scoped, tag = 'input window, operand 3, single buffered']
    #allocation9 [shape = 's32[1]{0}', space=sflag, size = 0x4, scoped, tag = 'scoped memory for tpu_custom_call.1']
    #allocation10 [shape = 'u8[393216]{0}', space=vmem, size = 0x60000, scoped, tag = 'input window, operand 4, single buffered']
    #allocation11 [shape = 'u8[262144]{0}', space=vmem, size = 0x40000, scoped, tag = 'input window, operand 5, single buffered']
    #allocation12 [shape = 's32[1]{0}', space=sflag, size = 0x4, scoped, tag = 'scoped memory for tpu_custom_call.1']
    #allocation13 [shape = 'u8[32768]{0}', space=vmem, size = 0x8000, scoped, tag = 'output window, operand 0']
    %11 = vsyncpa [#allocation3], 0
    %s12 = scalar_lea.sflag [#allocation3], 1
    %13 = vsyncpa %s12, 0
    %14 = vsyncpa [#allocation6], 0
    %s15 = scalar_lea.sflag [#allocation6], 1
    %16 = vsyncpa %s15, 0
    %17 = vsyncpa [#allocation9], 0
    %18 = vsyncpa [#allocation12], 0
    %19 = vsyncpa [#allocation4], 0
    %s20 = scalar_lea.sflag [#allocation4], 1
    %21 = vsyncpa %s20, 0
    loop: start=0, step=1, limit=6
    $region2: #{tpu_custom_call.1} parent=1 // loop_pre_header
      _
    $region3: #{tpu_custom_call.1} parent=1 // loop_header
      %s23 = sphi 0, %s27
      %p24 = scmp.ge.s32.totalorder %s23, 6
      %s33 = sphi 0, %s35
      %s36 = sphi 0, %s33
      %s37 = sphi 0, %s36
      %s53 = sphi 0, %s37
      %s59 = sphi 0, %s61
      %s62 = sphi 0, %s59
      %s63 = sphi 0, %s62
      %s79 = sphi 0, %s63
      %s85 = sphi 0, %s87
      %s88 = sphi 0, %s85
      %s89 = sphi 0, %s88
      %s105 = sphi 0, %s89
      %s109 = sphi 0, %s109
      %s111 = sphi 0, %s109
      %s112 = sphi 0, %s111
      %s126 = sphi 0, %s112
      %s130 = sphi 0, %s130
      %s132 = sphi 0, %s130
      %s133 = sphi 0, %s132
      %s147 = sphi 0, %s133
      %s151 = sphi 0, %s151
      %s153 = sphi 0, %s151
      %s154 = sphi 0, %s153
      %s168 = sphi 0, %s154
      %s174 = sphi 0, %s176
      %s177 = sphi 0, %s174
      %s178 = sphi 0, %s177
      %s194 = sphi 0, %s178
    $region4: #{tpu_custom_call.1} parent=1 // loop_header_branch
      %26 = sbr.rel (%p24) target = $region8
    $region5: #{tpu_custom_call.1} parent=1 // loop_body
      %s28 = ssub.s32 %s23, 1
      %s29 = ssub.s32 %s23, 2
      %s30 = sadd.s32 %s23, 1
      %s31 = ssub.s32 %s23, %s30
      %p32 = scmp.eq.s32.totalorder %s31, 0
      %s34 = sadd.s32 %s33, 1
      %s35 = scalar_select %p32, %s33, %s34
      %p38 = pneg %p32
      %p39 = scmp.eq.s32.totalorder %s23, 3
      %p40 = por %p38, %p39
      %p41 = scmp.ne.s32.totalorder %s33, %s36
      %p42 = scmp.eq.s32.totalorder %s23, 0
      %p43 = por %p41, %p42
      %p44 = scmp.ne.s32.totalorder %s33, %s36
      %p45 = scmp.eq.s32.totalorder %s28, 3
      %p46 = por %p44, %p45
      %p47 = scmp.ne.s32.totalorder %s36, %s37
      %p48 = scmp.eq.s32.totalorder %s28, 0
      %p49 = por %p47, %p48
      %p50 = scmp.ne.s32.totalorder %s36, %s37
      %p51 = scmp.eq.s32.totalorder %s29, 3
      %p52 = por %p50, %p51
      %p54 = scmp.ne.s32.totalorder %s37, %s53
      %p55 = scmp.eq.s32.totalorder %s29, 0
      %p56 = por %p54, %p55
      %s57 = ssub.s32 %s23, %s30
      %p58 = scmp.eq.s32.totalorder %s57, 0
      %s60 = sadd.s32 %s59, 1
      %s61 = scalar_select %p58, %s59, %s60
      %p64 = pneg %p58
      %p65 = scmp.eq.s32.totalorder %s23, 3
      %p66 = por %p64, %p65
      %p67 = scmp.ne.s32.totalorder %s59, %s62
      %p68 = scmp.eq.s32.totalorder %s23, 0
      %p69 = por %p67, %p68
      %p70 = scmp.ne.s32.totalorder %s59, %s62
      %p71 = scmp.eq.s32.totalorder %s28, 3
      %p72 = por %p70, %p71
      %p73 = scmp.ne.s32.totalorder %s62, %s63
      %p74 = scmp.eq.s32.totalorder %s28, 0
      %p75 = por %p73, %p74
      %p76 = scmp.ne.s32.totalorder %s62, %s63
      %p77 = scmp.eq.s32.totalorder %s29, 3
      %p78 = por %p76, %p77
      %p80 = scmp.ne.s32.totalorder %s63, %s79
      %p81 = scmp.eq.s32.totalorder %s29, 0
      %p82 = por %p80, %p81
      %s83 = ssub.s32 %s23, %s30
      %p84 = scmp.eq.s32.totalorder %s83, 0
      %s86 = sadd.s32 %s85, 1
      %s87 = scalar_select %p84, %s85, %s86
      %p90 = pneg %p84
      %p91 = scmp.eq.s32.totalorder %s23, 3
      %p92 = por %p90, %p91
      %p93 = scmp.ne.s32.totalorder %s85, %s88
      %p94 = scmp.eq.s32.totalorder %s23, 0
      %p95 = por %p93, %p94
      %p96 = scmp.ne.s32.totalorder %s85, %s88
      %p97 = scmp.eq.s32.totalorder %s28, 3
      %p98 = por %p96, %p97
      %p99 = scmp.ne.s32.totalorder %s88, %s89
      %p100 = scmp.eq.s32.totalorder %s28, 0
      %p101 = por %p99, %p100
      %p102 = scmp.ne.s32.totalorder %s88, %s89
      %p103 = scmp.eq.s32.totalorder %s29, 3
      %p104 = por %p102, %p103
      %p106 = scmp.ne.s32.totalorder %s89, %s105
      %p107 = scmp.eq.s32.totalorder %s29, 0
      %p108 = por %p106, %p107
      %s110 = sadd.s32 %s109, 1
      %p113 = scmp.eq.s32.totalorder %s23, 3
      %p114 = scmp.ne.s32.totalorder %s109, %s111
      %p115 = scmp.eq.s32.totalorder %s23, 0
      %p116 = por %p114, %p115
      %p117 = scmp.ne.s32.totalorder %s109, %s111
      %p118 = scmp.eq.s32.totalorder %s28, 3
      %p119 = por %p117, %p118
      %p120 = scmp.ne.s32.totalorder %s111, %s112
      %p121 = scmp.eq.s32.totalorder %s28, 0
      %p122 = por %p120, %p121
      %p123 = scmp.ne.s32.totalorder %s111, %s112
      %p124 = scmp.eq.s32.totalorder %s29, 3
      %p125 = por %p123, %p124
      %p127 = scmp.ne.s32.totalorder %s112, %s126
      %p128 = scmp.eq.s32.totalorder %s29, 0
      %p129 = por %p127, %p128
      %s131 = sadd.s32 %s130, 1
      %p134 = scmp.eq.s32.totalorder %s23, 3
      %p135 = scmp.ne.s32.totalorder %s130, %s132
      %p136 = scmp.eq.s32.totalorder %s23, 0
      %p137 = por %p135, %p136
      %p138 = scmp.ne.s32.totalorder %s130, %s132
      %p139 = scmp.eq.s32.totalorder %s28, 3
      %p140 = por %p138, %p139
      %p141 = scmp.ne.s32.totalorder %s132, %s133
      %p142 = scmp.eq.s32.totalorder %s28, 0
      %p143 = por %p141, %p142
      %p144 = scmp.ne.s32.totalorder %s132, %s133
      %p145 = scmp.eq.s32.totalorder %s29, 3
      %p146 = por %p144, %p145
      %p148 = scmp.ne.s32.totalorder %s133, %s147
      %p149 = scmp.eq.s32.totalorder %s29, 0
      %p150 = por %p148, %p149
      %s152 = sadd.s32 %s151, 1
      %p155 = scmp.eq.s32.totalorder %s23, 3
      %p156 = scmp.ne.s32.totalorder %s151, %s153
      %p157 = scmp.eq.s32.totalorder %s23, 0
      %p158 = por %p156, %p157
      %p159 = scmp.ne.s32.totalorder %s151, %s153
      %p160 = scmp.eq.s32.totalorder %s28, 3
      %p161 = por %p159, %p160
      %p162 = scmp.ne.s32.totalorder %s153, %s154
      %p163 = scmp.eq.s32.totalorder %s28, 0
      %p164 = por %p162, %p163
      %p165 = scmp.ne.s32.totalorder %s153, %s154
      %p166 = scmp.eq.s32.totalorder %s29, 3
      %p167 = por %p165, %p166
      %p169 = scmp.ne.s32.totalorder %s154, %s168
      %p170 = scmp.eq.s32.totalorder %s29, 0
      %p171 = por %p169, %p170
      %s172 = ssub.s32 %s23, %s30
      %p173 = scmp.eq.s32.totalorder %s172, 0
      %s175 = sadd.s32 %s174, 1
      %s176 = scalar_select %p173, %s174, %s175
      %p179 = pneg %p173
      %p180 = scmp.eq.s32.totalorder %s23, 3
      %p181 = por %p179, %p180
      %p182 = scmp.ne.s32.totalorder %s174, %s177
      %p183 = scmp.eq.s32.totalorder %s23, 0
      %p184 = por %p182, %p183
      %p185 = scmp.ne.s32.totalorder %s174, %s177
      %p186 = scmp.eq.s32.totalorder %s28, 3
      %p187 = por %p185, %p186
      %p188 = scmp.ne.s32.totalorder %s177, %s178
      %p189 = scmp.eq.s32.totalorder %s28, 0
      %p190 = por %p188, %p189
      %p191 = scmp.ne.s32.totalorder %s177, %s178
      %p192 = scmp.eq.s32.totalorder %s29, 3
      %p193 = por %p191, %p192
      %p195 = scmp.ne.s32.totalorder %s178, %s194
      %p196 = scmp.eq.s32.totalorder %s29, 0
      %p197 = por %p195, %p196
      %p198 = scmp.le.s32.totalorder 1, %s23
      %p199 = scmp.lt.s32.totalorder %s23, 5
      %p200 = pnand %p198, %p199
      %p201 = pneg %p200
      // Predicated region
      $region9: #{tpu_custom_call.1} parent=5 // pred_check
        _
      $region10: #{tpu_custom_call.1} parent=5 // pred_check_branch
        %203 = sbr.rel (%p200) target = $region12
      $region11: #{tpu_custom_call.1} parent=5 // pred_region
        %s204 = ssub.s32 %s23, 1
        // Predicated region
        $region13: #{tpu_custom_call.1} parent=11 // pred_check
          %p205 = pneg %p122
        $region14: #{tpu_custom_call.1} parent=11 // pred_check_branch
          %207 = sbr.rel (%p205) target = $region16
        $region15: #{tpu_custom_call.1} parent=11 // pred_region
          %s209 = ssub.s32 256, 256
          %210 = vsyncadd [#allocation9], %s209
          %s211 = sshll.u32 [#allocation8], 4
          %s212 = int_to_ptr.vmem [resolvable:$true] %s211
          %217 = dma.hbm_to_vmem [thread:$0]  %s3, 256, %s212, [#allocation9], 128, 128, 8
        $region16: #{tpu_custom_call.1} parent=11 // pred_fallthru
          _
        // Predicated region
        $region17: #{tpu_custom_call.1} parent=11 // pred_check
          %p218 = pneg %p143
        $region18: #{tpu_custom_call.1} parent=11 // pred_check_branch
          %220 = sbr.rel (%p218) target = $region20
        $region19: #{tpu_custom_call.1} parent=11 // pred_region
          %s222 = ssub.s32 12288, 12288
          %223 = vsyncadd [#allocation9], %s222
          %s224 = sshll.u32 [#allocation10], 4
          %s225 = int_to_ptr.vmem [resolvable:$true] %s224
          %230 = dma.hbm_to_vmem [thread:$0]  %s4, 12288, %s225, [#allocation9], 768, 768, 48
        $region20: #{tpu_custom_call.1} parent=11 // pred_fallthru
          _
        // Predicated region
        $region21: #{tpu_custom_call.1} parent=11 // pred_check
          %p231 = pneg %p164
        $region22: #{tpu_custom_call.1} parent=11 // pred_check_branch
          %233 = sbr.rel (%p231) target = $region24
        $region23: #{tpu_custom_call.1} parent=11 // pred_region
          %s235 = ssub.s32 8192, 8192
          %236 = vsyncadd [#allocation12], %s235
          %s237 = sshll.u32 [#allocation11], 4
          %s238 = int_to_ptr.vmem [resolvable:$true] %s237
          %243 = dma.hbm_to_vmem [thread:$0]  %s5, 8192, %s238, [#allocation12], 128, 128, 8
        $region24: #{tpu_custom_call.1} parent=11 // pred_fallthru
          _
      $region12: #{tpu_custom_call.1} parent=5 // pred_fallthru
        _
      %p244 = scmp.lt.s32.totalorder %s23, 4
      // Predicated region
      $region25: #{tpu_custom_call.1} parent=5 // pred_check
        %p245 = pneg %p244
      $region26: #{tpu_custom_call.1} parent=5 // pred_check_branch
        %247 = sbr.rel (%p245) target = $region28
      $region27: #{tpu_custom_call.1} parent=5 // pred_region
        // Predicated region
        $region29: #{tpu_custom_call.1} parent=27 // pred_check
          %p248 = pneg %p43
        $region30: #{tpu_custom_call.1} parent=27 // pred_check_branch
          %250 = sbr.rel (%p248) target = $region32
        $region31: #{tpu_custom_call.1} parent=27 // pred_region
          %s251 = sand.u32 %s33, 1
          %s252 = scalar_lea.sflag [#allocation3], %s251
          %s253 = sand.u32 %s33, 1
          %s254 = smul.addr %s253, 32
          %s255 = scalar_lea.vmem [#allocation2], %s254
          %s256 = smul.u32 4, %s23
          %s258 = ssub.s32 512, 512
          %259 = vsyncadd %s252, %s258
          %s260 = smul.addr %s256, 128
          %s261 = scalar_lea.hbm %s0, %s260
          %s262 = sshll.u32 %s255, 4
          %s263 = int_to_ptr.vmem [resolvable:$true] %s262
          %268 = dma.hbm_to_vmem [thread:$0]  %s261, 512, %s263, %s252, 128, 128, 8
        $region32: #{tpu_custom_call.1} parent=27 // pred_fallthru
          _
        // Predicated region
        $region33: #{tpu_custom_call.1} parent=27 // pred_check
          %p269 = pneg %p69
        $region34: #{tpu_custom_call.1} parent=27 // pred_check_branch
          %271 = sbr.rel (%p269) target = $region36
        $region35: #{tpu_custom_call.1} parent=27 // pred_region
          %s272 = sand.u32 %s23, 1
          %s273 = scalar_lea.sflag [#allocation6], %s272
          %s274 = sand.u32 %s59, 1
          %s275 = smul.addr %s274, 32
          %s276 = scalar_lea.vmem [#allocation5], %s275
          %s277 = smul.u32 4, %s23
          %s279 = ssub.s32 512, 512
          %280 = vsyncadd %s273, %s279
          %s281 = smul.addr %s277, 128
          %s282 = scalar_lea.hbm %s1, %s281
          %s283 = sshll.u32 %s276, 4
          %s284 = int_to_ptr.vmem [resolvable:$true] %s283
          %289 = dma.hbm_to_vmem [thread:$0]  %s282, 512, %s284, %s273, 128, 128, 8
        $region36: #{tpu_custom_call.1} parent=27 // pred_fallthru
          _
        // Predicated region
        $region37: #{tpu_custom_call.1} parent=27 // pred_check
          %p290 = pneg %p95
        $region38: #{tpu_custom_call.1} parent=27 // pred_check_branch
          %292 = sbr.rel (%p290) target = $region40
        $region39: #{tpu_custom_call.1} parent=27 // pred_region
          %s293 = sand.u32 %s23, 1
          %s294 = scalar_lea.sflag [#allocation6], %s293
          %s295 = sand.u32 %s85, 1
          %s296 = smul.addr %s295, 32
          %s297 = scalar_lea.vmem [#allocation7], %s296
          %s298 = smul.u32 4, %s23
          %s300 = ssub.s32 512, 512
          %301 = vsyncadd %s294, %s300
          %s302 = smul.addr %s298, 128
          %s303 = scalar_lea.hbm %s2, %s302
          %s304 = sshll.u32 %s297, 4
          %s305 = int_to_ptr.vmem [resolvable:$true] %s304
          %310 = dma.hbm_to_vmem [thread:$0]  %s303, 512, %s305, %s294, 128, 128, 8
        $region40: #{tpu_custom_call.1} parent=27 // pred_fallthru
          _
      $region28: #{tpu_custom_call.1} parent=5 // pred_fallthru
        _
      %p311 = scmp.le.s32.totalorder 1, %s23
      %p312 = scmp.lt.s32.totalorder %s23, 5
      %p313 = pnand %p311, %p312
      %p314 = pneg %p313
      // Predicated region
      $region41: #{tpu_custom_call.1} parent=5 // pred_check
        _
      $region42: #{tpu_custom_call.1} parent=5 // pred_check_branch
        %316 = sbr.rel (%p313) target = $region44
      $region43: #{tpu_custom_call.1} parent=5 // pred_region
        %s317 = ssub.s32 %s23, 1
        %s318 = sand.u32 %s36, 1
        %s319 = scalar_lea.sflag [#allocation3], %s318
        %s320 = sand.u32 %s36, 1
        %s321 = smul.addr %s320, 32
        %s322 = scalar_lea.vmem [#allocation2], %s321
        // Predicated region
        $region45: #{tpu_custom_call.1} parent=43 // pred_check
          %p323 = pneg %p49
        $region46: #{tpu_custom_call.1} parent=43 // pred_check_branch
          %325 = sbr.rel (%p323) target = $region48
        $region47: #{tpu_custom_call.1} parent=43 // pred_region
          %326 = dma.done %s319, 512
        $region48: #{tpu_custom_call.1} parent=43 // pred_fallthru
          _
        %s327 = sand.u32 %s28, 1
        %s328 = scalar_lea.sflag [#allocation6], %s327
        %s329 = sand.u32 %s62, 1
        %s330 = smul.addr %s329, 32
        %s331 = scalar_lea.vmem [#allocation5], %s330
        // Predicated region
        $region49: #{tpu_custom_call.1} parent=43 // pred_check
          %p332 = pneg %p75
        $region50: #{tpu_custom_call.1} parent=43 // pred_check_branch
          %334 = sbr.rel (%p332) target = $region52
        $region51: #{tpu_custom_call.1} parent=43 // pred_region
          %335 = dma.done %s328, 512
        $region52: #{tpu_custom_call.1} parent=43 // pred_fallthru
          _
        %s336 = sand.u32 %s28, 1
        %s337 = scalar_lea.sflag [#allocation6], %s336
        %s338 = sand.u32 %s88, 1
        %s339 = smul.addr %s338, 32
        %s340 = scalar_lea.vmem [#allocation7], %s339
        // Predicated region
        $region53: #{tpu_custom_call.1} parent=43 // pred_check
          %p341 = pneg %p101
        $region54: #{tpu_custom_call.1} parent=43 // pred_check_branch
          %343 = sbr.rel (%p341) target = $region56
        $region55: #{tpu_custom_call.1} parent=43 // pred_region
          %344 = dma.done %s337, 512
        $region56: #{tpu_custom_call.1} parent=43 // pred_fallthru
          _
        // Predicated region
        $region57: #{tpu_custom_call.1} parent=43 // pred_check
          %p345 = pneg %p122
        $region58: #{tpu_custom_call.1} parent=43 // pred_check_branch
          %347 = sbr.rel (%p345) target = $region60
        $region59: #{tpu_custom_call.1} parent=43 // pred_region
          %348 = dma.done [#allocation9], 256
        $region60: #{tpu_custom_call.1} parent=43 // pred_fallthru
          _
        // Predicated region
        $region61: #{tpu_custom_call.1} parent=43 // pred_check
          %p349 = pneg %p143
        $region62: #{tpu_custom_call.1} parent=43 // pred_check_branch
          %351 = sbr.rel (%p349) target = $region64
        $region63: #{tpu_custom_call.1} parent=43 // pred_region
          %352 = dma.done [#allocation9], 12288
        $region64: #{tpu_custom_call.1} parent=43 // pred_fallthru
          _
        // Predicated region
        $region65: #{tpu_custom_call.1} parent=43 // pred_check
          %p353 = pneg %p164
        $region66: #{tpu_custom_call.1} parent=43 // pred_check_branch
          %355 = sbr.rel (%p353) target = $region68
        $region67: #{tpu_custom_call.1} parent=43 // pred_region
          %356 = dma.done [#allocation12], 8192
        $region68: #{tpu_custom_call.1} parent=43 // pred_fallthru
          _
        %s357 = sand.u32 %s36, 1
        %s358 = scalar_lea.sflag [#allocation3], %s357
        %s359 = sand.u32 %s36, 1
        %s360 = smul.addr %s359, 32
        %s361 = scalar_lea.vmem [#allocation2], %s360
        %p362 = pneg %p49
        %p363 = pneg %p46
        %s364 = sand.u32 %s28, 1
        %s365 = scalar_lea.sflag [#allocation6], %s364
        %s366 = sand.u32 %s62, 1
        %s367 = smul.addr %s366, 32
        %s368 = scalar_lea.vmem [#allocation5], %s367
        %p369 = pneg %p75
        %p370 = pneg %p72
        %s371 = sand.u32 %s28, 1
        %s372 = scalar_lea.sflag [#allocation6], %s371
        %s373 = sand.u32 %s88, 1
        %s374 = smul.addr %s373, 32
        %s375 = scalar_lea.vmem [#allocation7], %s374
        %p376 = pneg %p101
        %p377 = pneg %p98
        %p378 = pneg %p122
        %p379 = pneg %p119
        %p380 = pneg %p143
        %p381 = pneg %p140
        %p382 = pneg %p164
        %p383 = pneg %p161
        %p384 = pneg %p190
        %p385 = pneg %p187
        %s386 = sand.u32 %s177, 1
        %s387 = scalar_lea.sflag [#allocation4], %s386
        %s388 = sand.u32 %s177, 1
        %s389 = smul.addr %s388, 32
        %s390 = scalar_lea.vmem [#allocation13], %s389
        %s391 = smul.u32 4, %s28
        %s392 = smul.u32 4, %s28
        %s393 = smul.u32 4, %s28
        %s394 = smul.u32 4, %s28
        %v395 = vld [vmem:[#allocation8] sm:$0xff]
        %v396 = vld [vmem:[#allocation8 + $0x8] sm:$0xff]
        %v397 = vld [vmem:[#allocation10] sm:$0xff]
        %v398 = vld [vmem:[#allocation10 + $0x8] sm:$0xff]
        %v399 = vld [vmem:[#allocation10 + $0x10] sm:$0xff]
        %v400 = vld [vmem:[#allocation10 + $0x18] sm:$0xff]
        %v401 = vld [vmem:[#allocation10 + $0x20] sm:$0xff]
        %v402 = vld [vmem:[#allocation10 + $0x28] sm:$0xff]
        %v403 = vld [vmem:[#allocation10 + $0x30] sm:$0xff]
        %v404 = vld [vmem:[#allocation10 + $0x38] sm:$0xff]
        %v405 = vld [vmem:[#allocation10 + $0x40] sm:$0xff]
        %v406 = vld [vmem:[#allocation10 + $0x48] sm:$0xff]
        %v407 = vld [vmem:[#allocation10 + $0x50] sm:$0xff]
        %v408 = vld [vmem:[#allocation10 + $0x58] sm:$0xff]
        %v409 = vld [vmem:[#allocation10 + $0x60] sm:$0xff]
        %v410 = vld [vmem:[#allocation10 + $0x68] sm:$0xff]
        %v411 = vld [vmem:[#allocation10 + $0x70] sm:$0xff]
        %v412 = vld [vmem:[#allocation10 + $0x78] sm:$0xff]
        %v413 = vld [vmem:[#allocation10 + $0x80] sm:$0xff]
        %v414 = vld [vmem:[#allocation10 + $0x88] sm:$0xff]
        %v415 = vld [vmem:[#allocation10 + $0x90] sm:$0xff]
        %v416 = vld [vmem:[#allocation10 + $0x98] sm:$0xff]
        %v417 = vld [vmem:[#allocation10 + $0xa0] sm:$0xff]
        %v418 = vld [vmem:[#allocation10 + $0xa8] sm:$0xff]
        %v419 = vld [vmem:[#allocation10 + $0xb0] sm:$0xff]
        %v420 = vld [vmem:[#allocation10 + $0xb8] sm:$0xff]
        %v421 = vld [vmem:[#allocation10 + $0xc0] sm:$0xff]
        %v422 = vld [vmem:[#allocation10 + $0xc8] sm:$0xff]
        %v423 = vld [vmem:[#allocation10 + $0xd0] sm:$0xff]
        %v424 = vld [vmem:[#allocation10 + $0xd8] sm:$0xff]
        %v425 = vld [vmem:[#allocation10 + $0xe0] sm:$0xff]
        %v426 = vld [vmem:[#allocation10 + $0xe8] sm:$0xff]
        %v427 = vld [vmem:[#allocation10 + $0xf0] sm:$0xff]
        %v428 = vld [vmem:[#allocation10 + $0xf8] sm:$0xff]
        %v429 = vld [vmem:[#allocation10 + $0x100] sm:$0xff]
        %v430 = vld [vmem:[#allocation10 + $0x108] sm:$0xff]
        %v431 = vld [vmem:[#allocation10 + $0x110] sm:$0xff]
        %v432 = vld [vmem:[#allocation10 + $0x118] sm:$0xff]
        %v433 = vld [vmem:[#allocation10 + $0x120] sm:$0xff]
        %v434 = vld [vmem:[#allocation10 + $0x128] sm:$0xff]
        %v435 = vld [vmem:[#allocation10 + $0x130] sm:$0xff]
        %v436 = vld [vmem:[#allocation10 + $0x138] sm:$0xff]
        %v437 = vld [vmem:[#allocation10 + $0x140] sm:$0xff]
        %v438 = vld [vmem:[#allocation10 + $0x148] sm:$0xff]
        %v439 = vld [vmem:[#allocation10 + $0x150] sm:$0xff]
        %v440 = vld [vmem:[#allocation10 + $0x158] sm:$0xff]
        %v441 = vld [vmem:[#allocation10 + $0x160] sm:$0xff]
        %v442 = vld [vmem:[#allocation10 + $0x168] sm:$0xff]
        %v443 = vld [vmem:[#allocation10 + $0x170] sm:$0xff]
        %v444 = vld [vmem:[#allocation10 + $0x178] sm:$0xff]
        %v445 = vld [vmem:[#allocation10 + $0x180] sm:$0xff]
        %v446 = vld [vmem:[#allocation10 + $0x188] sm:$0xff]
        %v447 = vld [vmem:[#allocation10 + $0x190] sm:$0xff]
        %v448 = vld [vmem:[#allocation10 + $0x198] sm:$0xff]
        %v449 = vld [vmem:[#allocation10 + $0x1a0] sm:$0xff]
        %v450 = vld [vmem:[#allocation10 + $0x1a8] sm:$0xff]
        %v451 = vld [vmem:[#allocation10 + $0x1b0] sm:$0xff]
        %v452 = vld [vmem:[#allocation10 + $0x1b8] sm:$0xff]
        %v453 = vld [vmem:[#allocation10 + $0x1c0] sm:$0xff]
        %v454 = vld [vmem:[#allocation10 + $0x1c8] sm:$0xff]
        %v455 = vld [vmem:[#allocation10 + $0x1d0] sm:$0xff]
        %v456 = vld [vmem:[#allocation10 + $0x1d8] sm:$0xff]
        %v457 = vld [vmem:[#allocation10 + $0x1e0] sm:$0xff]
        %v458 = vld [vmem:[#allocation10 + $0x1e8] sm:$0xff]
        %v459 = vld [vmem:[#allocation10 + $0x1f0] sm:$0xff]
        %v460 = vld [vmem:[#allocation10 + $0x1f8] sm:$0xff]
        %v461 = vld [vmem:[#allocation10 + $0x200] sm:$0xff]
        %v462 = vld [vmem:[#allocation10 + $0x208] sm:$0xff]
        %v463 = vld [vmem:[#allocation10 + $0x210] sm:$0xff]
        %v464 = vld [vmem:[#allocation10 + $0x218] sm:$0xff]
        %v465 = vld [vmem:[#allocation10 + $0x220] sm:$0xff]
        %v466 = vld [vmem:[#allocation10 + $0x228] sm:$0xff]
        %v467 = vld [vmem:[#allocation10 + $0x230] sm:$0xff]
        %v468 = vld [vmem:[#allocation10 + $0x238] sm:$0xff]
        %v469 = vld [vmem:[#allocation10 + $0x240] sm:$0xff]
        %v470 = vld [vmem:[#allocation10 + $0x248] sm:$0xff]
        %v471 = vld [vmem:[#allocation10 + $0x250] sm:$0xff]
        %v472 = vld [vmem:[#allocation10 + $0x258] sm:$0xff]
        %v473 = vld [vmem:[#allocation10 + $0x260] sm:$0xff]
        %v474 = vld [vmem:[#allocation10 + $0x268] sm:$0xff]
        %v475 = vld [vmem:[#allocation10 + $0x270] sm:$0xff]
        %v476 = vld [vmem:[#allocation10 + $0x278] sm:$0xff]
        %v477 = vld [vmem:[#allocation10 + $0x280] sm:$0xff]
        %v478 = vld [vmem:[#allocation10 + $0x288] sm:$0xff]
        %v479 = vld [vmem:[#allocation10 + $0x290] sm:$0xff]
        %v480 = vld [vmem:[#allocation10 + $0x298] sm:$0xff]
        %v481 = vld [vmem:[#allocation10 + $0x2a0] sm:$0xff]
        %v482 = vld [vmem:[#allocation10 + $0x2a8] sm:$0xff]
        %v483 = vld [vmem:[#allocation10 + $0x2b0] sm:$0xff]
        %v484 = vld [vmem:[#allocation10 + $0x2b8] sm:$0xff]
        %v485 = vld [vmem:[#allocation10 + $0x2c0] sm:$0xff]
        %v486 = vld [vmem:[#allocation10 + $0x2c8] sm:$0xff]
        %v487 = vld [vmem:[#allocation10 + $0x2d0] sm:$0xff]
        %v488 = vld [vmem:[#allocation10 + $0x2d8] sm:$0xff]
        %v489 = vld [vmem:[#allocation10 + $0x2e0] sm:$0xff]
        %v490 = vld [vmem:[#allocation10 + $0x2e8] sm:$0xff]
        %v491 = vld [vmem:[#allocation10 + $0x2f0] sm:$0xff]
        %v492 = vld [vmem:[#allocation10 + $0x2f8] sm:$0xff]
        %v493 = vld [vmem:[%s331] sm:$0xff]
        %v494 = vld [vmem:[%s331 + $0x8] sm:$0xff]
        %v495 = vld [vmem:[%s331 + $0x10] sm:$0xff]
        %v496 = vld [vmem:[%s331 + $0x18] sm:$0xff]
        %v497 = vld [vmem:[%s340] sm:$0xff]
        %v498 = vld [vmem:[%s340 + $0x8] sm:$0xff]
        %v499 = vld [vmem:[%s340 + $0x10] sm:$0xff]
        %v500 = vld [vmem:[%s340 + $0x18] sm:$0xff]
        %501 = vmatprep.subr.mxu0 %v488
        %502 = vmatpush1.msra.mxu0 %v487
        %503 = vmatprep.subr.mxu0 %v482
        %504 = vmatpush1.msra.mxu0 %v481
        %505 = vmatprep.subr.mxu0 %v476
        %506 = vmatpush1.msra.mxu0 %v475
        %507 = vmatprep.subr.mxu0 %v470
        %508 = vmatpush1.msra.mxu0 %v469
        %509 = vmatprep.subr.mxu0 %v464
        %510 = vmatpush1.msra.mxu0 %v463
        %511 = vmatprep.subr.mxu0 %v458
        %512 = vmatpush1.msra.mxu0 %v457
        %513 = vmatprep.subr.mxu0 %v452
        %514 = vmatpush1.msra.mxu0 %v451
        %515 = vmatprep.subr.mxu0 %v446
        %516 = vmatpush1.msra.mxu0 %v445
        %517 = vmatprep.subr.mxu0 %v440
        %518 = vmatpush1.msra.mxu0 %v439
        %519 = vmatprep.subr.mxu0 %v434
        %520 = vmatpush1.msra.mxu0 %v433
        %521 = vmatprep.subr.mxu0 %v428
        %522 = vmatpush1.msra.mxu0 %v427
        %523 = vmatprep.subr.mxu0 %v422
        %524 = vmatpush1.msra.mxu0 %v421
        %525 = vmatprep.subr.mxu0 %v416
        %526 = vmatpush1.msra.mxu0 %v415
        %527 = vmatprep.subr.mxu0 %v410
        %528 = vmatpush1.msra.mxu0 %v409
        %529 = vmatprep.subr.mxu0 %v404
        %530 = vmatpush1.msra.mxu0 %v403
        %531 = vmatprep.subr.mxu0 %v398
        %532 = vmatpush1.msra.mxu0 %v397
        %533 = vmatprep.subr.mxu0 0.0
        %534 = vmatpush2.msra.mxu0 0.0
        %535 = vmatprep.subr.mxu0 0.0
        %536 = vmatpush2.msra.mxu0 0.0
        %537 = vmatprep.subr.mxu0 0.0
        %538 = vmatpush2.msra.mxu0 0.0
        %539 = vmatprep.subr.mxu0 0.0
        %540 = vmatpush2.msra.mxu0 0.0
        %541 = vmatprep.subr.mxu0 0.0
        %542 = vmatpush2.msra.mxu0 0.0
        %543 = vmatprep.subr.mxu0 0.0
        %544 = vmatpush2.msra.mxu0 0.0
        %545 = vmatprep.subr.mxu0 0.0
        %546 = vmatpush2.msra.mxu0 0.0
        %547 = vmatprep.subr.mxu0 0.0
        %548 = vmatpush2.msra.mxu0 0.0
        %549 = vmatprep.subr.mxu0 0.0
        %550 = vmatpush2.msra.mxu0 0.0
        %551 = vmatprep.subr.mxu0 0.0
        %552 = vmatpush2.msra.mxu0 0.0
        %553 = vmatprep.subr.mxu0 0.0
        %554 = vmatpush2.msra.mxu0 0.0
        %555 = vmatprep.subr.mxu0 0.0
        %556 = vmatpush2.msra.mxu0 0.0
        %557 = vmatprep.subr.mxu0 0.0
        %558 = vmatpush2.msra.mxu0 0.0
        %559 = vmatprep.subr.mxu0 0.0
        %560 = vmatpush2.msra.mxu0 0.0
        %561 = vmatprep.subr.mxu0 0.0
        %562 = vmatpush2.msra.mxu0 0.0
        %563 = vmatprep.subr.mxu0 0.0
        %564 = vmatpush2.msra.mxu0 0.0
        %565 = vmatprep.mubr.f32.mxu0 0.0
        %566 = vmatmul.mubr.f32.gmra.mxu0 %v493
        %v567 = vpop.f32.mrf.mxu0
        %v568 = vadd.f32 0.0, %v567
        %v569 = vpop.f32.mrf.mxu0
        %v570 = vadd.f32 0.0, %v569
        %571 = vmatprep.mubr.f32.mxu0 0.0
        %572 = vmatmul.mubr.f32.gmra.mxu0 %v494
        %v573 = vpop.f32.mrf.mxu0
        %v574 = vadd.f32 0.0, %v573
        %v575 = vpop.f32.mrf.mxu0
        %v576 = vadd.f32 0.0, %v575
        %577 = vmatprep.mubr.f32.mxu0 0.0
        %578 = vmatmul.mubr.f32.gmra.mxu0 %v495
        %v579 = vpop.f32.mrf.mxu0
        %v580 = vadd.f32 0.0, %v579
        %v581 = vpop.f32.mrf.mxu0
        %v582 = vadd.f32 0.0, %v581
        %583 = vmatprep.mubr.f32.mxu0 0.0
        %584 = vmatmul.mubr.f32.gmra.mxu0 %v496
        %v585 = vpop.f32.mrf.mxu0
        %v586 = vadd.f32 0.0, %v585
        %v587 = vpop.f32.mrf.mxu0
        %v588 = vadd.f32 0.0, %v587
        %589 = vdwg.mxu0
        %v590 = vlaneseq
        %v591 = vshrl.u32 %v590, 7
        %v592 = vsub.s32 0, %v591
        %v593 = vrot.slane %v395, %v592
        %v594 = vadd.f32 %v568, %v593
        %v595 = vadd.f32 %v574, %v593
        %v596 = vadd.f32 %v580, %v593
        %v597 = vadd.f32 %v586, %v593
        %v598 = vxor.u32 %v594, 2147483648
        %v599 = vxor.u32 %v595, 2147483648
        %v600 = vxor.u32 %v596, 2147483648
        %v601 = vxor.u32 %v597, 2147483648
        %v602 = vmul.f32 %v598, 1.442695
        %v603 = vpow.pop %v602
        %v604 = vmul.f32 %v599, 1.442695
        %v605 = vpow.pop %v604
        %v606 = vmul.f32 %v600, 1.442695
        %v607 = vpow.pop %v606
        %v608 = vmul.f32 %v601, 1.442695
        %v609 = vpow.pop %v608
        %v610 = vadd.f32 %v603, 1.0
        %v611 = vadd.f32 %v605, 1.0
        %v612 = vadd.f32 %v607, 1.0
        %v613 = vadd.f32 %v609, 1.0
        %v614 = vrcp.pop %v610
        %v615 = vmul.f32 1.0, %v614
        %v616 = vrcp.pop %v611
        %v617 = vmul.f32 1.0, %v616
        %v618 = vrcp.pop %v612
        %v619 = vmul.f32 1.0, %v618
        %v620 = vrcp.pop %v613
        %v621 = vmul.f32 1.0, %v620
        %v622 = vlaneseq
        %v623 = vshrl.u32 %v622, 7
        %v624 = vsub.s32 1, %v623
        %v625 = vrot.slane %v395, %v624
        %v626 = vadd.f32 %v570, %v625
        %v627 = vadd.f32 %v576, %v625
        %v628 = vadd.f32 %v582, %v625
        %v629 = vadd.f32 %v588, %v625
        %v630 = vxor.u32 %v626, 2147483648
        %v631 = vxor.u32 %v627, 2147483648
        %v632 = vxor.u32 %v628, 2147483648
        %v633 = vxor.u32 %v629, 2147483648
        %v634 = vmul.f32 %v630, 1.442695
        %v635 = vpow.pop %v634
        %v636 = vmul.f32 %v631, 1.442695
        %v637 = vpow.pop %v636
        %v638 = vmul.f32 %v632, 1.442695
        %v639 = vpow.pop %v638
        %v640 = vmul.f32 %v633, 1.442695
        %v641 = vpow.pop %v640
        %v642 = vadd.f32 %v635, 1.0
        %v643 = vadd.f32 %v637, 1.0
        %v644 = vadd.f32 %v639, 1.0
        %v645 = vadd.f32 %v641, 1.0
        %v646 = vrcp.pop %v642
        %v647 = vmul.f32 1.0, %v646
        %v648 = vrcp.pop %v643
        %v649 = vmul.f32 1.0, %v648
        %v650 = vrcp.pop %v644
        %v651 = vmul.f32 1.0, %v650
        %v652 = vrcp.pop %v645
        %v653 = vmul.f32 1.0, %v652
        %v654 = vld [vmem:[%s322] sm:$0xff]
        %v655 = vld [vmem:[%s322 + $0x8] sm:$0xff]
        %v656 = vld [vmem:[%s322 + $0x10] sm:$0xff]
        %v657 = vld [vmem:[%s322 + $0x18] sm:$0xff]
        %v658 = vlaneseq
        %v659 = vshrl.u32 %v658, 7
        %v660 = vsub.s32 1, %v659
        %v661 = vrot.slane %v396, %v660
        %v662 = vmul.f32 %v654, %v661
        %v663 = vmul.f32 %v655, %v661
        %v664 = vmul.f32 %v656, %v661
        %v665 = vmul.f32 %v657, %v661
        %v666 = vlaneseq
        %v667 = vshrl.u32 %v666, 7
        %v668 = vsub.s32 2, %v667
        %v669 = vrot.slane %v395, %v668
        %v670 = vadd.f32 %v662, %v669
        %v671 = vadd.f32 %v663, %v669
        %v672 = vadd.f32 %v664, %v669
        %v673 = vadd.f32 %v665, %v669
        %v674 = vxor.u32 %v670, 2147483648
        %v675 = vxor.u32 %v671, 2147483648
        %v676 = vxor.u32 %v672, 2147483648
        %v677 = vxor.u32 %v673, 2147483648
        %v678 = vmul.f32 %v674, 1.442695
        %v679 = vpow.pop %v678
        %v680 = vmul.f32 %v675, 1.442695
        %v681 = vpow.pop %v680
        %v682 = vmul.f32 %v676, 1.442695
        %v683 = vpow.pop %v682
        %v684 = vmul.f32 %v677, 1.442695
        %v685 = vpow.pop %v684
        %v686 = vadd.f32 %v679, 1.0
        %v687 = vadd.f32 %v681, 1.0
        %v688 = vadd.f32 %v683, 1.0
        %v689 = vadd.f32 %v685, 1.0
        %v690 = vrcp.pop %v686
        %v691 = vmul.f32 1.0, %v690
        %v692 = vrcp.pop %v687
        %v693 = vmul.f32 1.0, %v692
        %v694 = vrcp.pop %v688
        %v695 = vmul.f32 1.0, %v694
        %v696 = vrcp.pop %v689
        %v697 = vmul.f32 1.0, %v696
        %v698 = vlaneseq
        %v699 = vshrl.u32 %v698, 7
        %v700 = vsub.s32 2, %v699
        %v701 = vrot.slane %v396, %v700
        %v702 = vmul.f32 %v654, %v701
        %v703 = vmul.f32 %v655, %v701
        %v704 = vmul.f32 %v656, %v701
        %v705 = vmul.f32 %v657, %v701
        %v706 = vlaneseq
        %v707 = vshrl.u32 %v706, 7
        %v708 = vsub.s32 3, %v707
        %v709 = vrot.slane %v395, %v708
        %v710 = vadd.f32 %v702, %v709
        %v711 = vadd.f32 %v703, %v709
        %v712 = vadd.f32 %v704, %v709
        %v713 = vadd.f32 %v705, %v709
        %v714 = vxor.u32 %v710, 2147483648
        %v715 = vxor.u32 %v711, 2147483648
        %v716 = vxor.u32 %v712, 2147483648
        %v717 = vxor.u32 %v713, 2147483648
        %v718 = vmul.f32 %v714, 1.442695
        %v719 = vpow.pop %v718
        %v720 = vmul.f32 %v715, 1.442695
        %v721 = vpow.pop %v720
        %v722 = vmul.f32 %v716, 1.442695
        %v723 = vpow.pop %v722
        %v724 = vmul.f32 %v717, 1.442695
        %v725 = vpow.pop %v724
        %v726 = vadd.f32 %v719, 1.0
        %v727 = vadd.f32 %v721, 1.0
        %v728 = vadd.f32 %v723, 1.0
        %v729 = vadd.f32 %v725, 1.0
        %v730 = vrcp.pop %v726
        %v731 = vmul.f32 1.0, %v730
        %v732 = vrcp.pop %v727
        %v733 = vmul.f32 1.0, %v732
        %v734 = vrcp.pop %v728
        %v735 = vmul.f32 1.0, %v734
        %v736 = vrcp.pop %v729
        %v737 = vmul.f32 1.0, %v736
        %v738 = vlaneseq
        %v739 = vshrl.u32 %v738, 7
        %v740 = vsub.s32 3, %v739
        %v741 = vrot.slane %v396, %v740
        %v742 = vmul.f32 %v654, %v741
        %v743 = vmul.f32 %v655, %v741
        %v744 = vmul.f32 %v656, %v741
        %v745 = vmul.f32 %v657, %v741
        %v746 = vlaneseq
        %v747 = vshrl.u32 %v746, 7
        %v748 = vsub.s32 4, %v747
        %v749 = vrot.slane %v396, %v748
        %v750 = vmul.f32 %v654, %v749
        %v751 = vmul.f32 %v655, %v749
        %v752 = vmul.f32 %v656, %v749
        %v753 = vmul.f32 %v657, %v749
        %v754 = vsub.f32 1.0, %v691
        %v755 = vsub.f32 1.0, %v693
        %v756 = vsub.f32 1.0, %v695
        %v757 = vsub.f32 1.0, %v697
        %v758 = vmul.f32 %v742, %v754
        %v759 = vmul.f32 %v743, %v755
        %v760 = vmul.f32 %v744, %v756
        %v761 = vmul.f32 %v745, %v757
        %v762 = vmul.f32 %v493, %v691
        %v763 = vmul.f32 %v494, %v693
        %v764 = vmul.f32 %v495, %v695
        %v765 = vmul.f32 %v496, %v697
        %v766 = vadd.f32 %v758, %v762
        %v767 = vadd.f32 %v759, %v763
        %v768 = vadd.f32 %v760, %v764
        %v769 = vadd.f32 %v761, %v765
        %v770 = vmul.f32 %v493, %v754
        %v771 = vmul.f32 %v494, %v755
        %v772 = vmul.f32 %v495, %v756
        %v773 = vmul.f32 %v496, %v757
        %v774 = vmul.f32 %v497, %v615
        %v775 = vmul.f32 %v498, %v617
        %v776 = vmul.f32 %v499, %v619
        %v777 = vmul.f32 %v500, %v621
        %v778 = vadd.f32 %v770, %v774
        %v779 = vadd.f32 %v771, %v775
        %v780 = vadd.f32 %v772, %v776
        %v781 = vadd.f32 %v773, %v777
        %v782 = vtanh.pop %v766
        %v783 = vtanh.pop %v767
        %v784 = vtanh.pop %v768
        %v785 = vtanh.pop %v769
        %v786 = vmul.f32 %v782, %v731
        %v787 = vmul.f32 %v783, %v733
        %v788 = vmul.f32 %v784, %v735
        %v789 = vmul.f32 %v785, %v737
        %v790 = vtanh.pop %v778
        %v791 = vtanh.pop %v779
        %v792 = vtanh.pop %v780
        %v793 = vtanh.pop %v781
        %v794 = vmul.f32 %v790, %v647
        %v795 = vmul.f32 %v791, %v649
        %v796 = vmul.f32 %v792, %v651
        %v797 = vmul.f32 %v793, %v653
        %v798 = vadd.f32 %v786, %v794
        %v799 = vadd.f32 %v787, %v795
        %v800 = vadd.f32 %v788, %v796
        %v801 = vadd.f32 %v789, %v797
        %v802 = vadd.f32 %v798, %v750
        %v803 = vadd.f32 %v799, %v751
        %v804 = vadd.f32 %v800, %v752
        %v805 = vadd.f32 %v801, %v753
        %806 = vmatprep.subr.mxu0 %v488
        %807 = vmatpush1.msra.mxu0 %v487
        %808 = vmatprep.subr.mxu0 %v482
        %809 = vmatpush1.msra.mxu0 %v481
        %810 = vmatprep.subr.mxu0 %v476
        %811 = vmatpush1.msra.mxu0 %v475
        %812 = vmatprep.subr.mxu0 %v470
        %813 = vmatpush1.msra.mxu0 %v469
        %814 = vmatprep.subr.mxu0 %v464
        %815 = vmatpush1.msra.mxu0 %v463
        %816 = vmatprep.subr.mxu0 %v458
        %817 = vmatpush1.msra.mxu0 %v457
        %818 = vmatprep.subr.mxu0 %v452
        %819 = vmatpush1.msra.mxu0 %v451
        %820 = vmatprep.subr.mxu0 %v446
        %821 = vmatpush1.msra.mxu0 %v445
        %822 = vmatprep.subr.mxu0 %v440
        %823 = vmatpush1.msra.mxu0 %v439
        %824 = vmatprep.subr.mxu0 %v434
        %825 = vmatpush1.msra.mxu0 %v433
        %826 = vmatprep.subr.mxu0 %v428
        %827 = vmatpush1.msra.mxu0 %v427
        %828 = vmatprep.subr.mxu0 %v422
        %829 = vmatpush1.msra.mxu0 %v421
        %830 = vmatprep.subr.mxu0 %v416
        %831 = vmatpush1.msra.mxu0 %v415
        %832 = vmatprep.subr.mxu0 %v410
        %833 = vmatpush1.msra.mxu0 %v409
        %834 = vmatprep.subr.mxu0 %v404
        %835 = vmatpush1.msra.mxu0 %v403
        %836 = vmatprep.subr.mxu0 %v398
        %837 = vmatpush1.msra.mxu0 %v397
        %838 = vmatprep.subr.mxu0 0.0
        %839 = vmatpush2.msra.mxu0 0.0
        %840 = vmatprep.subr.mxu0 0.0
        %841 = vmatpush2.msra.mxu0 0.0
        %842 = vmatprep.subr.mxu0 0.0
        %843 = vmatpush2.msra.mxu0 0.0
        %844 = vmatprep.subr.mxu0 0.0
        %845 = vmatpush2.msra.mxu0 0.0
        %846 = vmatprep.subr.mxu0 0.0
        %847 = vmatpush2.msra.mxu0 0.0
        %848 = vmatprep.subr.mxu0 0.0
        %849 = vmatpush2.msra.mxu0 0.0
        %850 = vmatprep.subr.mxu0 0.0
        %851 = vmatpush2.msra.mxu0 0.0
        %852 = vmatprep.subr.mxu0 0.0
        %853 = vmatpush2.msra.mxu0 0.0
        %854 = vmatprep.subr.mxu0 0.0
        %855 = vmatpush2.msra.mxu0 0.0
        %856 = vmatprep.subr.mxu0 0.0
        %857 = vmatpush2.msra.mxu0 0.0
        %858 = vmatprep.subr.mxu0 0.0
        %859 = vmatpush2.msra.mxu0 0.0
        %860 = vmatprep.subr.mxu0 0.0
        %861 = vmatpush2.msra.mxu0 0.0
        %862 = vmatprep.subr.mxu0 0.0
        %863 = vmatpush2.msra.mxu0 0.0
        %864 = vmatprep.subr.mxu0 0.0
        %865 = vmatpush2.msra.mxu0 0.0
        %866 = vmatprep.subr.mxu0 0.0
        %867 = vmatpush2.msra.mxu0 0.0
        %868 = vmatprep.subr.mxu0 0.0
        %869 = vmatpush2.msra.mxu0 0.0
        %870 = vmatprep.mubr.f32.mxu0 0.0
        %871 = vmatmul.mubr.f32.gmra.mxu0 %v766
        %v872 = vpop.f32.mrf.mxu0
        %v873 = vadd.f32 0.0, %v872
        %v874 = vpop.f32.mrf.mxu0
        %v875 = vadd.f32 0.0, %v874
        %876 = vmatprep.mubr.f32.mxu0 0.0
        %877 = vmatmul.mubr.f32.gmra.mxu0 %v767
        %v878 = vpop.f32.mrf.mxu0
        %v879 = vadd.f32 0.0, %v878
        %v880 = vpop.f32.mrf.mxu0
        %v881 = vadd.f32 0.0, %v880
        %882 = vmatprep.mubr.f32.mxu0 0.0
        %883 = vmatmul.mubr.f32.gmra.mxu0 %v768
        %v884 = vpop.f32.mrf.mxu0
        %v885 = vadd.f32 0.0, %v884
        %v886 = vpop.f32.mrf.mxu0
        %v887 = vadd.f32 0.0, %v886
        %888 = vmatprep.mubr.f32.mxu0 0.0
        %889 = vmatmul.mubr.f32.gmra.mxu0 %v769
        %v890 = vpop.f32.mrf.mxu0
        %v891 = vadd.f32 0.0, %v890
        %v892 = vpop.f32.mrf.mxu0
        %v893 = vadd.f32 0.0, %v892
        %894 = vdwg.mxu0
        %v895 = vadd.f32 %v873, %v593
        %v896 = vadd.f32 %v879, %v593
        %v897 = vadd.f32 %v885, %v593
        %v898 = vadd.f32 %v891, %v593
        %v899 = vxor.u32 %v895, 2147483648
        %v900 = vxor.u32 %v896, 2147483648
        %v901 = vxor.u32 %v897, 2147483648
        %v902 = vxor.u32 %v898, 2147483648
        %v903 = vmul.f32 %v899, 1.442695
        %v904 = vpow.pop %v903
        %v905 = vmul.f32 %v900, 1.442695
        %v906 = vpow.pop %v905
        %v907 = vmul.f32 %v901, 1.442695
        %v908 = vpow.pop %v907
        %v909 = vmul.f32 %v902, 1.442695
        %v910 = vpow.pop %v909
        %v911 = vadd.f32 %v904, 1.0
        %v912 = vadd.f32 %v906, 1.0
        %v913 = vadd.f32 %v908, 1.0
        %v914 = vadd.f32 %v910, 1.0
        %v915 = vrcp.pop %v911
        %v916 = vmul.f32 1.0, %v915
        %v917 = vrcp.pop %v912
        %v918 = vmul.f32 1.0, %v917
        %v919 = vrcp.pop %v913
        %v920 = vmul.f32 1.0, %v919
        %v921 = vrcp.pop %v914
        %v922 = vmul.f32 1.0, %v921
        %v923 = vadd.f32 %v875, %v625
        %v924 = vadd.f32 %v881, %v625
        %v925 = vadd.f32 %v887, %v625
        %v926 = vadd.f32 %v893, %v625
        %v927 = vxor.u32 %v923, 2147483648
        %v928 = vxor.u32 %v924, 2147483648
        %v929 = vxor.u32 %v925, 2147483648
        %v930 = vxor.u32 %v926, 2147483648
        %v931 = vmul.f32 %v927, 1.442695
        %v932 = vpow.pop %v931
        %v933 = vmul.f32 %v928, 1.442695
        %v934 = vpow.pop %v933
        %v935 = vmul.f32 %v929, 1.442695
        %v936 = vpow.pop %v935
        %v937 = vmul.f32 %v930, 1.442695
        %v938 = vpow.pop %v937
        %v939 = vadd.f32 %v932, 1.0
        %v940 = vadd.f32 %v934, 1.0
        %v941 = vadd.f32 %v936, 1.0
        %v942 = vadd.f32 %v938, 1.0
        %v943 = vrcp.pop %v939
        %v944 = vmul.f32 1.0, %v943
        %v945 = vrcp.pop %v940
        %v946 = vmul.f32 1.0, %v945
        %v947 = vrcp.pop %v941
        %v948 = vmul.f32 1.0, %v947
        %v949 = vrcp.pop %v942
        %v950 = vmul.f32 1.0, %v949
        %951 = vmatprep.subr.mxu0 %v490
        %952 = vmatpush1.msra.mxu0 %v489
        %953 = vmatprep.subr.mxu0 %v484
        %954 = vmatpush1.msra.mxu0 %v483
        %955 = vmatprep.subr.mxu0 %v478
        %956 = vmatpush1.msra.mxu0 %v477
        %957 = vmatprep.subr.mxu0 %v472
        %958 = vmatpush1.msra.mxu0 %v471
        %959 = vmatprep.subr.mxu0 %v466
        %960 = vmatpush1.msra.mxu0 %v465
        %961 = vmatprep.subr.mxu0 %v460
        %962 = vmatpush1.msra.mxu0 %v459
        %963 = vmatprep.subr.mxu0 %v454
        %964 = vmatpush1.msra.mxu0 %v453
        %965 = vmatprep.subr.mxu0 %v448
        %966 = vmatpush1.msra.mxu0 %v447
        %967 = vmatprep.subr.mxu0 %v442
        %968 = vmatpush1.msra.mxu0 %v441
        %969 = vmatprep.subr.mxu0 %v436
        %970 = vmatpush1.msra.mxu0 %v435
        %971 = vmatprep.subr.mxu0 %v430
        %972 = vmatpush1.msra.mxu0 %v429
        %973 = vmatprep.subr.mxu0 %v424
        %974 = vmatpush1.msra.mxu0 %v423
        %975 = vmatprep.subr.mxu0 %v418
        %976 = vmatpush1.msra.mxu0 %v417
        %977 = vmatprep.subr.mxu0 %v412
        %978 = vmatpush1.msra.mxu0 %v411
        %979 = vmatprep.subr.mxu0 %v406
        %980 = vmatpush1.msra.mxu0 %v405
        %981 = vmatprep.subr.mxu0 %v400
        %982 = vmatpush1.msra.mxu0 %v399
        %983 = vmatprep.subr.mxu0 0.0
        %984 = vmatpush2.msra.mxu0 0.0
        %985 = vmatprep.subr.mxu0 0.0
        %986 = vmatpush2.msra.mxu0 0.0
        %987 = vmatprep.subr.mxu0 0.0
        %988 = vmatpush2.msra.mxu0 0.0
        %989 = vmatprep.subr.mxu0 0.0
        %990 = vmatpush2.msra.mxu0 0.0
        %991 = vmatprep.subr.mxu0 0.0
        %992 = vmatpush2.msra.mxu0 0.0
        %993 = vmatprep.subr.mxu0 0.0
        %994 = vmatpush2.msra.mxu0 0.0
        %995 = vmatprep.subr.mxu0 0.0
        %996 = vmatpush2.msra.mxu0 0.0
        %997 = vmatprep.subr.mxu0 0.0
        %998 = vmatpush2.msra.mxu0 0.0
        %999 = vmatprep.subr.mxu0 0.0
        %1000 = vmatpush2.msra.mxu0 0.0
        %1001 = vmatprep.subr.mxu0 0.0
        %1002 = vmatpush2.msra.mxu0 0.0
        %1003 = vmatprep.subr.mxu0 0.0
        %1004 = vmatpush2.msra.mxu0 0.0
        %1005 = vmatprep.subr.mxu0 0.0
        %1006 = vmatpush2.msra.mxu0 0.0
        %1007 = vmatprep.subr.mxu0 0.0
        %1008 = vmatpush2.msra.mxu0 0.0
        %1009 = vmatprep.subr.mxu0 0.0
        %1010 = vmatpush2.msra.mxu0 0.0
        %1011 = vmatprep.subr.mxu0 0.0
        %1012 = vmatpush2.msra.mxu0 0.0
        %1013 = vmatprep.subr.mxu0 0.0
        %1014 = vmatpush2.msra.mxu0 0.0
        %1015 = vmatprep.mubr.f32.mxu0 0.0
        %1016 = vmatmul.mubr.f32.gmra.mxu0 %v802
        %v1017 = vpop.f32.mrf.mxu0
        %v1018 = vadd.f32 0.0, %v1017
        %v1019 = vpop.f32.mrf.mxu0
        %v1020 = vadd.f32 0.0, %v1019
        %1021 = vmatprep.mubr.f32.mxu0 0.0
        %1022 = vmatmul.mubr.f32.gmra.mxu0 %v803
        %v1023 = vpop.f32.mrf.mxu0
        %v1024 = vadd.f32 0.0, %v1023
        %v1025 = vpop.f32.mrf.mxu0
        %v1026 = vadd.f32 0.0, %v1025
        %1027 = vmatprep.mubr.f32.mxu0 0.0
        %1028 = vmatmul.mubr.f32.gmra.mxu0 %v804
        %v1029 = vpop.f32.mrf.mxu0
        %v1030 = vadd.f32 0.0, %v1029
        %v1031 = vpop.f32.mrf.mxu0
        %v1032 = vadd.f32 0.0, %v1031
        %1033 = vmatprep.mubr.f32.mxu0 0.0
        %1034 = vmatmul.mubr.f32.gmra.mxu0 %v805
        %v1035 = vpop.f32.mrf.mxu0
        %v1036 = vadd.f32 0.0, %v1035
        %v1037 = vpop.f32.mrf.mxu0
        %v1038 = vadd.f32 0.0, %v1037
        %1039 = vdwg.mxu0
        %1040 = vmatprep.subr.mxu0 %v492
        %1041 = vmatpush1.msra.mxu0 %v491
        %1042 = vmatprep.subr.mxu0 %v486
        %1043 = vmatpush1.msra.mxu0 %v485
        %1044 = vmatprep.subr.mxu0 %v480
        %1045 = vmatpush1.msra.mxu0 %v479
        %1046 = vmatprep.subr.mxu0 %v474
        %1047 = vmatpush1.msra.mxu0 %v473
        %1048 = vmatprep.subr.mxu0 %v468
        %1049 = vmatpush1.msra.mxu0 %v467
        %1050 = vmatprep.subr.mxu0 %v462
        %1051 = vmatpush1.msra.mxu0 %v461
        %1052 = vmatprep.subr.mxu0 %v456
        %1053 = vmatpush1.msra.mxu0 %v455
        %1054 = vmatprep.subr.mxu0 %v450
        %1055 = vmatpush1.msra.mxu0 %v449
        %1056 = vmatprep.subr.mxu0 %v444
        %1057 = vmatpush1.msra.mxu0 %v443
        %1058 = vmatprep.subr.mxu0 %v438
        %1059 = vmatpush1.msra.mxu0 %v437
        %1060 = vmatprep.subr.mxu0 %v432
        %1061 = vmatpush1.msra.mxu0 %v431
        %1062 = vmatprep.subr.mxu0 %v426
        %1063 = vmatpush1.msra.mxu0 %v425
        %1064 = vmatprep.subr.mxu0 %v420
        %1065 = vmatpush1.msra.mxu0 %v419
        %1066 = vmatprep.subr.mxu0 %v414
        %1067 = vmatpush1.msra.mxu0 %v413
        %1068 = vmatprep.subr.mxu0 %v408
        %1069 = vmatpush1.msra.mxu0 %v407
        %1070 = vmatprep.subr.mxu0 %v402
        %1071 = vmatpush1.msra.mxu0 %v401
        %1072 = vmatprep.subr.mxu0 0.0
        %1073 = vmatpush2.msra.mxu0 0.0
        %1074 = vmatprep.subr.mxu0 0.0
        %1075 = vmatpush2.msra.mxu0 0.0
        %1076 = vmatprep.subr.mxu0 0.0
        %1077 = vmatpush2.msra.mxu0 0.0
        %1078 = vmatprep.subr.mxu0 0.0
        %1079 = vmatpush2.msra.mxu0 0.0
        %1080 = vmatprep.subr.mxu0 0.0
        %1081 = vmatpush2.msra.mxu0 0.0
        %1082 = vmatprep.subr.mxu0 0.0
        %1083 = vmatpush2.msra.mxu0 0.0
        %1084 = vmatprep.subr.mxu0 0.0
        %1085 = vmatpush2.msra.mxu0 0.0
        %1086 = vmatprep.subr.mxu0 0.0
        %1087 = vmatpush2.msra.mxu0 0.0
        %1088 = vmatprep.subr.mxu0 0.0
        %1089 = vmatpush2.msra.mxu0 0.0
        %1090 = vmatprep.subr.mxu0 0.0
        %1091 = vmatpush2.msra.mxu0 0.0
        %1092 = vmatprep.subr.mxu0 0.0
        %1093 = vmatpush2.msra.mxu0 0.0
        %1094 = vmatprep.subr.mxu0 0.0
        %1095 = vmatpush2.msra.mxu0 0.0
        %1096 = vmatprep.subr.mxu0 0.0
        %1097 = vmatpush2.msra.mxu0 0.0
        %1098 = vmatprep.subr.mxu0 0.0
        %1099 = vmatpush2.msra.mxu0 0.0
        %1100 = vmatprep.subr.mxu0 0.0
        %1101 = vmatpush2.msra.mxu0 0.0
        %1102 = vmatprep.subr.mxu0 0.0
        %1103 = vmatpush2.msra.mxu0 0.0
        %1104 = vmatprep.mubr.f32.mxu0 0.0
        %1105 = vmatmul.mubr.f32.gmra.mxu0 %v802
        %v1106 = vpop.f32.mrf.mxu0
        %v1107 = vadd.f32 0.0, %v1106
        %v1108 = vpop.f32.mrf.mxu0
        %v1109 = vadd.f32 0.0, %v1108
        %1110 = vmatprep.mubr.f32.mxu0 0.0
        %1111 = vmatmul.mubr.f32.gmra.mxu0 %v803
        %v1112 = vpop.f32.mrf.mxu0
        %v1113 = vadd.f32 0.0, %v1112
        %v1114 = vpop.f32.mrf.mxu0
        %v1115 = vadd.f32 0.0, %v1114
        %1116 = vmatprep.mubr.f32.mxu0 0.0
        %1117 = vmatmul.mubr.f32.gmra.mxu0 %v804
        %v1118 = vpop.f32.mrf.mxu0
        %v1119 = vadd.f32 0.0, %v1118
        %v1120 = vpop.f32.mrf.mxu0
        %v1121 = vadd.f32 0.0, %v1120
        %1122 = vmatprep.mubr.f32.mxu0 0.0
        %1123 = vmatmul.mubr.f32.gmra.mxu0 %v805
        %v1124 = vpop.f32.mrf.mxu0
        %v1125 = vadd.f32 0.0, %v1124
        %v1126 = vpop.f32.mrf.mxu0
        %v1127 = vadd.f32 0.0, %v1126
        %1128 = vdwg.mxu0
        %v1129 = vlaneseq
        %v1130 = vshrl.u32 %v1129, 7
        %v1131 = vsub.s32 4, %v1130
        %v1132 = vrot.slane %v395, %v1131
        %v1133 = vadd.f32 %v1018, %v1132
        %v1134 = vadd.f32 %v1024, %v1132
        %v1135 = vadd.f32 %v1030, %v1132
        %v1136 = vadd.f32 %v1036, %v1132
        %v1137 = vxor.u32 %v1133, 2147483648
        %v1138 = vxor.u32 %v1134, 2147483648
        %v1139 = vxor.u32 %v1135, 2147483648
        %v1140 = vxor.u32 %v1136, 2147483648
        %v1141 = vmul.f32 %v1137, 1.442695
        %v1142 = vpow.pop %v1141
        %v1143 = vmul.f32 %v1138, 1.442695
        %v1144 = vpow.pop %v1143
        %v1145 = vmul.f32 %v1139, 1.442695
        %v1146 = vpow.pop %v1145
        %v1147 = vmul.f32 %v1140, 1.442695
        %v1148 = vpow.pop %v1147
        %v1149 = vadd.f32 %v1142, 1.0
        %v1150 = vadd.f32 %v1144, 1.0
        %v1151 = vadd.f32 %v1146, 1.0
        %v1152 = vadd.f32 %v1148, 1.0
        %v1153 = vrcp.pop %v1149
        %v1154 = vmul.f32 1.0, %v1153
        %v1155 = vrcp.pop %v1150
        %v1156 = vmul.f32 1.0, %v1155
        %v1157 = vrcp.pop %v1151
        %v1158 = vmul.f32 1.0, %v1157
        %v1159 = vrcp.pop %v1152
        %v1160 = vmul.f32 1.0, %v1159
        %v1161 = vlaneseq
        %v1162 = vshrl.u32 %v1161, 7
        %v1163 = vsub.s32 5, %v1162
        %v1164 = vrot.slane %v395, %v1163
        %v1165 = vadd.f32 %v1020, %v1164
        %v1166 = vadd.f32 %v1026, %v1164
        %v1167 = vadd.f32 %v1032, %v1164
        %v1168 = vadd.f32 %v1038, %v1164
        %v1169 = vxor.u32 %v1165, 2147483648
        %v1170 = vxor.u32 %v1166, 2147483648
        %v1171 = vxor.u32 %v1167, 2147483648
        %v1172 = vxor.u32 %v1168, 2147483648
        %v1173 = vmul.f32 %v1169, 1.442695
        %v1174 = vpow.pop %v1173
        %v1175 = vmul.f32 %v1170, 1.442695
        %v1176 = vpow.pop %v1175
        %v1177 = vmul.f32 %v1171, 1.442695
        %v1178 = vpow.pop %v1177
        %v1179 = vmul.f32 %v1172, 1.442695
        %v1180 = vpow.pop %v1179
        %v1181 = vadd.f32 %v1174, 1.0
        %v1182 = vadd.f32 %v1176, 1.0
        %v1183 = vadd.f32 %v1178, 1.0
        %v1184 = vadd.f32 %v1180, 1.0
        %v1185 = vrcp.pop %v1181
        %v1186 = vmul.f32 1.0, %v1185
        %v1187 = vrcp.pop %v1182
        %v1188 = vmul.f32 1.0, %v1187
        %v1189 = vrcp.pop %v1183
        %v1190 = vmul.f32 1.0, %v1189
        %v1191 = vrcp.pop %v1184
        %v1192 = vmul.f32 1.0, %v1191
        %v1193 = vlaneseq
        %v1194 = vshrl.u32 %v1193, 7
        %v1195 = vsub.s32 6, %v1194
        %v1196 = vrot.slane %v395, %v1195
        %v1197 = vadd.f32 %v1107, %v1196
        %v1198 = vadd.f32 %v1113, %v1196
        %v1199 = vadd.f32 %v1119, %v1196
        %v1200 = vadd.f32 %v1125, %v1196
        %v1201 = vlaneseq
        %v1202 = vshrl.u32 %v1201, 7
        %v1203 = vsub.s32 7, %v1202
        %v1204 = vrot.slane %v395, %v1203
        %v1205 = vadd.f32 %v1109, %v1204
        %v1206 = vadd.f32 %v1115, %v1204
        %v1207 = vadd.f32 %v1121, %v1204
        %v1208 = vadd.f32 %v1127, %v1204
        %v1209 = vsub.f32 1.0, %v1154
        %v1210 = vsub.f32 1.0, %v1156
        %v1211 = vsub.f32 1.0, %v1158
        %v1212 = vsub.f32 1.0, %v1160
        %v1213 = vmul.f32 %v1197, %v1209
        %v1214 = vmul.f32 %v1198, %v1210
        %v1215 = vmul.f32 %v1199, %v1211
        %v1216 = vmul.f32 %v1200, %v1212
        %v1217 = vmul.f32 %v766, %v1154
        %v1218 = vmul.f32 %v767, %v1156
        %v1219 = vmul.f32 %v768, %v1158
        %v1220 = vmul.f32 %v769, %v1160
        %v1221 = vadd.f32 %v1213, %v1217
        %v1222 = vadd.f32 %v1214, %v1218
        %v1223 = vadd.f32 %v1215, %v1219
        %v1224 = vadd.f32 %v1216, %v1220
        %v1225 = vmul.f32 %v766, %v1209
        %v1226 = vmul.f32 %v767, %v1210
        %v1227 = vmul.f32 %v768, %v1211
        %v1228 = vmul.f32 %v769, %v1212
        %v1229 = vmul.f32 %v778, %v916
        %v1230 = vmul.f32 %v779, %v918
        %v1231 = vmul.f32 %v780, %v920
        %v1232 = vmul.f32 %v781, %v922
        %v1233 = vadd.f32 %v1225, %v1229
        %v1234 = vadd.f32 %v1226, %v1230
        %v1235 = vadd.f32 %v1227, %v1231
        %v1236 = vadd.f32 %v1228, %v1232
        %v1237 = vtanh.pop %v1221
        %v1238 = vtanh.pop %v1222
        %v1239 = vtanh.pop %v1223
        %v1240 = vtanh.pop %v1224
        %v1241 = vmul.f32 %v1237, %v1186
        %v1242 = vmul.f32 %v1238, %v1188
        %v1243 = vmul.f32 %v1239, %v1190
        %v1244 = vmul.f32 %v1240, %v1192
        %v1245 = vtanh.pop %v1233
        %v1246 = vtanh.pop %v1234
        %v1247 = vtanh.pop %v1235
        %v1248 = vtanh.pop %v1236
        %v1249 = vmul.f32 %v1245, %v944
        %v1250 = vmul.f32 %v1246, %v946
        %v1251 = vmul.f32 %v1247, %v948
        %v1252 = vmul.f32 %v1248, %v950
        %v1253 = vadd.f32 %v1241, %v1249
        %v1254 = vadd.f32 %v1242, %v1250
        %v1255 = vadd.f32 %v1243, %v1251
        %v1256 = vadd.f32 %v1244, %v1252
        %v1257 = vadd.f32 %v1253, %v1205
        %v1258 = vadd.f32 %v1254, %v1206
        %v1259 = vadd.f32 %v1255, %v1207
        %v1260 = vadd.f32 %v1256, %v1208
        %v1261 = vld [vmem:[#allocation11] sm:$0xff]
        %v1262 = vld [vmem:[#allocation11 + $0x8] sm:$0xff]
        %v1263 = vld [vmem:[#allocation11 + $0x10] sm:$0xff]
        %v1264 = vld [vmem:[#allocation11 + $0x18] sm:$0xff]
        %v1265 = vld [vmem:[#allocation11 + $0x20] sm:$0xff]
        %v1266 = vld [vmem:[#allocation11 + $0x28] sm:$0xff]
        %v1267 = vld [vmem:[#allocation11 + $0x30] sm:$0xff]
        %v1268 = vld [vmem:[#allocation11 + $0x38] sm:$0xff]
        %v1269 = vld [vmem:[#allocation11 + $0x40] sm:$0xff]
        %v1270 = vld [vmem:[#allocation11 + $0x48] sm:$0xff]
        %v1271 = vld [vmem:[#allocation11 + $0x50] sm:$0xff]
        %v1272 = vld [vmem:[#allocation11 + $0x58] sm:$0xff]
        %v1273 = vld [vmem:[#allocation11 + $0x60] sm:$0xff]
        %v1274 = vld [vmem:[#allocation11 + $0x68] sm:$0xff]
        %v1275 = vld [vmem:[#allocation11 + $0x70] sm:$0xff]
        %v1276 = vld [vmem:[#allocation11 + $0x78] sm:$0xff]
        %1277 = vmatprep.subr.mxu0 %v488
        %1278 = vmatpush1.msra.mxu0 %v487
        %1279 = vmatprep.subr.mxu0 %v482
        %1280 = vmatpush1.msra.mxu0 %v481
        %1281 = vmatprep.subr.mxu0 %v476
        %1282 = vmatpush1.msra.mxu0 %v475
        %1283 = vmatprep.subr.mxu0 %v470
        %1284 = vmatpush1.msra.mxu0 %v469
        %1285 = vmatprep.subr.mxu0 %v464
        %1286 = vmatpush1.msra.mxu0 %v463
        %1287 = vmatprep.subr.mxu0 %v458
        %1288 = vmatpush1.msra.mxu0 %v457
        %1289 = vmatprep.subr.mxu0 %v452
        %1290 = vmatpush1.msra.mxu0 %v451
        %1291 = vmatprep.subr.mxu0 %v446
        %1292 = vmatpush1.msra.mxu0 %v445
        %1293 = vmatprep.subr.mxu0 %v440
        %1294 = vmatpush1.msra.mxu0 %v439
        %1295 = vmatprep.subr.mxu0 %v434
        %1296 = vmatpush1.msra.mxu0 %v433
        %1297 = vmatprep.subr.mxu0 %v428
        %1298 = vmatpush1.msra.mxu0 %v427
        %1299 = vmatprep.subr.mxu0 %v422
        %1300 = vmatpush1.msra.mxu0 %v421
        %1301 = vmatprep.subr.mxu0 %v416
        %1302 = vmatpush1.msra.mxu0 %v415
        %1303 = vmatprep.subr.mxu0 %v410
        %1304 = vmatpush1.msra.mxu0 %v409
        %1305 = vmatprep.subr.mxu0 %v404
        %1306 = vmatpush1.msra.mxu0 %v403
        %1307 = vmatprep.subr.mxu0 %v398
        %1308 = vmatpush1.msra.mxu0 %v397
        %1309 = vmatprep.subr.mxu0 0.0
        %1310 = vmatpush2.msra.mxu0 0.0
        %1311 = vmatprep.subr.mxu0 0.0
        %1312 = vmatpush2.msra.mxu0 0.0
        %1313 = vmatprep.subr.mxu0 0.0
        %1314 = vmatpush2.msra.mxu0 0.0
        %1315 = vmatprep.subr.mxu0 0.0
        %1316 = vmatpush2.msra.mxu0 0.0
        %1317 = vmatprep.subr.mxu0 0.0
        %1318 = vmatpush2.msra.mxu0 0.0
        %1319 = vmatprep.subr.mxu0 0.0
        %1320 = vmatpush2.msra.mxu0 0.0
        %1321 = vmatprep.subr.mxu0 0.0
        %1322 = vmatpush2.msra.mxu0 0.0
        %1323 = vmatprep.subr.mxu0 0.0
        %1324 = vmatpush2.msra.mxu0 0.0
        %1325 = vmatprep.subr.mxu0 0.0
        %1326 = vmatpush2.msra.mxu0 0.0
        %1327 = vmatprep.subr.mxu0 0.0
        %1328 = vmatpush2.msra.mxu0 0.0
        %1329 = vmatprep.subr.mxu0 0.0
        %1330 = vmatpush2.msra.mxu0 0.0
        %1331 = vmatprep.subr.mxu0 0.0
        %1332 = vmatpush2.msra.mxu0 0.0
        %1333 = vmatprep.subr.mxu0 0.0
        %1334 = vmatpush2.msra.mxu0 0.0
        %1335 = vmatprep.subr.mxu0 0.0
        %1336 = vmatpush2.msra.mxu0 0.0
        %1337 = vmatprep.subr.mxu0 0.0
        %1338 = vmatpush2.msra.mxu0 0.0
        %1339 = vmatprep.subr.mxu0 0.0
        %1340 = vmatpush2.msra.mxu0 0.0
        %1341 = vmatprep.mubr.f32.mxu0 0.0
        %1342 = vmatmul.mubr.f32.gmra.mxu0 %v1221
        %v1343 = vpop.f32.mrf.mxu0
        %v1344 = vadd.f32 0.0, %v1343
        %v1345 = vpop.f32.mrf.mxu0
        %v1346 = vadd.f32 0.0, %v1345
        %1347 = vmatprep.mubr.f32.mxu0 0.0
        %1348 = vmatmul.mubr.f32.gmra.mxu0 %v1222
        %v1349 = vpop.f32.mrf.mxu0
        %v1350 = vadd.f32 0.0, %v1349
        %v1351 = vpop.f32.mrf.mxu0
        %v1352 = vadd.f32 0.0, %v1351
        %1353 = vmatprep.mubr.f32.mxu0 0.0
        %1354 = vmatmul.mubr.f32.gmra.mxu0 %v1223
        %v1355 = vpop.f32.mrf.mxu0
        %v1356 = vadd.f32 0.0, %v1355
        %v1357 = vpop.f32.mrf.mxu0
        %v1358 = vadd.f32 0.0, %v1357
        %1359 = vmatprep.mubr.f32.mxu0 0.0
        %1360 = vmatmul.mubr.f32.gmra.mxu0 %v1224
        %v1361 = vpop.f32.mrf.mxu0
        %v1362 = vadd.f32 0.0, %v1361
        %v1363 = vpop.f32.mrf.mxu0
        %v1364 = vadd.f32 0.0, %v1363
        %1365 = vdwg.mxu0
        %v1366 = vadd.f32 %v1344, %v593
        %v1367 = vadd.f32 %v1350, %v593
        %v1368 = vadd.f32 %v1356, %v593
        %v1369 = vadd.f32 %v1362, %v593
        %v1370 = vxor.u32 %v1366, 2147483648
        %v1371 = vxor.u32 %v1367, 2147483648
        %v1372 = vxor.u32 %v1368, 2147483648
        %v1373 = vxor.u32 %v1369, 2147483648
        %v1374 = vmul.f32 %v1370, 1.442695
        %v1375 = vpow.pop %v1374
        %v1376 = vmul.f32 %v1371, 1.442695
        %v1377 = vpow.pop %v1376
        %v1378 = vmul.f32 %v1372, 1.442695
        %v1379 = vpow.pop %v1378
        %v1380 = vmul.f32 %v1373, 1.442695
        %v1381 = vpow.pop %v1380
        %v1382 = vadd.f32 %v1375, 1.0
        %v1383 = vadd.f32 %v1377, 1.0
        %v1384 = vadd.f32 %v1379, 1.0
        %v1385 = vadd.f32 %v1381, 1.0
        %v1386 = vrcp.pop %v1382
        %v1387 = vmul.f32 1.0, %v1386
        %v1388 = vrcp.pop %v1383
        %v1389 = vmul.f32 1.0, %v1388
        %v1390 = vrcp.pop %v1384
        %v1391 = vmul.f32 1.0, %v1390
        %v1392 = vrcp.pop %v1385
        %v1393 = vmul.f32 1.0, %v1392
        %v1394 = vadd.f32 %v1346, %v625
        %v1395 = vadd.f32 %v1352, %v625
        %v1396 = vadd.f32 %v1358, %v625
        %v1397 = vadd.f32 %v1364, %v625
        %v1398 = vxor.u32 %v1394, 2147483648
        %v1399 = vxor.u32 %v1395, 2147483648
        %v1400 = vxor.u32 %v1396, 2147483648
        %v1401 = vxor.u32 %v1397, 2147483648
        %v1402 = vmul.f32 %v1398, 1.442695
        %v1403 = vpow.pop %v1402
        %v1404 = vmul.f32 %v1399, 1.442695
        %v1405 = vpow.pop %v1404
        %v1406 = vmul.f32 %v1400, 1.442695
        %v1407 = vpow.pop %v1406
        %v1408 = vmul.f32 %v1401, 1.442695
        %v1409 = vpow.pop %v1408
        %v1410 = vadd.f32 %v1403, 1.0
        %v1411 = vadd.f32 %v1405, 1.0
        %v1412 = vadd.f32 %v1407, 1.0
        %v1413 = vadd.f32 %v1409, 1.0
        %v1414 = vrcp.pop %v1410
        %v1415 = vmul.f32 1.0, %v1414
        %v1416 = vrcp.pop %v1411
        %v1417 = vmul.f32 1.0, %v1416
        %v1418 = vrcp.pop %v1412
        %v1419 = vmul.f32 1.0, %v1418
        %v1420 = vrcp.pop %v1413
        %v1421 = vmul.f32 1.0, %v1420
        %1422 = vmatprep.subr.mxu0 %v490
        %1423 = vmatpush1.msra.mxu0 %v489
        %1424 = vmatprep.subr.mxu0 %v484
        %1425 = vmatpush1.msra.mxu0 %v483
        %1426 = vmatprep.subr.mxu0 %v478
        %1427 = vmatpush1.msra.mxu0 %v477
        %1428 = vmatprep.subr.mxu0 %v472
        %1429 = vmatpush1.msra.mxu0 %v471
        %1430 = vmatprep.subr.mxu0 %v466
        %1431 = vmatpush1.msra.mxu0 %v465
        %1432 = vmatprep.subr.mxu0 %v460
        %1433 = vmatpush1.msra.mxu0 %v459
        %1434 = vmatprep.subr.mxu0 %v454
        %1435 = vmatpush1.msra.mxu0 %v453
        %1436 = vmatprep.subr.mxu0 %v448
        %1437 = vmatpush1.msra.mxu0 %v447
        %1438 = vmatprep.subr.mxu0 %v442
        %1439 = vmatpush1.msra.mxu0 %v441
        %1440 = vmatprep.subr.mxu0 %v436
        %1441 = vmatpush1.msra.mxu0 %v435
        %1442 = vmatprep.subr.mxu0 %v430
        %1443 = vmatpush1.msra.mxu0 %v429
        %1444 = vmatprep.subr.mxu0 %v424
        %1445 = vmatpush1.msra.mxu0 %v423
        %1446 = vmatprep.subr.mxu0 %v418
        %1447 = vmatpush1.msra.mxu0 %v417
        %1448 = vmatprep.subr.mxu0 %v412
        %1449 = vmatpush1.msra.mxu0 %v411
        %1450 = vmatprep.subr.mxu0 %v406
        %1451 = vmatpush1.msra.mxu0 %v405
        %1452 = vmatprep.subr.mxu0 %v400
        %1453 = vmatpush1.msra.mxu0 %v399
        %1454 = vmatprep.subr.mxu0 0.0
        %1455 = vmatpush2.msra.mxu0 0.0
        %1456 = vmatprep.subr.mxu0 0.0
        %1457 = vmatpush2.msra.mxu0 0.0
        %1458 = vmatprep.subr.mxu0 0.0
        %1459 = vmatpush2.msra.mxu0 0.0
        %1460 = vmatprep.subr.mxu0 0.0
        %1461 = vmatpush2.msra.mxu0 0.0
        %1462 = vmatprep.subr.mxu0 0.0
        %1463 = vmatpush2.msra.mxu0 0.0
        %1464 = vmatprep.subr.mxu0 0.0
        %1465 = vmatpush2.msra.mxu0 0.0
        %1466 = vmatprep.subr.mxu0 0.0
        %1467 = vmatpush2.msra.mxu0 0.0
        %1468 = vmatprep.subr.mxu0 0.0
        %1469 = vmatpush2.msra.mxu0 0.0
        %1470 = vmatprep.subr.mxu0 0.0
        %1471 = vmatpush2.msra.mxu0 0.0
        %1472 = vmatprep.subr.mxu0 0.0
        %1473 = vmatpush2.msra.mxu0 0.0
        %1474 = vmatprep.subr.mxu0 0.0
        %1475 = vmatpush2.msra.mxu0 0.0
        %1476 = vmatprep.subr.mxu0 0.0
        %1477 = vmatpush2.msra.mxu0 0.0
        %1478 = vmatprep.subr.mxu0 0.0
        %1479 = vmatpush2.msra.mxu0 0.0
        %1480 = vmatprep.subr.mxu0 0.0
        %1481 = vmatpush2.msra.mxu0 0.0
        %1482 = vmatprep.subr.mxu0 0.0
        %1483 = vmatpush2.msra.mxu0 0.0
        %1484 = vmatprep.subr.mxu0 0.0
        %1485 = vmatpush2.msra.mxu0 0.0
        %1486 = vmatprep.mubr.f32.mxu0 0.0
        %1487 = vmatmul.mubr.f32.gmra.mxu0 %v1257
        %v1488 = vpop.f32.mrf.mxu0
        %v1489 = vadd.f32 0.0, %v1488
        %v1490 = vpop.f32.mrf.mxu0
        %v1491 = vadd.f32 0.0, %v1490
        %1492 = vmatprep.mubr.f32.mxu0 0.0
        %1493 = vmatmul.mubr.f32.gmra.mxu0 %v1258
        %v1494 = vpop.f32.mrf.mxu0
        %v1495 = vadd.f32 0.0, %v1494
        %v1496 = vpop.f32.mrf.mxu0
        %v1497 = vadd.f32 0.0, %v1496
        %1498 = vmatprep.mubr.f32.mxu0 0.0
        %1499 = vmatmul.mubr.f32.gmra.mxu0 %v1259
        %v1500 = vpop.f32.mrf.mxu0
        %v1501 = vadd.f32 0.0, %v1500
        %v1502 = vpop.f32.mrf.mxu0
        %v1503 = vadd.f32 0.0, %v1502
        %1504 = vmatprep.mubr.f32.mxu0 0.0
        %1505 = vmatmul.mubr.f32.gmra.mxu0 %v1260
        %v1506 = vpop.f32.mrf.mxu0
        %v1507 = vadd.f32 0.0, %v1506
        %v1508 = vpop.f32.mrf.mxu0
        %v1509 = vadd.f32 0.0, %v1508
        %1510 = vdwg.mxu0
        %1511 = vmatprep.subr.mxu0 %v492
        %1512 = vmatpush1.msra.mxu0 %v491
        %1513 = vmatprep.subr.mxu0 %v486
        %1514 = vmatpush1.msra.mxu0 %v485
        %1515 = vmatprep.subr.mxu0 %v480
        %1516 = vmatpush1.msra.mxu0 %v479
        %1517 = vmatprep.subr.mxu0 %v474
        %1518 = vmatpush1.msra.mxu0 %v473
        %1519 = vmatprep.subr.mxu0 %v468
        %1520 = vmatpush1.msra.mxu0 %v467
        %1521 = vmatprep.subr.mxu0 %v462
        %1522 = vmatpush1.msra.mxu0 %v461
        %1523 = vmatprep.subr.mxu0 %v456
        %1524 = vmatpush1.msra.mxu0 %v455
        %1525 = vmatprep.subr.mxu0 %v450
        %1526 = vmatpush1.msra.mxu0 %v449
        %1527 = vmatprep.subr.mxu0 %v444
        %1528 = vmatpush1.msra.mxu0 %v443
        %1529 = vmatprep.subr.mxu0 %v438
        %1530 = vmatpush1.msra.mxu0 %v437
        %1531 = vmatprep.subr.mxu0 %v432
        %1532 = vmatpush1.msra.mxu0 %v431
        %1533 = vmatprep.subr.mxu0 %v426
        %1534 = vmatpush1.msra.mxu0 %v425
        %1535 = vmatprep.subr.mxu0 %v420
        %1536 = vmatpush1.msra.mxu0 %v419
        %1537 = vmatprep.subr.mxu0 %v414
        %1538 = vmatpush1.msra.mxu0 %v413
        %1539 = vmatprep.subr.mxu0 %v408
        %1540 = vmatpush1.msra.mxu0 %v407
        %1541 = vmatprep.subr.mxu0 %v402
        %1542 = vmatpush1.msra.mxu0 %v401
        %1543 = vmatprep.subr.mxu0 0.0
        %1544 = vmatpush2.msra.mxu0 0.0
        %1545 = vmatprep.subr.mxu0 0.0
        %1546 = vmatpush2.msra.mxu0 0.0
        %1547 = vmatprep.subr.mxu0 0.0
        %1548 = vmatpush2.msra.mxu0 0.0
        %1549 = vmatprep.subr.mxu0 0.0
        %1550 = vmatpush2.msra.mxu0 0.0
        %1551 = vmatprep.subr.mxu0 0.0
        %1552 = vmatpush2.msra.mxu0 0.0
        %1553 = vmatprep.subr.mxu0 0.0
        %1554 = vmatpush2.msra.mxu0 0.0
        %1555 = vmatprep.subr.mxu0 0.0
        %1556 = vmatpush2.msra.mxu0 0.0
        %1557 = vmatprep.subr.mxu0 0.0
        %1558 = vmatpush2.msra.mxu0 0.0
        %1559 = vmatprep.subr.mxu0 0.0
        %1560 = vmatpush2.msra.mxu0 0.0
        %1561 = vmatprep.subr.mxu0 0.0
        %1562 = vmatpush2.msra.mxu0 0.0
        %1563 = vmatprep.subr.mxu0 0.0
        %1564 = vmatpush2.msra.mxu0 0.0
        %1565 = vmatprep.subr.mxu0 0.0
        %1566 = vmatpush2.msra.mxu0 0.0
        %1567 = vmatprep.subr.mxu0 0.0
        %1568 = vmatpush2.msra.mxu0 0.0
        %1569 = vmatprep.subr.mxu0 0.0
        %1570 = vmatpush2.msra.mxu0 0.0
        %1571 = vmatprep.subr.mxu0 0.0
        %1572 = vmatpush2.msra.mxu0 0.0
        %1573 = vmatprep.subr.mxu0 0.0
        %1574 = vmatpush2.msra.mxu0 0.0
        %1575 = vmatprep.mubr.f32.mxu0 0.0
        %1576 = vmatmul.mubr.f32.gmra.mxu0 %v1257
        %v1577 = vpop.f32.mrf.mxu0
        %v1578 = vadd.f32 0.0, %v1577
        %v1579 = vpop.f32.mrf.mxu0
        %v1580 = vadd.f32 0.0, %v1579
        %1581 = vmatprep.mubr.f32.mxu0 0.0
        %1582 = vmatmul.mubr.f32.gmra.mxu0 %v1258
        %v1583 = vpop.f32.mrf.mxu0
        %v1584 = vadd.f32 0.0, %v1583
        %v1585 = vpop.f32.mrf.mxu0
        %v1586 = vadd.f32 0.0, %v1585
        %1587 = vmatprep.mubr.f32.mxu0 0.0
        %1588 = vmatmul.mubr.f32.gmra.mxu0 %v1259
        %v1589 = vpop.f32.mrf.mxu0
        %v1590 = vadd.f32 0.0, %v1589
        %v1591 = vpop.f32.mrf.mxu0
        %v1592 = vadd.f32 0.0, %v1591
        %1593 = vmatprep.mubr.f32.mxu0 0.0
        %1594 = vmatmul.mubr.f32.gmra.mxu0 %v1260
        %v1595 = vpop.f32.mrf.mxu0
        %v1596 = vadd.f32 0.0, %v1595
        %v1597 = vpop.f32.mrf.mxu0
        %v1598 = vadd.f32 0.0, %v1597
        %1599 = vdwg.mxu0
        %v1600 = vadd.f32 %v1489, %v1132
        %v1601 = vadd.f32 %v1495, %v1132
        %v1602 = vadd.f32 %v1501, %v1132
        %v1603 = vadd.f32 %v1507, %v1132
        %v1604 = vxor.u32 %v1600, 2147483648
        %v1605 = vxor.u32 %v1601, 2147483648
        %v1606 = vxor.u32 %v1602, 2147483648
        %v1607 = vxor.u32 %v1603, 2147483648
        %v1608 = vmul.f32 %v1604, 1.442695
        %v1609 = vpow.pop %v1608
        %v1610 = vmul.f32 %v1605, 1.442695
        %v1611 = vpow.pop %v1610
        %v1612 = vmul.f32 %v1606, 1.442695
        %v1613 = vpow.pop %v1612
        %v1614 = vmul.f32 %v1607, 1.442695
        %v1615 = vpow.pop %v1614
        %v1616 = vadd.f32 %v1609, 1.0
        %v1617 = vadd.f32 %v1611, 1.0
        %v1618 = vadd.f32 %v1613, 1.0
        %v1619 = vadd.f32 %v1615, 1.0
        %v1620 = vrcp.pop %v1616
        %v1621 = vmul.f32 1.0, %v1620
        %v1622 = vrcp.pop %v1617
        %v1623 = vmul.f32 1.0, %v1622
        %v1624 = vrcp.pop %v1618
        %v1625 = vmul.f32 1.0, %v1624
        %v1626 = vrcp.pop %v1619
        %v1627 = vmul.f32 1.0, %v1626
        %v1628 = vadd.f32 %v1491, %v1164
        %v1629 = vadd.f32 %v1497, %v1164
        %v1630 = vadd.f32 %v1503, %v1164
        %v1631 = vadd.f32 %v1509, %v1164
        %v1632 = vxor.u32 %v1628, 2147483648
        %v1633 = vxor.u32 %v1629, 2147483648
        %v1634 = vxor.u32 %v1630, 2147483648
        %v1635 = vxor.u32 %v1631, 2147483648
        %v1636 = vmul.f32 %v1632, 1.442695
        %v1637 = vpow.pop %v1636
        %v1638 = vmul.f32 %v1633, 1.442695
        %v1639 = vpow.pop %v1638
        %v1640 = vmul.f32 %v1634, 1.442695
        %v1641 = vpow.pop %v1640
        %v1642 = vmul.f32 %v1635, 1.442695
        %v1643 = vpow.pop %v1642
        %v1644 = vadd.f32 %v1637, 1.0
        %v1645 = vadd.f32 %v1639, 1.0
        %v1646 = vadd.f32 %v1641, 1.0
        %v1647 = vadd.f32 %v1643, 1.0
        %v1648 = vrcp.pop %v1644
        %v1649 = vmul.f32 1.0, %v1648
        %v1650 = vrcp.pop %v1645
        %v1651 = vmul.f32 1.0, %v1650
        %v1652 = vrcp.pop %v1646
        %v1653 = vmul.f32 1.0, %v1652
        %v1654 = vrcp.pop %v1647
        %v1655 = vmul.f32 1.0, %v1654
        %v1656 = vadd.f32 %v1578, %v1196
        %v1657 = vadd.f32 %v1584, %v1196
        %v1658 = vadd.f32 %v1590, %v1196
        %v1659 = vadd.f32 %v1596, %v1196
        %v1660 = vadd.f32 %v1580, %v1204
        %v1661 = vadd.f32 %v1586, %v1204
        %v1662 = vadd.f32 %v1592, %v1204
        %v1663 = vadd.f32 %v1598, %v1204
        %v1664 = vsub.f32 1.0, %v1621
        %v1665 = vsub.f32 1.0, %v1623
        %v1666 = vsub.f32 1.0, %v1625
        %v1667 = vsub.f32 1.0, %v1627
        %v1668 = vmul.f32 %v1656, %v1664
        %v1669 = vmul.f32 %v1657, %v1665
        %v1670 = vmul.f32 %v1658, %v1666
        %v1671 = vmul.f32 %v1659, %v1667
        %v1672 = vmul.f32 %v1221, %v1621
        %v1673 = vmul.f32 %v1222, %v1623
        %v1674 = vmul.f32 %v1223, %v1625
        %v1675 = vmul.f32 %v1224, %v1627
        %v1676 = vadd.f32 %v1668, %v1672
        %v1677 = vadd.f32 %v1669, %v1673
        %v1678 = vadd.f32 %v1670, %v1674
        %v1679 = vadd.f32 %v1671, %v1675
        %v1680 = vmul.f32 %v1221, %v1664
        %v1681 = vmul.f32 %v1222, %v1665
        %v1682 = vmul.f32 %v1223, %v1666
        %v1683 = vmul.f32 %v1224, %v1667
        %v1684 = vmul.f32 %v1233, %v1387
        %v1685 = vmul.f32 %v1234, %v1389
        %v1686 = vmul.f32 %v1235, %v1391
        %v1687 = vmul.f32 %v1236, %v1393
        %v1688 = vadd.f32 %v1680, %v1684
        %v1689 = vadd.f32 %v1681, %v1685
        %v1690 = vadd.f32 %v1682, %v1686
        %v1691 = vadd.f32 %v1683, %v1687
        %v1692 = vtanh.pop %v1676
        %v1693 = vtanh.pop %v1677
        %v1694 = vtanh.pop %v1678
        %v1695 = vtanh.pop %v1679
        %v1696 = vmul.f32 %v1692, %v1649
        %v1697 = vmul.f32 %v1693, %v1651
        %v1698 = vmul.f32 %v1694, %v1653
        %v1699 = vmul.f32 %v1695, %v1655
        %v1700 = vtanh.pop %v1688
        %v1701 = vtanh.pop %v1689
        %v1702 = vtanh.pop %v1690
        %v1703 = vtanh.pop %v1691
        %v1704 = vmul.f32 %v1700, %v1415
        %v1705 = vmul.f32 %v1701, %v1417
        %v1706 = vmul.f32 %v1702, %v1419
        %v1707 = vmul.f32 %v1703, %v1421
        %v1708 = vadd.f32 %v1696, %v1704
        %v1709 = vadd.f32 %v1697, %v1705
        %v1710 = vadd.f32 %v1698, %v1706
        %v1711 = vadd.f32 %v1699, %v1707
        %v1712 = vadd.f32 %v1708, %v1660
        %v1713 = vadd.f32 %v1709, %v1661
        %v1714 = vadd.f32 %v1710, %v1662
        %v1715 = vadd.f32 %v1711, %v1663
        %s1716 = scalar_lea.vmem [#allocation11], 128
        %v1717 = vld [vmem:[%s1716] sm:$0xff]
        %v1718 = vld [vmem:[%s1716 + $0x8] sm:$0xff]
        %v1719 = vld [vmem:[%s1716 + $0x10] sm:$0xff]
        %v1720 = vld [vmem:[%s1716 + $0x18] sm:$0xff]
        %v1721 = vld [vmem:[%s1716 + $0x20] sm:$0xff]
        %v1722 = vld [vmem:[%s1716 + $0x28] sm:$0xff]
        %v1723 = vld [vmem:[%s1716 + $0x30] sm:$0xff]
        %v1724 = vld [vmem:[%s1716 + $0x38] sm:$0xff]
        %v1725 = vld [vmem:[%s1716 + $0x40] sm:$0xff]
        %v1726 = vld [vmem:[%s1716 + $0x48] sm:$0xff]
        %v1727 = vld [vmem:[%s1716 + $0x50] sm:$0xff]
        %v1728 = vld [vmem:[%s1716 + $0x58] sm:$0xff]
        %v1729 = vld [vmem:[%s1716 + $0x60] sm:$0xff]
        %v1730 = vld [vmem:[%s1716 + $0x68] sm:$0xff]
        %v1731 = vld [vmem:[%s1716 + $0x70] sm:$0xff]
        %v1732 = vld [vmem:[%s1716 + $0x78] sm:$0xff]
        %1733 = vmatprep.subr.mxu0 0.0
        %1734 = vmatpush1.msra.mxu0 %v1732
        %1735 = vmatprep.subr.mxu0 0.0
        %1736 = vmatpush1.msra.mxu0 %v1731
        %1737 = vmatprep.subr.mxu0 0.0
        %1738 = vmatpush1.msra.mxu0 %v1730
        %1739 = vmatprep.subr.mxu0 0.0
        %1740 = vmatpush1.msra.mxu0 %v1729
        %1741 = vmatprep.subr.mxu0 0.0
        %1742 = vmatpush1.msra.mxu0 %v1728
        %1743 = vmatprep.subr.mxu0 0.0
        %1744 = vmatpush1.msra.mxu0 %v1727
        %1745 = vmatprep.subr.mxu0 0.0
        %1746 = vmatpush1.msra.mxu0 %v1726
        %1747 = vmatprep.subr.mxu0 0.0
        %1748 = vmatpush1.msra.mxu0 %v1725
        %1749 = vmatprep.subr.mxu0 0.0
        %1750 = vmatpush1.msra.mxu0 %v1724
        %1751 = vmatprep.subr.mxu0 0.0
        %1752 = vmatpush1.msra.mxu0 %v1723
        %1753 = vmatprep.subr.mxu0 0.0
        %1754 = vmatpush1.msra.mxu0 %v1722
        %1755 = vmatprep.subr.mxu0 0.0
        %1756 = vmatpush1.msra.mxu0 %v1721
        %1757 = vmatprep.subr.mxu0 0.0
        %1758 = vmatpush1.msra.mxu0 %v1720
        %1759 = vmatprep.subr.mxu0 0.0
        %1760 = vmatpush1.msra.mxu0 %v1719
        %1761 = vmatprep.subr.mxu0 0.0
        %1762 = vmatpush1.msra.mxu0 %v1718
        %1763 = vmatprep.subr.mxu0 0.0
        %1764 = vmatpush1.msra.mxu0 %v1717
        %1765 = vmatprep.subr.mxu0 0.0
        %1766 = vmatpush2.msra.mxu0 0.0
        %1767 = vmatprep.subr.mxu0 0.0
        %1768 = vmatpush2.msra.mxu0 0.0
        %1769 = vmatprep.subr.mxu0 0.0
        %1770 = vmatpush2.msra.mxu0 0.0
        %1771 = vmatprep.subr.mxu0 0.0
        %1772 = vmatpush2.msra.mxu0 0.0
        %1773 = vmatprep.subr.mxu0 0.0
        %1774 = vmatpush2.msra.mxu0 0.0
        %1775 = vmatprep.subr.mxu0 0.0
        %1776 = vmatpush2.msra.mxu0 0.0
        %1777 = vmatprep.subr.mxu0 0.0
        %1778 = vmatpush2.msra.mxu0 0.0
        %1779 = vmatprep.subr.mxu0 0.0
        %1780 = vmatpush2.msra.mxu0 0.0
        %1781 = vmatprep.subr.mxu0 0.0
        %1782 = vmatpush2.msra.mxu0 0.0
        %1783 = vmatprep.subr.mxu0 0.0
        %1784 = vmatpush2.msra.mxu0 0.0
        %1785 = vmatprep.subr.mxu0 0.0
        %1786 = vmatpush2.msra.mxu0 0.0
        %1787 = vmatprep.subr.mxu0 0.0
        %1788 = vmatpush2.msra.mxu0 0.0
        %1789 = vmatprep.subr.mxu0 0.0
        %1790 = vmatpush2.msra.mxu0 0.0
        %1791 = vmatprep.subr.mxu0 0.0
        %1792 = vmatpush2.msra.mxu0 0.0
        %1793 = vmatprep.subr.mxu0 0.0
        %1794 = vmatpush2.msra.mxu0 0.0
        %1795 = vmatprep.subr.mxu0 0.0
        %1796 = vmatpush2.msra.mxu0 0.0
        %1797 = vmatprep.mubr.f32.mxu0 0.0
        %1798 = vmatmul.mubr.f32.gmra.mxu0 %v1712
        %v1799 = vpop.f32.mrf.mxu0
        %v1800 = vadd.f32 0.0, %v1799
        %v1801 = vpop.f32.mrf.mxu0
        %1802 = vmatprep.mubr.f32.mxu0 0.0
        %1803 = vmatmul.mubr.f32.gmra.mxu0 %v1713
        %v1804 = vpop.f32.mrf.mxu0
        %v1805 = vadd.f32 0.0, %v1804
        %v1806 = vpop.f32.mrf.mxu0
        %1807 = vmatprep.mubr.f32.mxu0 0.0
        %1808 = vmatmul.mubr.f32.gmra.mxu0 %v1714
        %v1809 = vpop.f32.mrf.mxu0
        %v1810 = vadd.f32 0.0, %v1809
        %v1811 = vpop.f32.mrf.mxu0
        %1812 = vmatprep.mubr.f32.mxu0 0.0
        %1813 = vmatmul.mubr.f32.gmra.mxu0 %v1715
        %v1814 = vpop.f32.mrf.mxu0
        %v1815 = vadd.f32 0.0, %v1814
        %v1816 = vpop.f32.mrf.mxu0
        %1817 = vdwg.mxu0
        %1818 = vmatprep.subr.mxu0 0.0
        %1819 = vmatpush1.msra.mxu0 %v1276
        %1820 = vmatprep.subr.mxu0 0.0
        %1821 = vmatpush1.msra.mxu0 %v1275
        %1822 = vmatprep.subr.mxu0 0.0
        %1823 = vmatpush1.msra.mxu0 %v1274
        %1824 = vmatprep.subr.mxu0 0.0
        %1825 = vmatpush1.msra.mxu0 %v1273
        %1826 = vmatprep.subr.mxu0 0.0
        %1827 = vmatpush1.msra.mxu0 %v1272
        %1828 = vmatprep.subr.mxu0 0.0
        %1829 = vmatpush1.msra.mxu0 %v1271
        %1830 = vmatprep.subr.mxu0 0.0
        %1831 = vmatpush1.msra.mxu0 %v1270
        %1832 = vmatprep.subr.mxu0 0.0
        %1833 = vmatpush1.msra.mxu0 %v1269
        %1834 = vmatprep.subr.mxu0 0.0
        %1835 = vmatpush1.msra.mxu0 %v1268
        %1836 = vmatprep.subr.mxu0 0.0
        %1837 = vmatpush1.msra.mxu0 %v1267
        %1838 = vmatprep.subr.mxu0 0.0
        %1839 = vmatpush1.msra.mxu0 %v1266
        %1840 = vmatprep.subr.mxu0 0.0
        %1841 = vmatpush1.msra.mxu0 %v1265
        %1842 = vmatprep.subr.mxu0 0.0
        %1843 = vmatpush1.msra.mxu0 %v1264
        %1844 = vmatprep.subr.mxu0 0.0
        %1845 = vmatpush1.msra.mxu0 %v1263
        %1846 = vmatprep.subr.mxu0 0.0
        %1847 = vmatpush1.msra.mxu0 %v1262
        %1848 = vmatprep.subr.mxu0 0.0
        %1849 = vmatpush1.msra.mxu0 %v1261
        %1850 = vmatprep.subr.mxu0 0.0
        %1851 = vmatpush2.msra.mxu0 0.0
        %1852 = vmatprep.subr.mxu0 0.0
        %1853 = vmatpush2.msra.mxu0 0.0
        %1854 = vmatprep.subr.mxu0 0.0
        %1855 = vmatpush2.msra.mxu0 0.0
        %1856 = vmatprep.subr.mxu0 0.0
        %1857 = vmatpush2.msra.mxu0 0.0
        %1858 = vmatprep.subr.mxu0 0.0
        %1859 = vmatpush2.msra.mxu0 0.0
        %1860 = vmatprep.subr.mxu0 0.0
        %1861 = vmatpush2.msra.mxu0 0.0
        %1862 = vmatprep.subr.mxu0 0.0
        %1863 = vmatpush2.msra.mxu0 0.0
        %1864 = vmatprep.subr.mxu0 0.0
        %1865 = vmatpush2.msra.mxu0 0.0
        %1866 = vmatprep.subr.mxu0 0.0
        %1867 = vmatpush2.msra.mxu0 0.0
        %1868 = vmatprep.subr.mxu0 0.0
        %1869 = vmatpush2.msra.mxu0 0.0
        %1870 = vmatprep.subr.mxu0 0.0
        %1871 = vmatpush2.msra.mxu0 0.0
        %1872 = vmatprep.subr.mxu0 0.0
        %1873 = vmatpush2.msra.mxu0 0.0
        %1874 = vmatprep.subr.mxu0 0.0
        %1875 = vmatpush2.msra.mxu0 0.0
        %1876 = vmatprep.subr.mxu0 0.0
        %1877 = vmatpush2.msra.mxu0 0.0
        %1878 = vmatprep.subr.mxu0 0.0
        %1879 = vmatpush2.msra.mxu0 0.0
        %1880 = vmatprep.subr.mxu0 0.0
        %1881 = vmatpush2.msra.mxu0 0.0
        %1882 = vmatprep.mubr.f32.mxu0 0.0
        %1883 = vmatmul.mubr.f32.gmra.mxu0 %v1257
        %v1884 = vpop.f32.mrf.mxu0
        %v1885 = vadd.f32 %v1800, %v1884
        %v1886 = vpop.f32.mrf.mxu0
        %1887 = vmatprep.mubr.f32.mxu0 0.0
        %1888 = vmatmul.mubr.f32.gmra.mxu0 %v1258
        %v1889 = vpop.f32.mrf.mxu0
        %v1890 = vadd.f32 %v1805, %v1889
        %v1891 = vpop.f32.mrf.mxu0
        %1892 = vmatprep.mubr.f32.mxu0 0.0
        %1893 = vmatmul.mubr.f32.gmra.mxu0 %v1259
        %v1894 = vpop.f32.mrf.mxu0
        %v1895 = vadd.f32 %v1810, %v1894
        %v1896 = vpop.f32.mrf.mxu0
        %1897 = vmatprep.mubr.f32.mxu0 0.0
        %1898 = vmatmul.mubr.f32.gmra.mxu0 %v1260
        %v1899 = vpop.f32.mrf.mxu0
        %v1900 = vadd.f32 %v1815, %v1899
        %v1901 = vpop.f32.mrf.mxu0
        %1902 = vdwg.mxu0
        %1903 = vmatprep.subr.mxu0 %v488
        %1904 = vmatpush1.msra.mxu0 %v487
        %1905 = vmatprep.subr.mxu0 %v482
        %1906 = vmatpush1.msra.mxu0 %v481
        %1907 = vmatprep.subr.mxu0 %v476
        %1908 = vmatpush1.msra.mxu0 %v475
        %1909 = vmatprep.subr.mxu0 %v470
        %1910 = vmatpush1.msra.mxu0 %v469
        %1911 = vmatprep.subr.mxu0 %v464
        %1912 = vmatpush1.msra.mxu0 %v463
        %1913 = vmatprep.subr.mxu0 %v458
        %1914 = vmatpush1.msra.mxu0 %v457
        %1915 = vmatprep.subr.mxu0 %v452
        %1916 = vmatpush1.msra.mxu0 %v451
        %1917 = vmatprep.subr.mxu0 %v446
        %1918 = vmatpush1.msra.mxu0 %v445
        %1919 = vmatprep.subr.mxu0 %v440
        %1920 = vmatpush1.msra.mxu0 %v439
        %1921 = vmatprep.subr.mxu0 %v434
        %1922 = vmatpush1.msra.mxu0 %v433
        %1923 = vmatprep.subr.mxu0 %v428
        %1924 = vmatpush1.msra.mxu0 %v427
        %1925 = vmatprep.subr.mxu0 %v422
        %1926 = vmatpush1.msra.mxu0 %v421
        %1927 = vmatprep.subr.mxu0 %v416
        %1928 = vmatpush1.msra.mxu0 %v415
        %1929 = vmatprep.subr.mxu0 %v410
        %1930 = vmatpush1.msra.mxu0 %v409
        %1931 = vmatprep.subr.mxu0 %v404
        %1932 = vmatpush1.msra.mxu0 %v403
        %1933 = vmatprep.subr.mxu0 %v398
        %1934 = vmatpush1.msra.mxu0 %v397
        %1935 = vmatprep.subr.mxu0 0.0
        %1936 = vmatpush2.msra.mxu0 0.0
        %1937 = vmatprep.subr.mxu0 0.0
        %1938 = vmatpush2.msra.mxu0 0.0
        %1939 = vmatprep.subr.mxu0 0.0
        %1940 = vmatpush2.msra.mxu0 0.0
        %1941 = vmatprep.subr.mxu0 0.0
        %1942 = vmatpush2.msra.mxu0 0.0
        %1943 = vmatprep.subr.mxu0 0.0
        %1944 = vmatpush2.msra.mxu0 0.0
        %1945 = vmatprep.subr.mxu0 0.0
        %1946 = vmatpush2.msra.mxu0 0.0
        %1947 = vmatprep.subr.mxu0 0.0
        %1948 = vmatpush2.msra.mxu0 0.0
        %1949 = vmatprep.subr.mxu0 0.0
        %1950 = vmatpush2.msra.mxu0 0.0
        %1951 = vmatprep.subr.mxu0 0.0
        %1952 = vmatpush2.msra.mxu0 0.0
        %1953 = vmatprep.subr.mxu0 0.0
        %1954 = vmatpush2.msra.mxu0 0.0
        %1955 = vmatprep.subr.mxu0 0.0
        %1956 = vmatpush2.msra.mxu0 0.0
        %1957 = vmatprep.subr.mxu0 0.0
        %1958 = vmatpush2.msra.mxu0 0.0
        %1959 = vmatprep.subr.mxu0 0.0
        %1960 = vmatpush2.msra.mxu0 0.0
        %1961 = vmatprep.subr.mxu0 0.0
        %1962 = vmatpush2.msra.mxu0 0.0
        %1963 = vmatprep.subr.mxu0 0.0
        %1964 = vmatpush2.msra.mxu0 0.0
        %1965 = vmatprep.subr.mxu0 0.0
        %1966 = vmatpush2.msra.mxu0 0.0
        %1967 = vmatprep.mubr.f32.mxu0 0.0
        %1968 = vmatmul.mubr.f32.gmra.mxu0 %v1676
        %v1969 = vpop.f32.mrf.mxu0
        %v1970 = vadd.f32 0.0, %v1969
        %v1971 = vpop.f32.mrf.mxu0
        %v1972 = vadd.f32 0.0, %v1971
        %1973 = vmatprep.mubr.f32.mxu0 0.0
        %1974 = vmatmul.mubr.f32.gmra.mxu0 %v1677
        %v1975 = vpop.f32.mrf.mxu0
        %v1976 = vadd.f32 0.0, %v1975
        %v1977 = vpop.f32.mrf.mxu0
        %v1978 = vadd.f32 0.0, %v1977
        %1979 = vmatprep.mubr.f32.mxu0 0.0
        %1980 = vmatmul.mubr.f32.gmra.mxu0 %v1678
        %v1981 = vpop.f32.mrf.mxu0
        %v1982 = vadd.f32 0.0, %v1981
        %v1983 = vpop.f32.mrf.mxu0
        %v1984 = vadd.f32 0.0, %v1983
        %1985 = vmatprep.mubr.f32.mxu0 0.0
        %1986 = vmatmul.mubr.f32.gmra.mxu0 %v1679
        %v1987 = vpop.f32.mrf.mxu0
        %v1988 = vadd.f32 0.0, %v1987
        %v1989 = vpop.f32.mrf.mxu0
        %v1990 = vadd.f32 0.0, %v1989
        %1991 = vdwg.mxu0
        %v1992 = vadd.f32 %v1970, %v593
        %v1993 = vadd.f32 %v1976, %v593
        %v1994 = vadd.f32 %v1982, %v593
        %v1995 = vadd.f32 %v1988, %v593
        %v1996 = vxor.u32 %v1992, 2147483648
        %v1997 = vxor.u32 %v1993, 2147483648
        %v1998 = vxor.u32 %v1994, 2147483648
        %v1999 = vxor.u32 %v1995, 2147483648
        %v2000 = vmul.f32 %v1996, 1.442695
        %v2001 = vpow.pop %v2000
        %v2002 = vmul.f32 %v1997, 1.442695
        %v2003 = vpow.pop %v2002
        %v2004 = vmul.f32 %v1998, 1.442695
        %v2005 = vpow.pop %v2004
        %v2006 = vmul.f32 %v1999, 1.442695
        %v2007 = vpow.pop %v2006
        %v2008 = vadd.f32 %v2001, 1.0
        %v2009 = vadd.f32 %v2003, 1.0
        %v2010 = vadd.f32 %v2005, 1.0
        %v2011 = vadd.f32 %v2007, 1.0
        %v2012 = vrcp.pop %v2008
        %v2013 = vmul.f32 1.0, %v2012
        %v2014 = vrcp.pop %v2009
        %v2015 = vmul.f32 1.0, %v2014
        %v2016 = vrcp.pop %v2010
        %v2017 = vmul.f32 1.0, %v2016
        %v2018 = vrcp.pop %v2011
        %v2019 = vmul.f32 1.0, %v2018
        %v2020 = vadd.f32 %v1972, %v625
        %v2021 = vadd.f32 %v1978, %v625
        %v2022 = vadd.f32 %v1984, %v625
        %v2023 = vadd.f32 %v1990, %v625
        %v2024 = vxor.u32 %v2020, 2147483648
        %v2025 = vxor.u32 %v2021, 2147483648
        %v2026 = vxor.u32 %v2022, 2147483648
        %v2027 = vxor.u32 %v2023, 2147483648
        %v2028 = vmul.f32 %v2024, 1.442695
        %v2029 = vpow.pop %v2028
        %v2030 = vmul.f32 %v2025, 1.442695
        %v2031 = vpow.pop %v2030
        %v2032 = vmul.f32 %v2026, 1.442695
        %v2033 = vpow.pop %v2032
        %v2034 = vmul.f32 %v2027, 1.442695
        %v2035 = vpow.pop %v2034
        %v2036 = vadd.f32 %v2029, 1.0
        %v2037 = vadd.f32 %v2031, 1.0
        %v2038 = vadd.f32 %v2033, 1.0
        %v2039 = vadd.f32 %v2035, 1.0
        %v2040 = vrcp.pop %v2036
        %v2041 = vmul.f32 1.0, %v2040
        %v2042 = vrcp.pop %v2037
        %v2043 = vmul.f32 1.0, %v2042
        %v2044 = vrcp.pop %v2038
        %v2045 = vmul.f32 1.0, %v2044
        %v2046 = vrcp.pop %v2039
        %v2047 = vmul.f32 1.0, %v2046
        %2048 = vmatprep.subr.mxu0 %v490
        %2049 = vmatpush1.msra.mxu0 %v489
        %2050 = vmatprep.subr.mxu0 %v484
        %2051 = vmatpush1.msra.mxu0 %v483
        %2052 = vmatprep.subr.mxu0 %v478
        %2053 = vmatpush1.msra.mxu0 %v477
        %2054 = vmatprep.subr.mxu0 %v472
        %2055 = vmatpush1.msra.mxu0 %v471
        %2056 = vmatprep.subr.mxu0 %v466
        %2057 = vmatpush1.msra.mxu0 %v465
        %2058 = vmatprep.subr.mxu0 %v460
        %2059 = vmatpush1.msra.mxu0 %v459
        %2060 = vmatprep.subr.mxu0 %v454
        %2061 = vmatpush1.msra.mxu0 %v453
        %2062 = vmatprep.subr.mxu0 %v448
        %2063 = vmatpush1.msra.mxu0 %v447
        %2064 = vmatprep.subr.mxu0 %v442
        %2065 = vmatpush1.msra.mxu0 %v441
        %2066 = vmatprep.subr.mxu0 %v436
        %2067 = vmatpush1.msra.mxu0 %v435
        %2068 = vmatprep.subr.mxu0 %v430
        %2069 = vmatpush1.msra.mxu0 %v429
        %2070 = vmatprep.subr.mxu0 %v424
        %2071 = vmatpush1.msra.mxu0 %v423
        %2072 = vmatprep.subr.mxu0 %v418
        %2073 = vmatpush1.msra.mxu0 %v417
        %2074 = vmatprep.subr.mxu0 %v412
        %2075 = vmatpush1.msra.mxu0 %v411
        %2076 = vmatprep.subr.mxu0 %v406
        %2077 = vmatpush1.msra.mxu0 %v405
        %2078 = vmatprep.subr.mxu0 %v400
        %2079 = vmatpush1.msra.mxu0 %v399
        %2080 = vmatprep.subr.mxu0 0.0
        %2081 = vmatpush2.msra.mxu0 0.0
        %2082 = vmatprep.subr.mxu0 0.0
        %2083 = vmatpush2.msra.mxu0 0.0
        %2084 = vmatprep.subr.mxu0 0.0
        %2085 = vmatpush2.msra.mxu0 0.0
        %2086 = vmatprep.subr.mxu0 0.0
        %2087 = vmatpush2.msra.mxu0 0.0
        %2088 = vmatprep.subr.mxu0 0.0
        %2089 = vmatpush2.msra.mxu0 0.0
        %2090 = vmatprep.subr.mxu0 0.0
        %2091 = vmatpush2.msra.mxu0 0.0
        %2092 = vmatprep.subr.mxu0 0.0
        %2093 = vmatpush2.msra.mxu0 0.0
        %2094 = vmatprep.subr.mxu0 0.0
        %2095 = vmatpush2.msra.mxu0 0.0
        %2096 = vmatprep.subr.mxu0 0.0
        %2097 = vmatpush2.msra.mxu0 0.0
        %2098 = vmatprep.subr.mxu0 0.0
        %2099 = vmatpush2.msra.mxu0 0.0
        %2100 = vmatprep.subr.mxu0 0.0
        %2101 = vmatpush2.msra.mxu0 0.0
        %2102 = vmatprep.subr.mxu0 0.0
        %2103 = vmatpush2.msra.mxu0 0.0
        %2104 = vmatprep.subr.mxu0 0.0
        %2105 = vmatpush2.msra.mxu0 0.0
        %2106 = vmatprep.subr.mxu0 0.0
        %2107 = vmatpush2.msra.mxu0 0.0
        %2108 = vmatprep.subr.mxu0 0.0
        %2109 = vmatpush2.msra.mxu0 0.0
        %2110 = vmatprep.subr.mxu0 0.0
        %2111 = vmatpush2.msra.mxu0 0.0
        %2112 = vmatprep.mubr.f32.mxu0 0.0
        %2113 = vmatmul.mubr.f32.gmra.mxu0 %v1712
        %v2114 = vpop.f32.mrf.mxu0
        %v2115 = vadd.f32 0.0, %v2114
        %v2116 = vpop.f32.mrf.mxu0
        %v2117 = vadd.f32 0.0, %v2116
        %2118 = vmatprep.mubr.f32.mxu0 0.0
        %2119 = vmatmul.mubr.f32.gmra.mxu0 %v1713
        %v2120 = vpop.f32.mrf.mxu0
        %v2121 = vadd.f32 0.0, %v2120
        %v2122 = vpop.f32.mrf.mxu0
        %v2123 = vadd.f32 0.0, %v2122
        %2124 = vmatprep.mubr.f32.mxu0 0.0
        %2125 = vmatmul.mubr.f32.gmra.mxu0 %v1714
        %v2126 = vpop.f32.mrf.mxu0
        %v2127 = vadd.f32 0.0, %v2126
        %v2128 = vpop.f32.mrf.mxu0
        %v2129 = vadd.f32 0.0, %v2128
        %2130 = vmatprep.mubr.f32.mxu0 0.0
        %2131 = vmatmul.mubr.f32.gmra.mxu0 %v1715
        %v2132 = vpop.f32.mrf.mxu0
        %v2133 = vadd.f32 0.0, %v2132
        %v2134 = vpop.f32.mrf.mxu0
        %v2135 = vadd.f32 0.0, %v2134
        %2136 = vdwg.mxu0
        %2137 = vmatprep.subr.mxu0 %v492
        %2138 = vmatpush1.msra.mxu0 %v491
        %2139 = vmatprep.subr.mxu0 %v486
        %2140 = vmatpush1.msra.mxu0 %v485
        %2141 = vmatprep.subr.mxu0 %v480
        %2142 = vmatpush1.msra.mxu0 %v479
        %2143 = vmatprep.subr.mxu0 %v474
        %2144 = vmatpush1.msra.mxu0 %v473
        %2145 = vmatprep.subr.mxu0 %v468
        %2146 = vmatpush1.msra.mxu0 %v467
        %2147 = vmatprep.subr.mxu0 %v462
        %2148 = vmatpush1.msra.mxu0 %v461
        %2149 = vmatprep.subr.mxu0 %v456
        %2150 = vmatpush1.msra.mxu0 %v455
        %2151 = vmatprep.subr.mxu0 %v450
        %2152 = vmatpush1.msra.mxu0 %v449
        %2153 = vmatprep.subr.mxu0 %v444
        %2154 = vmatpush1.msra.mxu0 %v443
        %2155 = vmatprep.subr.mxu0 %v438
        %2156 = vmatpush1.msra.mxu0 %v437
        %2157 = vmatprep.subr.mxu0 %v432
        %2158 = vmatpush1.msra.mxu0 %v431
        %2159 = vmatprep.subr.mxu0 %v426
        %2160 = vmatpush1.msra.mxu0 %v425
        %2161 = vmatprep.subr.mxu0 %v420
        %2162 = vmatpush1.msra.mxu0 %v419
        %2163 = vmatprep.subr.mxu0 %v414
        %2164 = vmatpush1.msra.mxu0 %v413
        %2165 = vmatprep.subr.mxu0 %v408
        %2166 = vmatpush1.msra.mxu0 %v407
        %2167 = vmatprep.subr.mxu0 %v402
        %2168 = vmatpush1.msra.mxu0 %v401
        %2169 = vmatprep.subr.mxu0 0.0
        %2170 = vmatpush2.msra.mxu0 0.0
        %2171 = vmatprep.subr.mxu0 0.0
        %2172 = vmatpush2.msra.mxu0 0.0
        %2173 = vmatprep.subr.mxu0 0.0
        %2174 = vmatpush2.msra.mxu0 0.0
        %2175 = vmatprep.subr.mxu0 0.0
        %2176 = vmatpush2.msra.mxu0 0.0
        %2177 = vmatprep.subr.mxu0 0.0
        %2178 = vmatpush2.msra.mxu0 0.0
        %2179 = vmatprep.subr.mxu0 0.0
        %2180 = vmatpush2.msra.mxu0 0.0
        %2181 = vmatprep.subr.mxu0 0.0
        %2182 = vmatpush2.msra.mxu0 0.0
        %2183 = vmatprep.subr.mxu0 0.0
        %2184 = vmatpush2.msra.mxu0 0.0
        %2185 = vmatprep.subr.mxu0 0.0
        %2186 = vmatpush2.msra.mxu0 0.0
        %2187 = vmatprep.subr.mxu0 0.0
        %2188 = vmatpush2.msra.mxu0 0.0
        %2189 = vmatprep.subr.mxu0 0.0
        %2190 = vmatpush2.msra.mxu0 0.0
        %2191 = vmatprep.subr.mxu0 0.0
        %2192 = vmatpush2.msra.mxu0 0.0
        %2193 = vmatprep.subr.mxu0 0.0
        %2194 = vmatpush2.msra.mxu0 0.0
        %2195 = vmatprep.subr.mxu0 0.0
        %2196 = vmatpush2.msra.mxu0 0.0
        %2197 = vmatprep.subr.mxu0 0.0
        %2198 = vmatpush2.msra.mxu0 0.0
        %2199 = vmatprep.subr.mxu0 0.0
        %2200 = vmatpush2.msra.mxu0 0.0
        %2201 = vmatprep.mubr.f32.mxu0 0.0
        %2202 = vmatmul.mubr.f32.gmra.mxu0 %v1712
        %v2203 = vpop.f32.mrf.mxu0
        %v2204 = vadd.f32 0.0, %v2203
        %v2205 = vpop.f32.mrf.mxu0
        %v2206 = vadd.f32 0.0, %v2205
        %2207 = vmatprep.mubr.f32.mxu0 0.0
        %2208 = vmatmul.mubr.f32.gmra.mxu0 %v1713
        %v2209 = vpop.f32.mrf.mxu0
        %v2210 = vadd.f32 0.0, %v2209
        %v2211 = vpop.f32.mrf.mxu0
        %v2212 = vadd.f32 0.0, %v2211
        %2213 = vmatprep.mubr.f32.mxu0 0.0
        %2214 = vmatmul.mubr.f32.gmra.mxu0 %v1714
        %v2215 = vpop.f32.mrf.mxu0
        %v2216 = vadd.f32 0.0, %v2215
        %v2217 = vpop.f32.mrf.mxu0
        %v2218 = vadd.f32 0.0, %v2217
        %2219 = vmatprep.mubr.f32.mxu0 0.0
        %2220 = vmatmul.mubr.f32.gmra.mxu0 %v1715
        %v2221 = vpop.f32.mrf.mxu0
        %v2222 = vadd.f32 0.0, %v2221
        %v2223 = vpop.f32.mrf.mxu0
        %v2224 = vadd.f32 0.0, %v2223
        %2225 = vdwg.mxu0
        %v2226 = vadd.f32 %v2115, %v1132
        %v2227 = vadd.f32 %v2121, %v1132
        %v2228 = vadd.f32 %v2127, %v1132
        %v2229 = vadd.f32 %v2133, %v1132
        %v2230 = vxor.u32 %v2226, 2147483648
        %v2231 = vxor.u32 %v2227, 2147483648
        %v2232 = vxor.u32 %v2228, 2147483648
        %v2233 = vxor.u32 %v2229, 2147483648
        %v2234 = vmul.f32 %v2230, 1.442695
        %v2235 = vpow.pop %v2234
        %v2236 = vmul.f32 %v2231, 1.442695
        %v2237 = vpow.pop %v2236
        %v2238 = vmul.f32 %v2232, 1.442695
        %v2239 = vpow.pop %v2238
        %v2240 = vmul.f32 %v2233, 1.442695
        %v2241 = vpow.pop %v2240
        %v2242 = vadd.f32 %v2235, 1.0
        %v2243 = vadd.f32 %v2237, 1.0
        %v2244 = vadd.f32 %v2239, 1.0
        %v2245 = vadd.f32 %v2241, 1.0
        %v2246 = vrcp.pop %v2242
        %v2247 = vmul.f32 1.0, %v2246
        %v2248 = vrcp.pop %v2243
        %v2249 = vmul.f32 1.0, %v2248
        %v2250 = vrcp.pop %v2244
        %v2251 = vmul.f32 1.0, %v2250
        %v2252 = vrcp.pop %v2245
        %v2253 = vmul.f32 1.0, %v2252
        %v2254 = vadd.f32 %v2117, %v1164
        %v2255 = vadd.f32 %v2123, %v1164
        %v2256 = vadd.f32 %v2129, %v1164
        %v2257 = vadd.f32 %v2135, %v1164
        %v2258 = vxor.u32 %v2254, 2147483648
        %v2259 = vxor.u32 %v2255, 2147483648
        %v2260 = vxor.u32 %v2256, 2147483648
        %v2261 = vxor.u32 %v2257, 2147483648
        %v2262 = vmul.f32 %v2258, 1.442695
        %v2263 = vpow.pop %v2262
        %v2264 = vmul.f32 %v2259, 1.442695
        %v2265 = vpow.pop %v2264
        %v2266 = vmul.f32 %v2260, 1.442695
        %v2267 = vpow.pop %v2266
        %v2268 = vmul.f32 %v2261, 1.442695
        %v2269 = vpow.pop %v2268
        %v2270 = vadd.f32 %v2263, 1.0
        %v2271 = vadd.f32 %v2265, 1.0
        %v2272 = vadd.f32 %v2267, 1.0
        %v2273 = vadd.f32 %v2269, 1.0
        %v2274 = vrcp.pop %v2270
        %v2275 = vmul.f32 1.0, %v2274
        %v2276 = vrcp.pop %v2271
        %v2277 = vmul.f32 1.0, %v2276
        %v2278 = vrcp.pop %v2272
        %v2279 = vmul.f32 1.0, %v2278
        %v2280 = vrcp.pop %v2273
        %v2281 = vmul.f32 1.0, %v2280
        %v2282 = vadd.f32 %v2204, %v1196
        %v2283 = vadd.f32 %v2210, %v1196
        %v2284 = vadd.f32 %v2216, %v1196
        %v2285 = vadd.f32 %v2222, %v1196
        %v2286 = vadd.f32 %v2206, %v1204
        %v2287 = vadd.f32 %v2212, %v1204
        %v2288 = vadd.f32 %v2218, %v1204
        %v2289 = vadd.f32 %v2224, %v1204
        %v2290 = vsub.f32 1.0, %v2247
        %v2291 = vsub.f32 1.0, %v2249
        %v2292 = vsub.f32 1.0, %v2251
        %v2293 = vsub.f32 1.0, %v2253
        %v2294 = vmul.f32 %v2282, %v2290
        %v2295 = vmul.f32 %v2283, %v2291
        %v2296 = vmul.f32 %v2284, %v2292
        %v2297 = vmul.f32 %v2285, %v2293
        %v2298 = vmul.f32 %v1676, %v2247
        %v2299 = vmul.f32 %v1677, %v2249
        %v2300 = vmul.f32 %v1678, %v2251
        %v2301 = vmul.f32 %v1679, %v2253
        %v2302 = vadd.f32 %v2294, %v2298
        %v2303 = vadd.f32 %v2295, %v2299
        %v2304 = vadd.f32 %v2296, %v2300
        %v2305 = vadd.f32 %v2297, %v2301
        %v2306 = vmul.f32 %v1676, %v2290
        %v2307 = vmul.f32 %v1677, %v2291
        %v2308 = vmul.f32 %v1678, %v2292
        %v2309 = vmul.f32 %v1679, %v2293
        %v2310 = vmul.f32 %v1688, %v2013
        %v2311 = vmul.f32 %v1689, %v2015
        %v2312 = vmul.f32 %v1690, %v2017
        %v2313 = vmul.f32 %v1691, %v2019
        %v2314 = vadd.f32 %v2306, %v2310
        %v2315 = vadd.f32 %v2307, %v2311
        %v2316 = vadd.f32 %v2308, %v2312
        %v2317 = vadd.f32 %v2309, %v2313
        %v2318 = vtanh.pop %v2302
        %v2319 = vtanh.pop %v2303
        %v2320 = vtanh.pop %v2304
        %v2321 = vtanh.pop %v2305
        %v2322 = vmul.f32 %v2318, %v2275
        %v2323 = vmul.f32 %v2319, %v2277
        %v2324 = vmul.f32 %v2320, %v2279
        %v2325 = vmul.f32 %v2321, %v2281
        %v2326 = vtanh.pop %v2314
        %v2327 = vtanh.pop %v2315
        %v2328 = vtanh.pop %v2316
        %v2329 = vtanh.pop %v2317
        %v2330 = vmul.f32 %v2326, %v2041
        %v2331 = vmul.f32 %v2327, %v2043
        %v2332 = vmul.f32 %v2328, %v2045
        %v2333 = vmul.f32 %v2329, %v2047
        %v2334 = vadd.f32 %v2322, %v2330
        %v2335 = vadd.f32 %v2323, %v2331
        %v2336 = vadd.f32 %v2324, %v2332
        %v2337 = vadd.f32 %v2325, %v2333
        %v2338 = vadd.f32 %v2334, %v2286
        %v2339 = vadd.f32 %v2335, %v2287
        %v2340 = vadd.f32 %v2336, %v2288
        %v2341 = vadd.f32 %v2337, %v2289
        %s2342 = scalar_lea.vmem [#allocation11], 256
        %v2343 = vld [vmem:[%s2342] sm:$0xff]
        %v2344 = vld [vmem:[%s2342 + $0x8] sm:$0xff]
        %v2345 = vld [vmem:[%s2342 + $0x10] sm:$0xff]
        %v2346 = vld [vmem:[%s2342 + $0x18] sm:$0xff]
        %v2347 = vld [vmem:[%s2342 + $0x20] sm:$0xff]
        %v2348 = vld [vmem:[%s2342 + $0x28] sm:$0xff]
        %v2349 = vld [vmem:[%s2342 + $0x30] sm:$0xff]
        %v2350 = vld [vmem:[%s2342 + $0x38] sm:$0xff]
        %v2351 = vld [vmem:[%s2342 + $0x40] sm:$0xff]
        %v2352 = vld [vmem:[%s2342 + $0x48] sm:$0xff]
        %v2353 = vld [vmem:[%s2342 + $0x50] sm:$0xff]
        %v2354 = vld [vmem:[%s2342 + $0x58] sm:$0xff]
        %v2355 = vld [vmem:[%s2342 + $0x60] sm:$0xff]
        %v2356 = vld [vmem:[%s2342 + $0x68] sm:$0xff]
        %v2357 = vld [vmem:[%s2342 + $0x70] sm:$0xff]
        %v2358 = vld [vmem:[%s2342 + $0x78] sm:$0xff]
        %2359 = vmatprep.subr.mxu0 0.0
        %2360 = vmatpush1.msra.mxu0 %v2358
        %2361 = vmatprep.subr.mxu0 0.0
        %2362 = vmatpush1.msra.mxu0 %v2357
        %2363 = vmatprep.subr.mxu0 0.0
        %2364 = vmatpush1.msra.mxu0 %v2356
        %2365 = vmatprep.subr.mxu0 0.0
        %2366 = vmatpush1.msra.mxu0 %v2355
        %2367 = vmatprep.subr.mxu0 0.0
        %2368 = vmatpush1.msra.mxu0 %v2354
        %2369 = vmatprep.subr.mxu0 0.0
        %2370 = vmatpush1.msra.mxu0 %v2353
        %2371 = vmatprep.subr.mxu0 0.0
        %2372 = vmatpush1.msra.mxu0 %v2352
        %2373 = vmatprep.subr.mxu0 0.0
        %2374 = vmatpush1.msra.mxu0 %v2351
        %2375 = vmatprep.subr.mxu0 0.0
        %2376 = vmatpush1.msra.mxu0 %v2350
        %2377 = vmatprep.subr.mxu0 0.0
        %2378 = vmatpush1.msra.mxu0 %v2349
        %2379 = vmatprep.subr.mxu0 0.0
        %2380 = vmatpush1.msra.mxu0 %v2348
        %2381 = vmatprep.subr.mxu0 0.0
        %2382 = vmatpush1.msra.mxu0 %v2347
        %2383 = vmatprep.subr.mxu0 0.0
        %2384 = vmatpush1.msra.mxu0 %v2346
        %2385 = vmatprep.subr.mxu0 0.0
        %2386 = vmatpush1.msra.mxu0 %v2345
        %2387 = vmatprep.subr.mxu0 0.0
        %2388 = vmatpush1.msra.mxu0 %v2344
        %2389 = vmatprep.subr.mxu0 0.0
        %2390 = vmatpush1.msra.mxu0 %v2343
        %2391 = vmatprep.subr.mxu0 0.0
        %2392 = vmatpush2.msra.mxu0 0.0
        %2393 = vmatprep.subr.mxu0 0.0
        %2394 = vmatpush2.msra.mxu0 0.0
        %2395 = vmatprep.subr.mxu0 0.0
        %2396 = vmatpush2.msra.mxu0 0.0
        %2397 = vmatprep.subr.mxu0 0.0
        %2398 = vmatpush2.msra.mxu0 0.0
        %2399 = vmatprep.subr.mxu0 0.0
        %2400 = vmatpush2.msra.mxu0 0.0
        %2401 = vmatprep.subr.mxu0 0.0
        %2402 = vmatpush2.msra.mxu0 0.0
        %2403 = vmatprep.subr.mxu0 0.0
        %2404 = vmatpush2.msra.mxu0 0.0
        %2405 = vmatprep.subr.mxu0 0.0
        %2406 = vmatpush2.msra.mxu0 0.0
        %2407 = vmatprep.subr.mxu0 0.0
        %2408 = vmatpush2.msra.mxu0 0.0
        %2409 = vmatprep.subr.mxu0 0.0
        %2410 = vmatpush2.msra.mxu0 0.0
        %2411 = vmatprep.subr.mxu0 0.0
        %2412 = vmatpush2.msra.mxu0 0.0
        %2413 = vmatprep.subr.mxu0 0.0
        %2414 = vmatpush2.msra.mxu0 0.0
        %2415 = vmatprep.subr.mxu0 0.0
        %2416 = vmatpush2.msra.mxu0 0.0
        %2417 = vmatprep.subr.mxu0 0.0
        %2418 = vmatpush2.msra.mxu0 0.0
        %2419 = vmatprep.subr.mxu0 0.0
        %2420 = vmatpush2.msra.mxu0 0.0
        %2421 = vmatprep.subr.mxu0 0.0
        %2422 = vmatpush2.msra.mxu0 0.0
        %2423 = vmatprep.mubr.f32.mxu0 0.0
        %2424 = vmatmul.mubr.f32.gmra.mxu0 %v2338
        %v2425 = vpop.f32.mrf.mxu0
        %v2426 = vadd.f32 0.0, %v2425
        %v2427 = vpop.f32.mrf.mxu0
        %2428 = vmatprep.mubr.f32.mxu0 0.0
        %2429 = vmatmul.mubr.f32.gmra.mxu0 %v2339
        %v2430 = vpop.f32.mrf.mxu0
        %v2431 = vadd.f32 0.0, %v2430
        %v2432 = vpop.f32.mrf.mxu0
        %2433 = vmatprep.mubr.f32.mxu0 0.0
        %2434 = vmatmul.mubr.f32.gmra.mxu0 %v2340
        %v2435 = vpop.f32.mrf.mxu0
        %v2436 = vadd.f32 0.0, %v2435
        %v2437 = vpop.f32.mrf.mxu0
        %2438 = vmatprep.mubr.f32.mxu0 0.0
        %2439 = vmatmul.mubr.f32.gmra.mxu0 %v2341
        %v2440 = vpop.f32.mrf.mxu0
        %v2441 = vadd.f32 0.0, %v2440
        %v2442 = vpop.f32.mrf.mxu0
        %2443 = vdwg.mxu0
        %v2444 = vadd.f32 %v1885, %v2426
        %v2445 = vadd.f32 %v1890, %v2431
        %v2446 = vadd.f32 %v1895, %v2436
        %v2447 = vadd.f32 %v1900, %v2441
        %2448 = vmatprep.subr.mxu0 %v488
        %2449 = vmatpush1.msra.mxu0 %v487
        %2450 = vmatprep.subr.mxu0 %v482
        %2451 = vmatpush1.msra.mxu0 %v481
        %2452 = vmatprep.subr.mxu0 %v476
        %2453 = vmatpush1.msra.mxu0 %v475
        %2454 = vmatprep.subr.mxu0 %v470
        %2455 = vmatpush1.msra.mxu0 %v469
        %2456 = vmatprep.subr.mxu0 %v464
        %2457 = vmatpush1.msra.mxu0 %v463
        %2458 = vmatprep.subr.mxu0 %v458
        %2459 = vmatpush1.msra.mxu0 %v457
        %2460 = vmatprep.subr.mxu0 %v452
        %2461 = vmatpush1.msra.mxu0 %v451
        %2462 = vmatprep.subr.mxu0 %v446
        %2463 = vmatpush1.msra.mxu0 %v445
        %2464 = vmatprep.subr.mxu0 %v440
        %2465 = vmatpush1.msra.mxu0 %v439
        %2466 = vmatprep.subr.mxu0 %v434
        %2467 = vmatpush1.msra.mxu0 %v433
        %2468 = vmatprep.subr.mxu0 %v428
        %2469 = vmatpush1.msra.mxu0 %v427
        %2470 = vmatprep.subr.mxu0 %v422
        %2471 = vmatpush1.msra.mxu0 %v421
        %2472 = vmatprep.subr.mxu0 %v416
        %2473 = vmatpush1.msra.mxu0 %v415
        %2474 = vmatprep.subr.mxu0 %v410
        %2475 = vmatpush1.msra.mxu0 %v409
        %2476 = vmatprep.subr.mxu0 %v404
        %2477 = vmatpush1.msra.mxu0 %v403
        %2478 = vmatprep.subr.mxu0 %v398
        %2479 = vmatpush1.msra.mxu0 %v397
        %2480 = vmatprep.subr.mxu0 0.0
        %2481 = vmatpush2.msra.mxu0 0.0
        %2482 = vmatprep.subr.mxu0 0.0
        %2483 = vmatpush2.msra.mxu0 0.0
        %2484 = vmatprep.subr.mxu0 0.0
        %2485 = vmatpush2.msra.mxu0 0.0
        %2486 = vmatprep.subr.mxu0 0.0
        %2487 = vmatpush2.msra.mxu0 0.0
        %2488 = vmatprep.subr.mxu0 0.0
        %2489 = vmatpush2.msra.mxu0 0.0
        %2490 = vmatprep.subr.mxu0 0.0
        %2491 = vmatpush2.msra.mxu0 0.0
        %2492 = vmatprep.subr.mxu0 0.0
        %2493 = vmatpush2.msra.mxu0 0.0
        %2494 = vmatprep.subr.mxu0 0.0
        %2495 = vmatpush2.msra.mxu0 0.0
        %2496 = vmatprep.subr.mxu0 0.0
        %2497 = vmatpush2.msra.mxu0 0.0
        %2498 = vmatprep.subr.mxu0 0.0
        %2499 = vmatpush2.msra.mxu0 0.0
        %2500 = vmatprep.subr.mxu0 0.0
        %2501 = vmatpush2.msra.mxu0 0.0
        %2502 = vmatprep.subr.mxu0 0.0
        %2503 = vmatpush2.msra.mxu0 0.0
        %2504 = vmatprep.subr.mxu0 0.0
        %2505 = vmatpush2.msra.mxu0 0.0
        %2506 = vmatprep.subr.mxu0 0.0
        %2507 = vmatpush2.msra.mxu0 0.0
        %2508 = vmatprep.subr.mxu0 0.0
        %2509 = vmatpush2.msra.mxu0 0.0
        %2510 = vmatprep.subr.mxu0 0.0
        %2511 = vmatpush2.msra.mxu0 0.0
        %2512 = vmatprep.mubr.f32.mxu0 0.0
        %2513 = vmatmul.mubr.f32.gmra.mxu0 %v2302
        %v2514 = vpop.f32.mrf.mxu0
        %v2515 = vadd.f32 0.0, %v2514
        %v2516 = vpop.f32.mrf.mxu0
        %v2517 = vadd.f32 0.0, %v2516
        %2518 = vmatprep.mubr.f32.mxu0 0.0
        %2519 = vmatmul.mubr.f32.gmra.mxu0 %v2303
        %v2520 = vpop.f32.mrf.mxu0
        %v2521 = vadd.f32 0.0, %v2520
        %v2522 = vpop.f32.mrf.mxu0
        %v2523 = vadd.f32 0.0, %v2522
        %2524 = vmatprep.mubr.f32.mxu0 0.0
        %2525 = vmatmul.mubr.f32.gmra.mxu0 %v2304
        %v2526 = vpop.f32.mrf.mxu0
        %v2527 = vadd.f32 0.0, %v2526
        %v2528 = vpop.f32.mrf.mxu0
        %v2529 = vadd.f32 0.0, %v2528
        %2530 = vmatprep.mubr.f32.mxu0 0.0
        %2531 = vmatmul.mubr.f32.gmra.mxu0 %v2305
        %v2532 = vpop.f32.mrf.mxu0
        %v2533 = vadd.f32 0.0, %v2532
        %v2534 = vpop.f32.mrf.mxu0
        %v2535 = vadd.f32 0.0, %v2534
        %2536 = vdwg.mxu0
        %v2537 = vadd.f32 %v2515, %v593
        %v2538 = vadd.f32 %v2521, %v593
        %v2539 = vadd.f32 %v2527, %v593
        %v2540 = vadd.f32 %v2533, %v593
        %v2541 = vxor.u32 %v2537, 2147483648
        %v2542 = vxor.u32 %v2538, 2147483648
        %v2543 = vxor.u32 %v2539, 2147483648
        %v2544 = vxor.u32 %v2540, 2147483648
        %v2545 = vmul.f32 %v2541, 1.442695
        %v2546 = vpow.pop %v2545
        %v2547 = vmul.f32 %v2542, 1.442695
        %v2548 = vpow.pop %v2547
        %v2549 = vmul.f32 %v2543, 1.442695
        %v2550 = vpow.pop %v2549
        %v2551 = vmul.f32 %v2544, 1.442695
        %v2552 = vpow.pop %v2551
        %v2553 = vadd.f32 %v2546, 1.0
        %v2554 = vadd.f32 %v2548, 1.0
        %v2555 = vadd.f32 %v2550, 1.0
        %v2556 = vadd.f32 %v2552, 1.0
        %v2557 = vrcp.pop %v2553
        %v2558 = vmul.f32 1.0, %v2557
        %v2559 = vrcp.pop %v2554
        %v2560 = vmul.f32 1.0, %v2559
        %v2561 = vrcp.pop %v2555
        %v2562 = vmul.f32 1.0, %v2561
        %v2563 = vrcp.pop %v2556
        %v2564 = vmul.f32 1.0, %v2563
        %v2565 = vadd.f32 %v2517, %v625
        %v2566 = vadd.f32 %v2523, %v625
        %v2567 = vadd.f32 %v2529, %v625
        %v2568 = vadd.f32 %v2535, %v625
        %v2569 = vxor.u32 %v2565, 2147483648
        %v2570 = vxor.u32 %v2566, 2147483648
        %v2571 = vxor.u32 %v2567, 2147483648
        %v2572 = vxor.u32 %v2568, 2147483648
        %v2573 = vmul.f32 %v2569, 1.442695
        %v2574 = vpow.pop %v2573
        %v2575 = vmul.f32 %v2570, 1.442695
        %v2576 = vpow.pop %v2575
        %v2577 = vmul.f32 %v2571, 1.442695
        %v2578 = vpow.pop %v2577
        %v2579 = vmul.f32 %v2572, 1.442695
        %v2580 = vpow.pop %v2579
        %v2581 = vadd.f32 %v2574, 1.0
        %v2582 = vadd.f32 %v2576, 1.0
        %v2583 = vadd.f32 %v2578, 1.0
        %v2584 = vadd.f32 %v2580, 1.0
        %v2585 = vrcp.pop %v2581
        %v2586 = vmul.f32 1.0, %v2585
        %v2587 = vrcp.pop %v2582
        %v2588 = vmul.f32 1.0, %v2587
        %v2589 = vrcp.pop %v2583
        %v2590 = vmul.f32 1.0, %v2589
        %v2591 = vrcp.pop %v2584
        %v2592 = vmul.f32 1.0, %v2591
        %2593 = vmatprep.subr.mxu0 %v490
        %2594 = vmatpush1.msra.mxu0 %v489
        %2595 = vmatprep.subr.mxu0 %v484
        %2596 = vmatpush1.msra.mxu0 %v483
        %2597 = vmatprep.subr.mxu0 %v478
        %2598 = vmatpush1.msra.mxu0 %v477
        %2599 = vmatprep.subr.mxu0 %v472
        %2600 = vmatpush1.msra.mxu0 %v471
        %2601 = vmatprep.subr.mxu0 %v466
        %2602 = vmatpush1.msra.mxu0 %v465
        %2603 = vmatprep.subr.mxu0 %v460
        %2604 = vmatpush1.msra.mxu0 %v459
        %2605 = vmatprep.subr.mxu0 %v454
        %2606 = vmatpush1.msra.mxu0 %v453
        %2607 = vmatprep.subr.mxu0 %v448
        %2608 = vmatpush1.msra.mxu0 %v447
        %2609 = vmatprep.subr.mxu0 %v442
        %2610 = vmatpush1.msra.mxu0 %v441
        %2611 = vmatprep.subr.mxu0 %v436
        %2612 = vmatpush1.msra.mxu0 %v435
        %2613 = vmatprep.subr.mxu0 %v430
        %2614 = vmatpush1.msra.mxu0 %v429
        %2615 = vmatprep.subr.mxu0 %v424
        %2616 = vmatpush1.msra.mxu0 %v423
        %2617 = vmatprep.subr.mxu0 %v418
        %2618 = vmatpush1.msra.mxu0 %v417
        %2619 = vmatprep.subr.mxu0 %v412
        %2620 = vmatpush1.msra.mxu0 %v411
        %2621 = vmatprep.subr.mxu0 %v406
        %2622 = vmatpush1.msra.mxu0 %v405
        %2623 = vmatprep.subr.mxu0 %v400
        %2624 = vmatpush1.msra.mxu0 %v399
        %2625 = vmatprep.subr.mxu0 0.0
        %2626 = vmatpush2.msra.mxu0 0.0
        %2627 = vmatprep.subr.mxu0 0.0
        %2628 = vmatpush2.msra.mxu0 0.0
        %2629 = vmatprep.subr.mxu0 0.0
        %2630 = vmatpush2.msra.mxu0 0.0
        %2631 = vmatprep.subr.mxu0 0.0
        %2632 = vmatpush2.msra.mxu0 0.0
        %2633 = vmatprep.subr.mxu0 0.0
        %2634 = vmatpush2.msra.mxu0 0.0
        %2635 = vmatprep.subr.mxu0 0.0
        %2636 = vmatpush2.msra.mxu0 0.0
        %2637 = vmatprep.subr.mxu0 0.0
        %2638 = vmatpush2.msra.mxu0 0.0
        %2639 = vmatprep.subr.mxu0 0.0
        %2640 = vmatpush2.msra.mxu0 0.0
        %2641 = vmatprep.subr.mxu0 0.0
        %2642 = vmatpush2.msra.mxu0 0.0
        %2643 = vmatprep.subr.mxu0 0.0
        %2644 = vmatpush2.msra.mxu0 0.0
        %2645 = vmatprep.subr.mxu0 0.0
        %2646 = vmatpush2.msra.mxu0 0.0
        %2647 = vmatprep.subr.mxu0 0.0
        %2648 = vmatpush2.msra.mxu0 0.0
        %2649 = vmatprep.subr.mxu0 0.0
        %2650 = vmatpush2.msra.mxu0 0.0
        %2651 = vmatprep.subr.mxu0 0.0
        %2652 = vmatpush2.msra.mxu0 0.0
        %2653 = vmatprep.subr.mxu0 0.0
        %2654 = vmatpush2.msra.mxu0 0.0
        %2655 = vmatprep.subr.mxu0 0.0
        %2656 = vmatpush2.msra.mxu0 0.0
        %2657 = vmatprep.mubr.f32.mxu0 0.0
        %2658 = vmatmul.mubr.f32.gmra.mxu0 %v2338
        %v2659 = vpop.f32.mrf.mxu0
        %v2660 = vadd.f32 0.0, %v2659
        %v2661 = vpop.f32.mrf.mxu0
        %v2662 = vadd.f32 0.0, %v2661
        %2663 = vmatprep.mubr.f32.mxu0 0.0
        %2664 = vmatmul.mubr.f32.gmra.mxu0 %v2339
        %v2665 = vpop.f32.mrf.mxu0
        %v2666 = vadd.f32 0.0, %v2665
        %v2667 = vpop.f32.mrf.mxu0
        %v2668 = vadd.f32 0.0, %v2667
        %2669 = vmatprep.mubr.f32.mxu0 0.0
        %2670 = vmatmul.mubr.f32.gmra.mxu0 %v2340
        %v2671 = vpop.f32.mrf.mxu0
        %v2672 = vadd.f32 0.0, %v2671
        %v2673 = vpop.f32.mrf.mxu0
        %v2674 = vadd.f32 0.0, %v2673
        %2675 = vmatprep.mubr.f32.mxu0 0.0
        %2676 = vmatmul.mubr.f32.gmra.mxu0 %v2341
        %v2677 = vpop.f32.mrf.mxu0
        %v2678 = vadd.f32 0.0, %v2677
        %v2679 = vpop.f32.mrf.mxu0
        %v2680 = vadd.f32 0.0, %v2679
        %2681 = vdwg.mxu0
        %2682 = vmatprep.subr.mxu0 %v492
        %2683 = vmatpush1.msra.mxu0 %v491
        %2684 = vmatprep.subr.mxu0 %v486
        %2685 = vmatpush1.msra.mxu0 %v485
        %2686 = vmatprep.subr.mxu0 %v480
        %2687 = vmatpush1.msra.mxu0 %v479
        %2688 = vmatprep.subr.mxu0 %v474
        %2689 = vmatpush1.msra.mxu0 %v473
        %2690 = vmatprep.subr.mxu0 %v468
        %2691 = vmatpush1.msra.mxu0 %v467
        %2692 = vmatprep.subr.mxu0 %v462
        %2693 = vmatpush1.msra.mxu0 %v461
        %2694 = vmatprep.subr.mxu0 %v456
        %2695 = vmatpush1.msra.mxu0 %v455
        %2696 = vmatprep.subr.mxu0 %v450
        %2697 = vmatpush1.msra.mxu0 %v449
        %2698 = vmatprep.subr.mxu0 %v444
        %2699 = vmatpush1.msra.mxu0 %v443
        %2700 = vmatprep.subr.mxu0 %v438
        %2701 = vmatpush1.msra.mxu0 %v437
        %2702 = vmatprep.subr.mxu0 %v432
        %2703 = vmatpush1.msra.mxu0 %v431
        %2704 = vmatprep.subr.mxu0 %v426
        %2705 = vmatpush1.msra.mxu0 %v425
        %2706 = vmatprep.subr.mxu0 %v420
        %2707 = vmatpush1.msra.mxu0 %v419
        %2708 = vmatprep.subr.mxu0 %v414
        %2709 = vmatpush1.msra.mxu0 %v413
        %2710 = vmatprep.subr.mxu0 %v408
        %2711 = vmatpush1.msra.mxu0 %v407
        %2712 = vmatprep.subr.mxu0 %v402
        %2713 = vmatpush1.msra.mxu0 %v401
        %2714 = vmatprep.subr.mxu0 0.0
        %2715 = vmatpush2.msra.mxu0 0.0
        %2716 = vmatprep.subr.mxu0 0.0
        %2717 = vmatpush2.msra.mxu0 0.0
        %2718 = vmatprep.subr.mxu0 0.0
        %2719 = vmatpush2.msra.mxu0 0.0
        %2720 = vmatprep.subr.mxu0 0.0
        %2721 = vmatpush2.msra.mxu0 0.0
        %2722 = vmatprep.subr.mxu0 0.0
        %2723 = vmatpush2.msra.mxu0 0.0
        %2724 = vmatprep.subr.mxu0 0.0
        %2725 = vmatpush2.msra.mxu0 0.0
        %2726 = vmatprep.subr.mxu0 0.0
        %2727 = vmatpush2.msra.mxu0 0.0
        %2728 = vmatprep.subr.mxu0 0.0
        %2729 = vmatpush2.msra.mxu0 0.0
        %2730 = vmatprep.subr.mxu0 0.0
        %2731 = vmatpush2.msra.mxu0 0.0
        %2732 = vmatprep.subr.mxu0 0.0
        %2733 = vmatpush2.msra.mxu0 0.0
        %2734 = vmatprep.subr.mxu0 0.0
        %2735 = vmatpush2.msra.mxu0 0.0
        %2736 = vmatprep.subr.mxu0 0.0
        %2737 = vmatpush2.msra.mxu0 0.0
        %2738 = vmatprep.subr.mxu0 0.0
        %2739 = vmatpush2.msra.mxu0 0.0
        %2740 = vmatprep.subr.mxu0 0.0
        %2741 = vmatpush2.msra.mxu0 0.0
        %2742 = vmatprep.subr.mxu0 0.0
        %2743 = vmatpush2.msra.mxu0 0.0
        %2744 = vmatprep.subr.mxu0 0.0
        %2745 = vmatpush2.msra.mxu0 0.0
        %2746 = vmatprep.mubr.f32.mxu0 0.0
        %2747 = vmatmul.mubr.f32.gmra.mxu0 %v2338
        %v2748 = vpop.f32.mrf.mxu0
        %v2749 = vadd.f32 0.0, %v2748
        %v2750 = vpop.f32.mrf.mxu0
        %v2751 = vadd.f32 0.0, %v2750
        %2752 = vmatprep.mubr.f32.mxu0 0.0
        %2753 = vmatmul.mubr.f32.gmra.mxu0 %v2339
        %v2754 = vpop.f32.mrf.mxu0
        %v2755 = vadd.f32 0.0, %v2754
        %v2756 = vpop.f32.mrf.mxu0
        %v2757 = vadd.f32 0.0, %v2756
        %2758 = vmatprep.mubr.f32.mxu0 0.0
        %2759 = vmatmul.mubr.f32.gmra.mxu0 %v2340
        %v2760 = vpop.f32.mrf.mxu0
        %v2761 = vadd.f32 0.0, %v2760
        %v2762 = vpop.f32.mrf.mxu0
        %v2763 = vadd.f32 0.0, %v2762
        %2764 = vmatprep.mubr.f32.mxu0 0.0
        %2765 = vmatmul.mubr.f32.gmra.mxu0 %v2341
        %v2766 = vpop.f32.mrf.mxu0
        %v2767 = vadd.f32 0.0, %v2766
        %v2768 = vpop.f32.mrf.mxu0
        %v2769 = vadd.f32 0.0, %v2768
        %2770 = vdwg.mxu0
        %v2771 = vadd.f32 %v2660, %v1132
        %v2772 = vadd.f32 %v2666, %v1132
        %v2773 = vadd.f32 %v2672, %v1132
        %v2774 = vadd.f32 %v2678, %v1132
        %v2775 = vxor.u32 %v2771, 2147483648
        %v2776 = vxor.u32 %v2772, 2147483648
        %v2777 = vxor.u32 %v2773, 2147483648
        %v2778 = vxor.u32 %v2774, 2147483648
        %v2779 = vmul.f32 %v2775, 1.442695
        %v2780 = vpow.pop %v2779
        %v2781 = vmul.f32 %v2776, 1.442695
        %v2782 = vpow.pop %v2781
        %v2783 = vmul.f32 %v2777, 1.442695
        %v2784 = vpow.pop %v2783
        %v2785 = vmul.f32 %v2778, 1.442695
        %v2786 = vpow.pop %v2785
        %v2787 = vadd.f32 %v2780, 1.0
        %v2788 = vadd.f32 %v2782, 1.0
        %v2789 = vadd.f32 %v2784, 1.0
        %v2790 = vadd.f32 %v2786, 1.0
        %v2791 = vrcp.pop %v2787
        %v2792 = vmul.f32 1.0, %v2791
        %v2793 = vrcp.pop %v2788
        %v2794 = vmul.f32 1.0, %v2793
        %v2795 = vrcp.pop %v2789
        %v2796 = vmul.f32 1.0, %v2795
        %v2797 = vrcp.pop %v2790
        %v2798 = vmul.f32 1.0, %v2797
        %v2799 = vadd.f32 %v2662, %v1164
        %v2800 = vadd.f32 %v2668, %v1164
        %v2801 = vadd.f32 %v2674, %v1164
        %v2802 = vadd.f32 %v2680, %v1164
        %v2803 = vxor.u32 %v2799, 2147483648
        %v2804 = vxor.u32 %v2800, 2147483648
        %v2805 = vxor.u32 %v2801, 2147483648
        %v2806 = vxor.u32 %v2802, 2147483648
        %v2807 = vmul.f32 %v2803, 1.442695
        %v2808 = vpow.pop %v2807
        %v2809 = vmul.f32 %v2804, 1.442695
        %v2810 = vpow.pop %v2809
        %v2811 = vmul.f32 %v2805, 1.442695
        %v2812 = vpow.pop %v2811
        %v2813 = vmul.f32 %v2806, 1.442695
        %v2814 = vpow.pop %v2813
        %v2815 = vadd.f32 %v2808, 1.0
        %v2816 = vadd.f32 %v2810, 1.0
        %v2817 = vadd.f32 %v2812, 1.0
        %v2818 = vadd.f32 %v2814, 1.0
        %v2819 = vrcp.pop %v2815
        %v2820 = vmul.f32 1.0, %v2819
        %v2821 = vrcp.pop %v2816
        %v2822 = vmul.f32 1.0, %v2821
        %v2823 = vrcp.pop %v2817
        %v2824 = vmul.f32 1.0, %v2823
        %v2825 = vrcp.pop %v2818
        %v2826 = vmul.f32 1.0, %v2825
        %v2827 = vadd.f32 %v2749, %v1196
        %v2828 = vadd.f32 %v2755, %v1196
        %v2829 = vadd.f32 %v2761, %v1196
        %v2830 = vadd.f32 %v2767, %v1196
        %v2831 = vadd.f32 %v2751, %v1204
        %v2832 = vadd.f32 %v2757, %v1204
        %v2833 = vadd.f32 %v2763, %v1204
        %v2834 = vadd.f32 %v2769, %v1204
        %v2835 = vsub.f32 1.0, %v2792
        %v2836 = vsub.f32 1.0, %v2794
        %v2837 = vsub.f32 1.0, %v2796
        %v2838 = vsub.f32 1.0, %v2798
        %v2839 = vmul.f32 %v2827, %v2835
        %v2840 = vmul.f32 %v2828, %v2836
        %v2841 = vmul.f32 %v2829, %v2837
        %v2842 = vmul.f32 %v2830, %v2838
        %v2843 = vmul.f32 %v2302, %v2792
        %v2844 = vmul.f32 %v2303, %v2794
        %v2845 = vmul.f32 %v2304, %v2796
        %v2846 = vmul.f32 %v2305, %v2798
        %v2847 = vadd.f32 %v2839, %v2843
        %v2848 = vadd.f32 %v2840, %v2844
        %v2849 = vadd.f32 %v2841, %v2845
        %v2850 = vadd.f32 %v2842, %v2846
        %v2851 = vmul.f32 %v2302, %v2835
        %v2852 = vmul.f32 %v2303, %v2836
        %v2853 = vmul.f32 %v2304, %v2837
        %v2854 = vmul.f32 %v2305, %v2838
        %v2855 = vmul.f32 %v2314, %v2558
        %v2856 = vmul.f32 %v2315, %v2560
        %v2857 = vmul.f32 %v2316, %v2562
        %v2858 = vmul.f32 %v2317, %v2564
        %v2859 = vadd.f32 %v2851, %v2855
        %v2860 = vadd.f32 %v2852, %v2856
        %v2861 = vadd.f32 %v2853, %v2857
        %v2862 = vadd.f32 %v2854, %v2858
        %v2863 = vtanh.pop %v2847
        %v2864 = vtanh.pop %v2848
        %v2865 = vtanh.pop %v2849
        %v2866 = vtanh.pop %v2850
        %v2867 = vmul.f32 %v2863, %v2820
        %v2868 = vmul.f32 %v2864, %v2822
        %v2869 = vmul.f32 %v2865, %v2824
        %v2870 = vmul.f32 %v2866, %v2826
        %v2871 = vtanh.pop %v2859
        %v2872 = vtanh.pop %v2860
        %v2873 = vtanh.pop %v2861
        %v2874 = vtanh.pop %v2862
        %v2875 = vmul.f32 %v2871, %v2586
        %v2876 = vmul.f32 %v2872, %v2588
        %v2877 = vmul.f32 %v2873, %v2590
        %v2878 = vmul.f32 %v2874, %v2592
        %v2879 = vadd.f32 %v2867, %v2875
        %v2880 = vadd.f32 %v2868, %v2876
        %v2881 = vadd.f32 %v2869, %v2877
        %v2882 = vadd.f32 %v2870, %v2878
        %v2883 = vadd.f32 %v2879, %v2831
        %v2884 = vadd.f32 %v2880, %v2832
        %v2885 = vadd.f32 %v2881, %v2833
        %v2886 = vadd.f32 %v2882, %v2834
        %s2887 = scalar_lea.vmem [#allocation11], 384
        %v2888 = vld [vmem:[%s2887] sm:$0xff]
        %v2889 = vld [vmem:[%s2887 + $0x8] sm:$0xff]
        %v2890 = vld [vmem:[%s2887 + $0x10] sm:$0xff]
        %v2891 = vld [vmem:[%s2887 + $0x18] sm:$0xff]
        %v2892 = vld [vmem:[%s2887 + $0x20] sm:$0xff]
        %v2893 = vld [vmem:[%s2887 + $0x28] sm:$0xff]
        %v2894 = vld [vmem:[%s2887 + $0x30] sm:$0xff]
        %v2895 = vld [vmem:[%s2887 + $0x38] sm:$0xff]
        %v2896 = vld [vmem:[%s2887 + $0x40] sm:$0xff]
        %v2897 = vld [vmem:[%s2887 + $0x48] sm:$0xff]
        %v2898 = vld [vmem:[%s2887 + $0x50] sm:$0xff]
        %v2899 = vld [vmem:[%s2887 + $0x58] sm:$0xff]
        %v2900 = vld [vmem:[%s2887 + $0x60] sm:$0xff]
        %v2901 = vld [vmem:[%s2887 + $0x68] sm:$0xff]
        %v2902 = vld [vmem:[%s2887 + $0x70] sm:$0xff]
        %v2903 = vld [vmem:[%s2887 + $0x78] sm:$0xff]
        %2904 = vmatprep.subr.mxu0 0.0
        %2905 = vmatpush1.msra.mxu0 %v2903
        %2906 = vmatprep.subr.mxu0 0.0
        %2907 = vmatpush1.msra.mxu0 %v2902
        %2908 = vmatprep.subr.mxu0 0.0
        %2909 = vmatpush1.msra.mxu0 %v2901
        %2910 = vmatprep.subr.mxu0 0.0
        %2911 = vmatpush1.msra.mxu0 %v2900
        %2912 = vmatprep.subr.mxu0 0.0
        %2913 = vmatpush1.msra.mxu0 %v2899
        %2914 = vmatprep.subr.mxu0 0.0
        %2915 = vmatpush1.msra.mxu0 %v2898
        %2916 = vmatprep.subr.mxu0 0.0
        %2917 = vmatpush1.msra.mxu0 %v2897
        %2918 = vmatprep.subr.mxu0 0.0
        %2919 = vmatpush1.msra.mxu0 %v2896
        %2920 = vmatprep.subr.mxu0 0.0
        %2921 = vmatpush1.msra.mxu0 %v2895
        %2922 = vmatprep.subr.mxu0 0.0
        %2923 = vmatpush1.msra.mxu0 %v2894
        %2924 = vmatprep.subr.mxu0 0.0
        %2925 = vmatpush1.msra.mxu0 %v2893
        %2926 = vmatprep.subr.mxu0 0.0
        %2927 = vmatpush1.msra.mxu0 %v2892
        %2928 = vmatprep.subr.mxu0 0.0
        %2929 = vmatpush1.msra.mxu0 %v2891
        %2930 = vmatprep.subr.mxu0 0.0
        %2931 = vmatpush1.msra.mxu0 %v2890
        %2932 = vmatprep.subr.mxu0 0.0
        %2933 = vmatpush1.msra.mxu0 %v2889
        %2934 = vmatprep.subr.mxu0 0.0
        %2935 = vmatpush1.msra.mxu0 %v2888
        %2936 = vmatprep.subr.mxu0 0.0
        %2937 = vmatpush2.msra.mxu0 0.0
        %2938 = vmatprep.subr.mxu0 0.0
        %2939 = vmatpush2.msra.mxu0 0.0
        %2940 = vmatprep.subr.mxu0 0.0
        %2941 = vmatpush2.msra.mxu0 0.0
        %2942 = vmatprep.subr.mxu0 0.0
        %2943 = vmatpush2.msra.mxu0 0.0
        %2944 = vmatprep.subr.mxu0 0.0
        %2945 = vmatpush2.msra.mxu0 0.0
        %2946 = vmatprep.subr.mxu0 0.0
        %2947 = vmatpush2.msra.mxu0 0.0
        %2948 = vmatprep.subr.mxu0 0.0
        %2949 = vmatpush2.msra.mxu0 0.0
        %2950 = vmatprep.subr.mxu0 0.0
        %2951 = vmatpush2.msra.mxu0 0.0
        %2952 = vmatprep.subr.mxu0 0.0
        %2953 = vmatpush2.msra.mxu0 0.0
        %2954 = vmatprep.subr.mxu0 0.0
        %2955 = vmatpush2.msra.mxu0 0.0
        %2956 = vmatprep.subr.mxu0 0.0
        %2957 = vmatpush2.msra.mxu0 0.0
        %2958 = vmatprep.subr.mxu0 0.0
        %2959 = vmatpush2.msra.mxu0 0.0
        %2960 = vmatprep.subr.mxu0 0.0
        %2961 = vmatpush2.msra.mxu0 0.0
        %2962 = vmatprep.subr.mxu0 0.0
        %2963 = vmatpush2.msra.mxu0 0.0
        %2964 = vmatprep.subr.mxu0 0.0
        %2965 = vmatpush2.msra.mxu0 0.0
        %2966 = vmatprep.subr.mxu0 0.0
        %2967 = vmatpush2.msra.mxu0 0.0
        %2968 = vmatprep.mubr.f32.mxu0 0.0
        %2969 = vmatmul.mubr.f32.gmra.mxu0 %v2883
        %v2970 = vpop.f32.mrf.mxu0
        %v2971 = vadd.f32 0.0, %v2970
        %v2972 = vpop.f32.mrf.mxu0
        %2973 = vmatprep.mubr.f32.mxu0 0.0
        %2974 = vmatmul.mubr.f32.gmra.mxu0 %v2884
        %v2975 = vpop.f32.mrf.mxu0
        %v2976 = vadd.f32 0.0, %v2975
        %v2977 = vpop.f32.mrf.mxu0
        %2978 = vmatprep.mubr.f32.mxu0 0.0
        %2979 = vmatmul.mubr.f32.gmra.mxu0 %v2885
        %v2980 = vpop.f32.mrf.mxu0
        %v2981 = vadd.f32 0.0, %v2980
        %v2982 = vpop.f32.mrf.mxu0
        %2983 = vmatprep.mubr.f32.mxu0 0.0
        %2984 = vmatmul.mubr.f32.gmra.mxu0 %v2886
        %v2985 = vpop.f32.mrf.mxu0
        %v2986 = vadd.f32 0.0, %v2985
        %v2987 = vpop.f32.mrf.mxu0
        %2988 = vdwg.mxu0
        %v2989 = vadd.f32 %v2444, %v2971
        %v2990 = vadd.f32 %v2445, %v2976
        %v2991 = vadd.f32 %v2446, %v2981
        %v2992 = vadd.f32 %v2447, %v2986
        %v2993 = vlaneseq
        %v2994 = vshrl.u32 %v2993, 7
        %v2995 = vsub.s32 0, %v2994
        %v2996 = vrot.slane %v396, %v2995
        %v2997 = vadd.f32 %v2989, %v2996
        %v2998 = vadd.f32 %v2990, %v2996
        %v2999 = vadd.f32 %v2991, %v2996
        %v3000 = vadd.f32 %v2992, %v2996
        %3001 = vst [vmem:[%s390] sm:$0xff] %v2997
        %3002 = vst [vmem:[%s390 + $0x8] sm:$0xff] %v2998
        %3003 = vst [vmem:[%s390 + $0x10] sm:$0xff] %v2999
        %3004 = vst [vmem:[%s390 + $0x18] sm:$0xff] %v3000
        %s3005 = sand.u32 %s177, 1
        %s3006 = scalar_lea.sflag [#allocation4], %s3005
        %s3007 = sand.u32 %s177, 1
        %s3008 = smul.addr %s3007, 32
        %s3009 = scalar_lea.vmem [#allocation13], %s3008
        // Predicated region
        $region69: #{tpu_custom_call.1} parent=43 // pred_check
          %p3010 = pneg %p187
        $region70: #{tpu_custom_call.1} parent=43 // pred_check_branch
          %3012 = sbr.rel (%p3010) target = $region72
        $region71: #{tpu_custom_call.1} parent=43 // pred_region
          %s3013 = smul.u32 4, %s28
          %s3015 = ssub.s32 512, 512
          %3016 = vsyncadd %s3006, %s3015
          %s3017 = smul.addr %s3013, 128
          %s3018 = scalar_lea.hbm %s6, %s3017
          %s3019 = sshll.u32 %s3009, 4
          %s3020 = int_to_ptr.vmem [resolvable:$true] %s3019
          %3025 = dma.vmem_to_hbm [thread:$0]  %s3020, 512, %s3018, %s3006, 128, 128, 8
        $region72: #{tpu_custom_call.1} parent=43 // pred_fallthru
          _
      $region44: #{tpu_custom_call.1} parent=5 // pred_fallthru
        _
      %p3026 = scmp.le.s32.totalorder 2, %s23
      // Predicated region
      $region73: #{tpu_custom_call.1} parent=5 // pred_check
        %p3027 = pneg %p3026
      $region74: #{tpu_custom_call.1} parent=5 // pred_check_branch
        %3029 = sbr.rel (%p3027) target = $region76
      $region75: #{tpu_custom_call.1} parent=5 // pred_region
        %s3030 = ssub.s32 %s23, 2
        // Predicated region
        $region77: #{tpu_custom_call.1} parent=75 // pred_check
          %p3031 = pneg %p193
        $region78: #{tpu_custom_call.1} parent=75 // pred_check_branch
          %3033 = sbr.rel (%p3031) target = $region80
        $region79: #{tpu_custom_call.1} parent=75 // pred_region
          %s3034 = sand.u32 %s178, 1
          %s3035 = scalar_lea.sflag [#allocation4], %s3034
          %s3036 = sand.u32 %s178, 1
          %s3037 = smul.addr %s3036, 32
          %s3038 = scalar_lea.vmem [#allocation13], %s3037
          %3039 = dma.done %s3035, 512
        $region80: #{tpu_custom_call.1} parent=75 // pred_fallthru
          _
      $region76: #{tpu_custom_call.1} parent=5 // pred_fallthru
        _
    $region6: #{tpu_custom_call.1} parent=1 // loop_footer
      %s27 = sadd.s32 1, %s23
    $region7: #{tpu_custom_call.1} parent=1 // loop_footer_branch
      %22 = sbr.rel target = $region3
    $region8: #{tpu_custom_call.1} parent=1 // loop_exit
      _
    %3040 = vsyncpa [#allocation3], 1
    %s3041 = scalar_lea.sflag [#allocation3], 1
    %3042 = vsyncpa %s3041, 1
    %3043 = vsyncpa [#allocation6], 1
    %s3044 = scalar_lea.sflag [#allocation6], 1
    %3045 = vsyncpa %s3044, 1
    %3046 = vsyncpa [#allocation9], 1
    %3047 = vsyncpa [#allocation12], 1
    %3048 = vsyncpa [#allocation4], 1
    %s3049 = scalar_lea.sflag [#allocation4], 1
    %3050 = vsyncpa %s3049, 1

</llo_original>
